<compile_context>
chip_gen: v7x
topology: tpu7x:2x2x1
jax: 0.10.0
libtpu: 0.0.40
codegen_flags: <defaults>
</compile_context>

<pallas_src>
import functools

import jax
import jax.numpy as jnp
from jax import lax
from jax.experimental import pallas as pl
from jax.experimental.pallas import tpu as pltpu

N_AGENTS = 256      # multiple of 128 -> lane-dense
N_TIMESTEPS = 4
DELTA_T = 1.0


# ----------------------------------------------------------------------------
# Fused kernel: grid step 0 == initialize(), steps 1..T == step(); every step
# also does observe() and (for 1 <= s <= T-1) update_graph().
# ----------------------------------------------------------------------------
def _sir_fused_kernel(scal_ref,                       # scalar prefetch (SMEM)
                      adj0_ref, u_ag_ref, u_pair_ref,  # inputs (VMEM blocks)
                      x_days_ref, ego_ref,             # per-day outputs
                      adj_s, x_s):                     # VMEM scratch (carried)
    n = adj_s.shape[0]
    s = pl.program_id(0)
    n_days = pl.num_programs(0)          # == n_timesteps + 1

    gamma = scal_ref[0]
    rho = scal_ref[1]
    p_init = scal_ref[2]
    alpha1 = scal_ref[3]
    alpha2 = scal_ref[4]
    beta1 = scal_ref[5]
    beta2 = scal_ref[6]
    delta_t = scal_ref[7]
    log_init_mean_deg = scal_ref[8]

    # ----- day 0: SIR.initialize() ------------------------------------------
    @pl.when(s == 0)
    def _():
        adj_s[...] = adj0_ref[...]
        # Hard Bernoulli as a uniform threshold (forward-equivalent to the
        # hard Gumbel-Softmax sample of the reference).
        # TODO(synk): no straight-through gradient is defined through the
        # sampling; jax.grad through the sampler needs a custom surrogate.
        new_inf = (u_ag_ref[0, 0:1, :] < p_init).astype(jnp.float32)
        x_s[0:1, :] = new_inf
        x_s[1:2, :] = 1.0 - new_inf
        x_s[2:3, :] = jnp.zeros((1, n), jnp.float32)
        x_s[3:4, :] = jnp.ones((1, n), jnp.float32)    # ones row -> deg via MXU
        x_s[4:8, :] = jnp.zeros((4, n), jnp.float32)   # deg stash / state / pad

    # ----- days >= 1: SIR.step() --------------------------------------------
    @pl.when(s > 0)
    def _():
        a = adj_s[...]
        infected = x_s[0:1, :]
        susceptible = x_s[1:2, :]
        recovered = x_s[2:3, :]

        # One MXU matvec yields both the infected-neighbor sums (row 0) and
        # the degrees (row 3, from the ones row) -- no XLU column reduce.
        xs = jnp.dot(x_s[0:4, :], a, preferred_element_type=jnp.float32)
        inf_sum = xs[0:1, :]
        deg = xs[3:4, :]

        n_inf_nbrs = (1.0 - infected) * inf_sum
        lam = ((susceptible + rho * recovered) * n_inf_nbrs
               / jnp.maximum(deg, 1.0) * delta_t)
        p_inf = jnp.clip(1.0 - jnp.exp(-lam), 1e-10, 1.0)
        new_inf = (u_ag_ref[0, 0:1, :] < p_inf).astype(jnp.float32)

        # NOTE: the 1e-10 floor (as in torch) makes recovery possible (w.p.
        # ~1e-10) even for uninfected agents -- kept for reference parity.
        p_rec = jnp.clip(gamma * infected, 1e-10, 1.0)
        new_rec = (u_ag_ref[0, 1:2, :] < p_rec).astype(jnp.float32)

        x_s[0:1, :] = infected + new_inf - new_rec
        x_s[1:2, :] = susceptible - susceptible * new_inf
        x_s[2:3, :] = recovered + new_rec - recovered * new_inf
        x_s[4:5, :] = deg        # stash: adjacency unchanged until rewiring

    # ----- observe(): per-day outputs ---------------------------------------
    inf = x_s[0:1, :]
    sus = x_s[1:2, :]
    rec = x_s[2:3, :]
    # argmax over the 3 state rows; first maximum wins (torch.argmax behavior)
    states_f = jnp.where(inf >= jnp.maximum(sus, rec), 0.0,
                         jnp.where(sus >= rec, 1.0, 2.0))
    x_s[5:6, :] = states_f
    # Single unmasked (8, N) store; wrapper slices rows 0..2 (x) and row 5
    # (states).
    x_days_ref[0] = x_s[...]
    # TODO(synk): RootedEgoNets(num_hops=1) has no array/Pallas equivalent;
    # the dense adjacency snapshot of the day's graph is emitted instead.
    ego_ref[0] = adj_s[...].astype(ego_ref.dtype)

    # ----- update_graph(): stochastic rewiring (skipped after the last step,
    # whose updated graph is never used/returned by the torch module) ---------
    @pl.when(jnp.logical_and(s >= 1, s < n_days - 1))
    def _():
        a = adj_s[...]
        deg = x_s[4:5, :]                                  # (1, N), reused

        tot = jnp.sum(deg, axis=1, keepdims=True)          # (1, 1) directed edges
        mean_deg = tot * (1.0 / n)
        lg = jnp.log(mean_deg)
        lg = jnp.where(jnp.abs(lg) < 1e-12, 1e-12, lg)      # guard logn(., 1)
        inv_log_ratio = log_init_mean_deg / lg              # = 1 / logn(init, cur)

        # fix_prob(..., 'rm') / fix_prob(..., 'add')
        p_rm_same = jnp.clip(-alpha1 * inv_log_ratio + 2.0 * alpha1, 1e-10, 1.0)
        p_rm_diff = jnp.clip(-alpha2 * inv_log_ratio + 2.0 * alpha2, 1e-10, 1.0)
        p_add_same = jnp.clip(beta1 * inv_log_ratio, 1e-10, 1.0)
        p_add_diff = jnp.clip(beta2 * inv_log_ratio, 1e-10, 1.0)

        # same-state indicator: tiny (1,N)->(N,1) relayout instead of a full
        # (N,N) transpose.
        st_row = x_s[5:6, :]                               # (1, N)
        st_col = jnp.transpose(st_row)                      # (N, 1)
        same_bool = (jnp.broadcast_to(st_col, (n, n)) ==
                     jnp.broadcast_to(st_row, (n, n)))
        same_f = same_bool.astype(jnp.float32)

        same_edges = jnp.sum(jnp.sum(a * same_f, axis=0, keepdims=True),
                             axis=1, keepdims=True)         # (1, 1)
        diff_edges = tot - same_edges
        n_pairs = float(n * (n - 1))
        # TODO(synk): PyG add_random_edge adds an *exact count* of random
        # undirected edges; approximated with a per-pair Bernoulli of matching
        # expectation (dense adjacency, static shapes).
        p_pair_same = jnp.clip(p_add_same * same_edges * (1.0 / n_pairs), 0.0, 1.0)
        p_pair_diff = jnp.clip(p_add_diff * diff_edges * (1.0 / n_pairs), 0.0, 1.0)

        # dropout_edge(force_undirected=True): keep each undirected edge w.p.
        # 1-p; add_random_edge approximation: per-pair Bernoulli.  Applied on
        # the upper triangle only, then symmetrized with a single transpose.
        u_keep = u_pair_ref[0, 0:n, :]
        u_add = u_pair_ref[0, n:2 * n, :]
        keep = (u_keep >= jnp.where(same_bool, p_rm_same, p_rm_diff)
                ).astype(jnp.float32)
        add = (u_add < jnp.where(same_bool, p_pair_same, p_pair_diff)
               ).astype(jnp.float32)

        row_i = lax.broadcasted_iota(jnp.int32, (n, n), 0)
        col_j = lax.broadcasted_iota(jnp.int32, (n, n), 1)
        upper = (row_i < col_j).astype(jnp.float32)          # excludes diagonal

        # sort_edge_index + RemoveDuplicatedEdges == clamp the 0/1 adjacency
        new_upper = jnp.clip(a * keep + add, 0.0, 1.0) * upper
        adj_s[...] = new_upper + jnp.transpose(new_upper)


# ----------------------------------------------------------------------------
# Plain-JAX glue
# ----------------------------------------------------------------------------
def _soft_minimum(a, b, k):
    return -jnp.logaddexp(-k * a, -k * b) / k


@functools.partial(jax.jit, static_argnames=("n_timesteps", "n_agents", "delta_t"))
def sir_forward(params, adj0, key, *, n_timesteps=N_TIMESTEPS,
                n_agents=N_AGENTS, delta_t=DELTA_T):
    params_t = (10.0 ** _soft_minimum(params, 0.0, 2.0)).astype(jnp.float32)
    init_mean_degree = jnp.sum(adj0) / n_agents
    log_init = jnp.log(jnp.maximum(init_mean_degree, 1e-12))
    log_init = jnp.where(jnp.abs(log_init) < 1e-12, 1e-12, log_init)  # guard base-1 log

    scal = jnp.concatenate([
        params_t,                                  # gamma, rho, f0, a1, a2, b1, b2
        jnp.array([delta_t], jnp.float32),
        log_init.reshape(1).astype(jnp.float32),
    ])

    n_days = n_timesteps + 1
    n = n_agents

    # All randomness precomputed (portable: no in-kernel hardware PRNG).
    # row 0: infection/init uniform, row 1: recovery uniform, rows 2..7 unused.
    k_ag, k_pair = jax.random.split(key)
    u_agents = jax.random.uniform(k_ag, (n_days, 8, n), jnp.float32)
    # per-day pair uniforms: rows [0:n] = keep draws, rows [n:2n] = add draws
    u_pairs = jax.random.uniform(k_pair, (n_days, 2 * n, n), jnp.float32)

    x_days, ego_days = pl.pallas_call(
        _sir_fused_kernel,
        out_shape=(
            jax.ShapeDtypeStruct((n_days, 8, n), jnp.float32),     # per-day state slab
            jax.ShapeDtypeStruct((n_days, n, n), jnp.bfloat16),    # per-day graph (0/1)
        ),
        grid_spec=pltpu.PrefetchScalarGridSpec(
            num_scalar_prefetch=1,
            grid=(n_days,),
            in_specs=[
                pl.BlockSpec((n, n), lambda s, *_: (0, 0)),        # adj0
                pl.BlockSpec((1, 8, n), lambda s, *_: (s, 0, 0)),   # agent uniforms
                pl.BlockSpec((1, 2 * n, n), lambda s, *_: (s, 0, 0)),  # pair uniforms
            ],
            out_specs=(
                pl.BlockSpec((1, 8, n), lambda s, *_: (s, 0, 0)),
                pl.BlockSpec((1, n, n), lambda s, *_: (s, 0, 0)),
            ),
            scratch_shapes=[
                pltpu.VMEM((n, n), jnp.float32),   # adjacency, carried across days
                pltpu.VMEM((8, n), jnp.float32),   # agent state / ones / deg / argmax
            ],
        ),
        compiler_params=pltpu.CompilerParams(
            dimension_semantics=("arbitrary",)),   # sequential: state carried in scratch
        # TODO(synk): for v7x throughput, add a leading "parallel" replica axis
        # (independent seeds/graphs per TensorCore); single-sim stays 1 TC.
    )(scal, adj0.astype(jnp.float32), u_agents, u_pairs)

    # SIR.observe() per-state fractions, reduced in the wrapper from the
    # lane-dense per-day state slab (cheaper than lane-width-1 VMEM outputs).
    fracs = jnp.sum(x_days[:, 0:3, :], axis=2) * (1.0 / n_agents)   # (n_days, 3)
    susceptible_per_day = fracs[:, 1]
    infected_per_day = fracs[:, 0]
    recovered_per_day = fracs[:, 2]
    states_per_day = x_days[:, 5, :].astype(jnp.int32)

    return (susceptible_per_day, infected_per_day, recovered_per_day,
            states_per_day, ego_days)


# ----------------------------------------------------------------------------
if __name__ == "__main__":
    key = jax.random.PRNGKey(0)
    k_graph, k_params, k_run = jax.random.split(key, 3)

    # Deterministic Erdos-Renyi-like graph: symmetric, no self loops, p ~ 0.05.
    u = jnp.triu(jax.random.uniform(k_graph, (N_AGENTS, N_AGENTS)), k=1)
    u = u + u.T
    adj0 = ((u > 0.0) & (u < 0.05)).astype(jnp.float32)

    # params (log10-space, as in the torch module):
    # [gamma, rho, initial_fraction_infected, alpha1, alpha2, beta1, beta2]
    params = -(jax.random.uniform(k_params, (7,), jnp.float32) * 1.5 + 0.5)

    sus, inf, rec, states, ego_nets = jax.block_until_ready(
        sir_forward(params, adj0, k_run))

    assert sus.shape == (N_TIMESTEPS + 1,)
    assert inf.shape == (N_TIMESTEPS + 1,)
    assert rec.shape == (N_TIMESTEPS + 1,)
    assert states.shape == (N_TIMESTEPS + 1, N_AGENTS)
    assert ego_nets.shape == (N_TIMESTEPS + 1, N_AGENTS, N_AGENTS)
    assert bool(jnp.isfinite(sus).all() & jnp.isfinite(inf).all()
                & jnp.isfinite(rec).all())
    print("KERNEL_OK")
</pallas_src>

<mosaic_0001>
module attributes {stable_mosaic.version = 11 : i64} {
  func.func @_sir_fused_kernel(%arg0: i32, %arg1: memref<9xf32, #tpu.memory_space<smem>>, %arg2: memref<256x256xf32, #tpu.memory_space<vmem>>, %arg3: memref<1x8x256xf32, #tpu.memory_space<vmem>>, %arg4: memref<1x512x256xf32, #tpu.memory_space<vmem>>, %arg5: memref<1x8x256xf32, #tpu.memory_space<vmem>>, %arg6: memref<1x256x256xbf16, #tpu.memory_space<vmem>>, %arg7: memref<256x256xf32, #tpu.memory_space<vmem>>, %arg8: memref<8x256xf32, #tpu.memory_space<vmem>>) attributes {dimension_semantics = [#tpu.dimension_semantics<arbitrary>], iteration_bounds = array<i64: 5>, scalar_prefetch = 1 : i64, scratch_operands = 2 : i64, tpu.core_type = #tpu.core_type<tc>, window_params = [{pipeline_mode = #tpu.pipeline_mode<synchronous>, transform_indices = @transform_0, window_bounds = array<i64: 256, 256>}, {transform_indices = @transform_1, window_bounds = array<i64: 1, 8, 256>}, {transform_indices = @transform_2, window_bounds = array<i64: 1, 512, 256>}, {transform_indices = @transform_3, window_bounds = array<i64: 1, 8, 256>}, {transform_indices = @transform_4, window_bounds = array<i64: 1, 256, 256>}]} {
    %c0 = arith.constant 0 : index
    %0 = memref.load %arg1[%c0] : memref<9xf32, #tpu.memory_space<smem>>
    %c1 = arith.constant 1 : index
    %1 = memref.load %arg1[%c1] : memref<9xf32, #tpu.memory_space<smem>>
    %c2 = arith.constant 2 : index
    %2 = memref.load %arg1[%c2] : memref<9xf32, #tpu.memory_space<smem>>
    %c3 = arith.constant 3 : index
    %3 = memref.load %arg1[%c3] : memref<9xf32, #tpu.memory_space<smem>>
    %c4 = arith.constant 4 : index
    %4 = memref.load %arg1[%c4] : memref<9xf32, #tpu.memory_space<smem>>
    %c5 = arith.constant 5 : index
    %5 = memref.load %arg1[%c5] : memref<9xf32, #tpu.memory_space<smem>>
    %c6 = arith.constant 6 : index
    %6 = memref.load %arg1[%c6] : memref<9xf32, #tpu.memory_space<smem>>
    %c7 = arith.constant 7 : index
    %7 = memref.load %arg1[%c7] : memref<9xf32, #tpu.memory_space<smem>>
    %c8 = arith.constant 8 : index
    %8 = memref.load %arg1[%c8] : memref<9xf32, #tpu.memory_space<smem>>
    %c0_i32 = arith.constant 0 : i32
    %9 = arith.cmpi eq, %arg0, %c0_i32 : i32
    %10 = arith.extui %9 : i1 to i32
    %c0_i32_0 = arith.constant 0 : i32
    %11 = arith.cmpi ne, %10, %c0_i32_0 : i32
    scf.if %11 {
      %c0_24 = arith.constant 0 : index
      %c0_25 = arith.constant 0 : index
      %41 = vector.load %arg2[%c0_24, %c0_25] : memref<256x256xf32, #tpu.memory_space<vmem>>, vector<256x256xf32>
      %c0_26 = arith.constant 0 : index
      %c0_27 = arith.constant 0 : index
      %42 = vector.load %arg7[%c0_26, %c0_27] : memref<256x256xf32, #tpu.memory_space<vmem>>, vector<256x256xf32>
      tpu.vector_store %arg7[%c0_26, %c0_27], %41 {strides = array<i32>} : memref<256x256xf32, #tpu.memory_space<vmem>>, vector<256x256xf32>,
      %c0_28 = arith.constant 0 : index
      %c0_29 = arith.constant 0 : index
      %c0_30 = arith.constant 0 : index
      %43 = vector.load %arg3[%c0_28, %c0_29, %c0_30] : memref<1x8x256xf32, #tpu.memory_space<vmem>>, vector<1x1x256xf32>
      %44 = vector.shape_cast %43 : vector<1x1x256xf32> to vector<1x256xf32>
      %45 = vector.broadcast %2 : f32 to vector<1x256xf32>
      %46 = arith.cmpf olt, %44, %45 : vector<1x256xf32>
      %47 = arith.extui %46 : vector<1x256xi1> to vector<1x256xi32>
      %48 = arith.sitofp %47 : vector<1x256xi32> to vector<1x256xf32>
      %c0_31 = arith.constant 0 : index
      %c0_32 = arith.constant 0 : index
      %49 = vector.load %arg8[%c0_31, %c0_32] : memref<8x256xf32, #tpu.memory_space<vmem>>, vector<1x256xf32>
      tpu.vector_store %arg8[%c0_31, %c0_32], %48 {strides = array<i32>} : memref<8x256xf32, #tpu.memory_space<vmem>>, vector<1x256xf32>,
      %cst_33 = arith.constant 1.000000e+00 : f32
      %50 = vector.broadcast %cst_33 : f32 to vector<1x256xf32>
      %51 = arith.subf %50, %48 : vector<1x256xf32>
      %c1_34 = arith.constant 1 : index
      %c0_35 = arith.constant 0 : index
      %52 = vector.load %arg8[%c1_34, %c0_35] : memref<8x256xf32, #tpu.memory_space<vmem>>, vector<1x256xf32>
      tpu.vector_store %arg8[%c1_34, %c0_35], %51 {strides = array<i32>} : memref<8x256xf32, #tpu.memory_space<vmem>>, vector<1x256xf32>,
      %cst_36 = arith.constant 0.000000e+00 : f32
      %53 = vector.broadcast %cst_36 : f32 to vector<1x256xf32>
      %c2_37 = arith.constant 2 : index
      %c0_38 = arith.constant 0 : index
      %54 = vector.load %arg8[%c2_37, %c0_38] : memref<8x256xf32, #tpu.memory_space<vmem>>, vector<1x256xf32>
      tpu.vector_store %arg8[%c2_37, %c0_38], %53 {strides = array<i32>} : memref<8x256xf32, #tpu.memory_space<vmem>>, vector<1x256xf32>,
      %cst_39 = arith.constant 1.000000e+00 : f32
      %55 = vector.broadcast %cst_39 : f32 to vector<1x256xf32>
      %c3_40 = arith.constant 3 : index
      %c0_41 = arith.constant 0 : index
      %56 = vector.load %arg8[%c3_40, %c0_41] : memref<8x256xf32, #tpu.memory_space<vmem>>, vector<1x256xf32>
      tpu.vector_store %arg8[%c3_40, %c0_41], %55 {strides = array<i32>} : memref<8x256xf32, #tpu.memory_space<vmem>>, vector<1x256xf32>,
      %cst_42 = arith.constant 0.000000e+00 : f32
      %57 = vector.broadcast %cst_42 : f32 to vector<4x256xf32>
      %c4_43 = arith.constant 4 : index
      %c0_44 = arith.constant 0 : index
      %58 = vector.load %arg8[%c4_43, %c0_44] : memref<8x256xf32, #tpu.memory_space<vmem>>, vector<4x256xf32>
      tpu.vector_store %arg8[%c4_43, %c0_44], %57 {strides = array<i32>} : memref<8x256xf32, #tpu.memory_space<vmem>>, vector<4x256xf32>,
    } else {
    }
    %c0_i32_1 = arith.constant 0 : i32
    %12 = arith.cmpi sgt, %arg0, %c0_i32_1 : i32
    %13 = arith.extui %12 : i1 to i32
    %c0_i32_2 = arith.constant 0 : i32
    %14 = arith.cmpi ne, %13, %c0_i32_2 : i32
    scf.if %14 {
      %c0_24 = arith.constant 0 : index
      %c0_25 = arith.constant 0 : index
      %41 = vector.load %arg7[%c0_24, %c0_25] : memref<256x256xf32, #tpu.memory_space<vmem>>, vector<256x256xf32>
      %c0_26 = arith.constant 0 : index
      %c0_27 = arith.constant 0 : index
      %42 = vector.load %arg8[%c0_26, %c0_27] : memref<8x256xf32, #tpu.memory_space<vmem>>, vector<1x256xf32>
      %c1_28 = arith.constant 1 : index
      %c0_29 = arith.constant 0 : index
      %43 = vector.load %arg8[%c1_28, %c0_29] : memref<8x256xf32, #tpu.memory_space<vmem>>, vector<1x256xf32>
      %c2_30 = arith.constant 2 : index
      %c0_31 = arith.constant 0 : index
      %44 = vector.load %arg8[%c2_30, %c0_31] : memref<8x256xf32, #tpu.memory_space<vmem>>, vector<1x256xf32>
      %c0_32 = arith.constant 0 : index
      %c0_33 = arith.constant 0 : index
      %45 = vector.load %arg8[%c0_32, %c0_33] : memref<8x256xf32, #tpu.memory_space<vmem>>, vector<4x256xf32>
      %cst_34 = arith.constant dense<0.000000e+00> : vector<4x256xf32>
      %46 = tpu.matmul %45, %41, %cst_34 {dimension_numbers = #tpu.dot_dimension_numbers<[1], [0], [0], [1], [0, 0, 1, 1], [], []>} : vector<4x256xf32>, vector<256x256xf32>, vector<4x256xf32> -> vector<4x256xf32>
      %47 = vector.extract_strided_slice %46 {offsets = [0, 0], sizes = [1, 256], strides = [1, 1]} : vector<4x256xf32> to vector<1x256xf32>
      %48 = vector.extract_strided_slice %46 {offsets = [3, 0], sizes = [1, 256], strides = [1, 1]} : vector<4x256xf32> to vector<1x256xf32>
      %cst_35 = arith.constant 1.000000e+00 : f32
      %49 = vector.broadcast %cst_35 : f32 to vector<1x256xf32>
      %50 = arith.subf %49, %42 : vector<1x256xf32>
      %51 = arith.mulf %50, %47 : vector<1x256xf32>
      %52 = vector.broadcast %1 : f32 to vector<1x256xf32>
      %53 = arith.mulf %52, %44 : vector<1x256xf32>
      %54 = arith.addf %43, %53 : vector<1x256xf32>
      %55 = arith.mulf %54, %51 : vector<1x256xf32>
      %cst_36 = arith.constant 1.000000e+00 : f32
      %56 = vector.broadcast %cst_36 : f32 to vector<1x256xf32>
      %57 = arith.maximumf %48, %56 : vector<1x256xf32>
      %58 = arith.divf %55, %57 : vector<1x256xf32>
      %59 = vector.broadcast %7 : f32 to vector<1x256xf32>
      %60 = arith.mulf %58, %59 : vector<1x256xf32>
      %cst_37 = arith.constant 0.000000e+00 : f32
      %61 = vector.broadcast %cst_37 : f32 to vector<1x256xf32>
      %62 = arith.subf %61, %60 : vector<1x256xf32>
      %63 = math.exp %62 : vector<1x256xf32>
      %cst_38 = arith.constant 1.000000e+00 : f32
      %64 = vector.broadcast %cst_38 : f32 to vector<1x256xf32>
      %65 = arith.subf %64, %63 : vector<1x256xf32>
      %cst_39 = arith.constant 1.000000e-10 : f32
      %cst_40 = arith.constant 1.000000e+00 : f32
      %66 = vector.broadcast %cst_39 : f32 to vector<1x256xf32>
      %67 = arith.maximumf %66, %65 : vector<1x256xf32>
      %68 = vector.broadcast %cst_40 : f32 to vector<1x256xf32>
      %69 = arith.minimumf %68, %67 : vector<1x256xf32>
      %c0_41 = arith.constant 0 : index
      %c0_42 = arith.constant 0 : index
      %c0_43 = arith.constant 0 : index
      %70 = vector.load %arg3[%c0_41, %c0_42, %c0_43] : memref<1x8x256xf32, #tpu.memory_space<vmem>>, vector<1x1x256xf32>
      %71 = vector.shape_cast %70 : vector<1x1x256xf32> to vector<1x256xf32>
      %72 = arith.cmpf olt, %71, %69 : vector<1x256xf32>
      %73 = arith.extui %72 : vector<1x256xi1> to vector<1x256xi32>
      %74 = arith.sitofp %73 : vector<1x256xi32> to vector<1x256xf32>
      %75 = vector.broadcast %0 : f32 to vector<1x256xf32>
      %76 = arith.mulf %75, %42 : vector<1x256xf32>
      %cst_44 = arith.constant 1.000000e-10 : f32
      %cst_45 = arith.constant 1.000000e+00 : f32
      %77 = vector.broadcast %cst_44 : f32 to vector<1x256xf32>
      %78 = arith.maximumf %77, %76 : vector<1x256xf32>
      %79 = vector.broadcast %cst_45 : f32 to vector<1x256xf32>
      %80 = arith.minimumf %79, %78 : vector<1x256xf32>
      %c0_46 = arith.constant 0 : index
      %c1_47 = arith.constant 1 : index
      %c0_48 = arith.constant 0 : index
      %81 = vector.load %arg3[%c0_46, %c1_47, %c0_48] : memref<1x8x256xf32, #tpu.memory_space<vmem>>, vector<1x1x256xf32>
      %82 = vector.shape_cast %81 : vector<1x1x256xf32> to vector<1x256xf32>
      %83 = arith.cmpf olt, %82, %80 : vector<1x256xf32>
      %84 = arith.extui %83 : vector<1x256xi1> to vector<1x256xi32>
      %85 = arith.sitofp %84 : vector<1x256xi32> to vector<1x256xf32>
      %86 = arith.addf %42, %74 : vector<1x256xf32>
      %87 = arith.subf %86, %85 : vector<1x256xf32>
      %c0_49 = arith.constant 0 : index
      %c0_50 = arith.constant 0 : index
      %88 = vector.load %arg8[%c0_49, %c0_50] : memref<8x256xf32, #tpu.memory_space<vmem>>, vector<1x256xf32>
      tpu.vector_store %arg8[%c0_49, %c0_50], %87 {strides = array<i32>} : memref<8x256xf32, #tpu.memory_space<vmem>>, vector<1x256xf32>,
      %89 = arith.mulf %43, %74 : vector<1x256xf32>
      %90 = arith.subf %43, %89 : vector<1x256xf32>
      %c1_51 = arith.constant 1 : index
      %c0_52 = arith.constant 0 : index
      %91 = vector.load %arg8[%c1_51, %c0_52] : memref<8x256xf32, #tpu.memory_space<vmem>>, vector<1x256xf32>
      tpu.vector_store %arg8[%c1_51, %c0_52], %90 {strides = array<i32>} : memref<8x256xf32, #tpu.memory_space<vmem>>, vector<1x256xf32>,
      %92 = arith.addf %44, %85 : vector<1x256xf32>
      %93 = arith.mulf %44, %74 : vector<1x256xf32>
      %94 = arith.subf %92, %93 : vector<1x256xf32>
      %c2_53 = arith.constant 2 : index
      %c0_54 = arith.constant 0 : index
      %95 = vector.load %arg8[%c2_53, %c0_54] : memref<8x256xf32, #tpu.memory_space<vmem>>, vector<1x256xf32>
      tpu.vector_store %arg8[%c2_53, %c0_54], %94 {strides = array<i32>} : memref<8x256xf32, #tpu.memory_space<vmem>>, vector<1x256xf32>,
      %c4_55 = arith.constant 4 : index
      %c0_56 = arith.constant 0 : index
      %96 = vector.load %arg8[%c4_55, %c0_56] : memref<8x256xf32, #tpu.memory_space<vmem>>, vector<1x256xf32>
      tpu.vector_store %arg8[%c4_55, %c0_56], %48 {strides = array<i32>} : memref<8x256xf32, #tpu.memory_space<vmem>>, vector<1x256xf32>,
    } else {
    }
    %c0_3 = arith.constant 0 : index
    %c0_4 = arith.constant 0 : index
    %15 = vector.load %arg8[%c0_3, %c0_4] : memref<8x256xf32, #tpu.memory_space<vmem>>, vector<1x256xf32>
    %c1_5 = arith.constant 1 : index
    %c0_6 = arith.constant 0 : index
    %16 = vector.load %arg8[%c1_5, %c0_6] : memref<8x256xf32, #tpu.memory_space<vmem>>, vector<1x256xf32>
    %c2_7 = arith.constant 2 : index
    %c0_8 = arith.constant 0 : index
    %17 = vector.load %arg8[%c2_7, %c0_8] : memref<8x256xf32, #tpu.memory_space<vmem>>, vector<1x256xf32>
    %18 = arith.maximumf %16, %17 : vector<1x256xf32>
    %19 = arith.cmpf oge, %15, %18 : vector<1x256xf32>
    %20 = arith.cmpf oge, %16, %17 : vector<1x256xf32>
    %cst = arith.constant 1.000000e+00 : f32
    %cst_9 = arith.constant 2.000000e+00 : f32
    %21 = vector.broadcast %cst : f32 to vector<1x256xf32>
    %22 = vector.broadcast %cst_9 : f32 to vector<1x256xf32>
    %23 = arith.select %20, %21, %22 : vector<1x256xi1>, vector<1x256xf32>
    %cst_10 = arith.constant 0.000000e+00 : f32
    %24 = vector.broadcast %cst_10 : f32 to vector<1x256xf32>
    %25 = arith.select %19, %24, %23 : vector<1x256xi1>, vector<1x256xf32>
    %c5_11 = arith.constant 5 : index
    %c0_12 = arith.constant 0 : index
    %26 = vector.load %arg8[%c5_11, %c0_12] : memref<8x256xf32, #tpu.memory_space<vmem>>, vector<1x256xf32>
    tpu.vector_store %arg8[%c5_11, %c0_12], %25 {strides = array<i32>} : memref<8x256xf32, #tpu.memory_space<vmem>>, vector<1x256xf32>,
    %c0_13 = arith.constant 0 : index
    %c0_14 = arith.constant 0 : index
    %27 = vector.load %arg8[%c0_13, %c0_14] : memref<8x256xf32, #tpu.memory_space<vmem>>, vector<8x256xf32>
    %c0_15 = arith.constant 0 : index
    %c0_16 = arith.constant 0 : index
    %c0_17 = arith.constant 0 : index
    %28 = vector.load %arg5[%c0_15, %c0_16, %c0_17] : memref<1x8x256xf32, #tpu.memory_space<vmem>>, vector<1x8x256xf32>
    %29 = vector.shape_cast %28 : vector<1x8x256xf32> to vector<8x256xf32>
    %30 = vector.shape_cast %27 : vector<8x256xf32> to vector<1x8x256xf32>
    tpu.vector_store %arg5[%c0_15, %c0_16, %c0_17], %30 {strides = array<i32>} : memref<1x8x256xf32, #tpu.memory_space<vmem>>, vector<1x8x256xf32>,
    %c0_18 = arith.constant 0 : index
    %c0_19 = arith.constant 0 : index
    %31 = vector.load %arg7[%c0_18, %c0_19] : memref<256x256xf32, #tpu.memory_space<vmem>>, vector<256x256xf32>
    %32 = arith.truncf %31 : vector<256x256xf32> to vector<256x256xbf16>
    %c0_20 = arith.constant 0 : index
    %c0_21 = arith.constant 0 : index
    %c0_22 = arith.constant 0 : index
    %33 = vector.load %arg6[%c0_20, %c0_21, %c0_22] : memref<1x256x256xbf16, #tpu.memory_space<vmem>>, vector<1x256x256xbf16>
    %34 = vector.shape_cast %33 : vector<1x256x256xbf16> to vector<256x256xbf16>
    %35 = vector.shape_cast %32 : vector<256x256xbf16> to vector<1x256x256xbf16>
    tpu.vector_store %arg6[%c0_20, %c0_21, %c0_22], %35 {strides = array<i32>} : memref<1x256x256xbf16, #tpu.memory_space<vmem>>, vector<1x256x256xbf16>,
    %c1_i32 = arith.constant 1 : i32
    %36 = arith.cmpi sge, %arg0, %c1_i32 : i32
    %c4_i32 = arith.constant 4 : i32
    %37 = arith.cmpi slt, %arg0, %c4_i32 : i32
    %38 = arith.andi %36, %37 : i1
    %39 = arith.extui %38 : i1 to i32
    %c0_i32_23 = arith.constant 0 : i32
    %40 = arith.cmpi ne, %39, %c0_i32_23 : i32
    scf.if %40 {
      %c0_24 = arith.constant 0 : index
      %c0_25 = arith.constant 0 : index
      %41 = vector.load %arg7[%c0_24, %c0_25] : memref<256x256xf32, #tpu.memory_space<vmem>>, vector<256x256xf32>
      %c4_26 = arith.constant 4 : index
      %c0_27 = arith.constant 0 : index
      %42 = vector.load %arg8[%c4_26, %c0_27] : memref<8x256xf32, #tpu.memory_space<vmem>>, vector<1x256xf32>
      %cst_28 = arith.constant dense<0.000000e+00> : vector<1xf32>
      %43 = vector.multi_reduction <add>, %42, %cst_28 [1] : vector<1x256xf32> to vector<1xf32>
      %44 = vector.shape_cast %43 : vector<1xf32> to vector<1x1xf32>
      %cst_29 = arith.constant 3.906250e-03 : f32
      %45 = vector.broadcast %cst_29 : f32 to vector<1x1xf32>
      %46 = arith.mulf %44, %45 : vector<1x1xf32>
      %47 = math.log %46 : vector<1x1xf32>
      %48 = math.absf %47 : vector<1x1xf32>
      %cst_30 = arith.constant 9.99999996E-13 : f32
      %49 = vector.broadcast %cst_30 : f32 to vector<1x1xf32>
      %50 = arith.cmpf olt, %48, %49 : vector<1x1xf32>
      %cst_31 = arith.constant 9.99999996E-13 : f32
      %51 = vector.broadcast %cst_31 : f32 to vector<1x1xf32>
      %52 = arith.select %50, %51, %47 : vector<1x1xi1>, vector<1x1xf32>
      %53 = vector.broadcast %8 : f32 to vector<1x1xf32>
      %54 = arith.divf %53, %52 : vector<1x1xf32>
      %cst_32 = arith.constant 0.000000e+00 : f32
      %55 = arith.subf %cst_32, %3 : f32
      %56 = vector.broadcast %55 : f32 to vector<1x1xf32>
      %57 = arith.mulf %56, %54 : vector<1x1xf32>
      %cst_33 = arith.constant 2.000000e+00 : f32
      %58 = arith.mulf %cst_33, %3 : f32
      %59 = vector.broadcast %58 : f32 to vector<1x1xf32>
      %60 = arith.addf %57, %59 : vector<1x1xf32>
      %cst_34 = arith.constant 1.000000e-10 : f32
      %cst_35 = arith.constant 1.000000e+00 : f32
      %61 = vector.broadcast %cst_34 : f32 to vector<1x1xf32>
      %62 = arith.maximumf %61, %60 : vector<1x1xf32>
      %63 = vector.broadcast %cst_35 : f32 to vector<1x1xf32>
      %64 = arith.minimumf %63, %62 : vector<1x1xf32>
      %cst_36 = arith.constant 0.000000e+00 : f32
      %65 = arith.subf %cst_36, %4 : f32
      %66 = vector.broadcast %65 : f32 to vector<1x1xf32>
      %67 = arith.mulf %66, %54 : vector<1x1xf32>
      %cst_37 = arith.constant 2.000000e+00 : f32
      %68 = arith.mulf %cst_37, %4 : f32
      %69 = vector.broadcast %68 : f32 to vector<1x1xf32>
      %70 = arith.addf %67, %69 : vector<1x1xf32>
      %cst_38 = arith.constant 1.000000e-10 : f32
      %cst_39 = arith.constant 1.000000e+00 : f32
      %71 = vector.broadcast %cst_38 : f32 to vector<1x1xf32>
      %72 = arith.maximumf %71, %70 : vector<1x1xf32>
      %73 = vector.broadcast %cst_39 : f32 to vector<1x1xf32>
      %74 = arith.minimumf %73, %72 : vector<1x1xf32>
      %75 = vector.broadcast %5 : f32 to vector<1x1xf32>
      %76 = arith.mulf %75, %54 : vector<1x1xf32>
      %cst_40 = arith.constant 1.000000e-10 : f32
      %cst_41 = arith.constant 1.000000e+00 : f32
      %77 = vector.broadcast %cst_40 : f32 to vector<1x1xf32>
      %78 = arith.maximumf %77, %76 : vector<1x1xf32>
      %79 = vector.broadcast %cst_41 : f32 to vector<1x1xf32>
      %80 = arith.minimumf %79, %78 : vector<1x1xf32>
      %81 = vector.broadcast %6 : f32 to vector<1x1xf32>
      %82 = arith.mulf %81, %54 : vector<1x1xf32>
      %cst_42 = arith.constant 1.000000e-10 : f32
      %cst_43 = arith.constant 1.000000e+00 : f32
      %83 = vector.broadcast %cst_42 : f32 to vector<1x1xf32>
      %84 = arith.maximumf %83, %82 : vector<1x1xf32>
      %85 = vector.broadcast %cst_43 : f32 to vector<1x1xf32>
      %86 = arith.minimumf %85, %84 : vector<1x1xf32>
      %c5_44 = arith.constant 5 : index
      %c0_45 = arith.constant 0 : index
      %87 = vector.load %arg8[%c5_44, %c0_45] : memref<8x256xf32, #tpu.memory_space<vmem>>, vector<1x256xf32>
      %88 = tpu.transpose %87, [1, 0] : vector<1x256xf32> -> vector<256x1xf32>
      %89 = vector.shape_cast %88 : vector<256x1xf32> to vector<256x1xf32>
      %90 = vector.broadcast %89 : vector<256x1xf32> to vector<256x256xf32>
      %91 = vector.shape_cast %87 : vector<1x256xf32> to vector<1x256xf32>
      %92 = vector.broadcast %91 : vector<1x256xf32> to vector<256x256xf32>
      %93 = arith.cmpf oeq, %90, %92 : vector<256x256xf32>
      %94 = arith.extui %93 : vector<256x256xi1> to vector<256x256xi32>
      %95 = arith.sitofp %94 : vector<256x256xi32> to vector<256x256xf32>
      %96 = arith.mulf %41, %95 : vector<256x256xf32>
      %cst_46 = arith.constant dense<0.000000e+00> : vector<256xf32>
      %97 = vector.multi_reduction <add>, %96, %cst_46 [0] : vector<256x256xf32> to vector<256xf32>
      %98 = vector.shape_cast %97 : vector<256xf32> to vector<1x256xf32>
      %cst_47 = arith.constant dense<0.000000e+00> : vector<1xf32>
      %99 = vector.multi_reduction <add>, %98, %cst_47 [1] : vector<1x256xf32> to vector<1xf32>
      %100 = vector.shape_cast %99 : vector<1xf32> to vector<1x1xf32>
      %101 = arith.subf %44, %100 : vector<1x1xf32>
      %102 = arith.mulf %80, %100 : vector<1x1xf32>
      %cst_48 = arith.constant 1.53186284E-5 : f32
      %103 = vector.broadcast %cst_48 : f32 to vector<1x1xf32>
      %104 = arith.mulf %102, %103 : vector<1x1xf32>
      %cst_49 = arith.constant 0.000000e+00 : f32
      %cst_50 = arith.constant 1.000000e+00 : f32
      %105 = vector.broadcast %cst_49 : f32 to vector<1x1xf32>
      %106 = arith.maximumf %105, %104 : vector<1x1xf32>
      %107 = vector.broadcast %cst_50 : f32 to vector<1x1xf32>
      %108 = arith.minimumf %107, %106 : vector<1x1xf32>
      %109 = arith.mulf %86, %101 : vector<1x1xf32>
      %cst_51 = arith.constant 1.53186284E-5 : f32
      %110 = vector.broadcast %cst_51 : f32 to vector<1x1xf32>
      %111 = arith.mulf %109, %110 : vector<1x1xf32>
      %cst_52 = arith.constant 0.000000e+00 : f32
      %cst_53 = arith.constant 1.000000e+00 : f32
      %112 = vector.broadcast %cst_52 : f32 to vector<1x1xf32>
      %113 = arith.maximumf %112, %111 : vector<1x1xf32>
      %114 = vector.broadcast %cst_53 : f32 to vector<1x1xf32>
      %115 = arith.minimumf %114, %113 : vector<1x1xf32>
      %c0_54 = arith.constant 0 : index
      %c0_55 = arith.constant 0 : index
      %c0_56 = arith.constant 0 : index
      %116 = vector.load %arg4[%c0_54, %c0_55, %c0_56] : memref<1x512x256xf32, #tpu.memory_space<vmem>>, vector<1x256x256xf32>
      %117 = vector.shape_cast %116 : vector<1x256x256xf32> to vector<256x256xf32>
      %c0_57 = arith.constant 0 : index
      %c256 = arith.constant 256 : index
      %c0_58 = arith.constant 0 : index
      %118 = vector.load %arg4[%c0_57, %c256, %c0_58] : memref<1x512x256xf32, #tpu.memory_space<vmem>>, vector<1x256x256xf32>
      %119 = vector.shape_cast %118 : vector<1x256x256xf32> to vector<256x256xf32>
      %120 = vector.shape_cast %64 : vector<1x1xf32> to vector<1x1xf32>
      %121 = vector.broadcast %120 : vector<1x1xf32> to vector<256x256xf32>
      %122 = vector.shape_cast %74 : vector<1x1xf32> to vector<1x1xf32>
      %123 = vector.broadcast %122 : vector<1x1xf32> to vector<256x256xf32>
      %124 = arith.select %93, %121, %123 : vector<256x256xi1>, vector<256x256xf32>
      %125 = arith.cmpf oge, %117, %124 : vector<256x256xf32>
      %126 = arith.extui %125 : vector<256x256xi1> to vector<256x256xi32>
      %127 = arith.sitofp %126 : vector<256x256xi32> to vector<256x256xf32>
      %128 = vector.shape_cast %108 : vector<1x1xf32> to vector<1x1xf32>
      %129 = vector.broadcast %128 : vector<1x1xf32> to vector<256x256xf32>
      %130 = vector.shape_cast %115 : vector<1x1xf32> to vector<1x1xf32>
      %131 = vector.broadcast %130 : vector<1x1xf32> to vector<256x256xf32>
      %132 = arith.select %93, %129, %131 : vector<256x256xi1>, vector<256x256xf32>
      %133 = arith.cmpf olt, %119, %132 : vector<256x256xf32>
      %134 = arith.extui %133 : vector<256x256xi1> to vector<256x256xi32>
      %135 = arith.sitofp %134 : vector<256x256xi32> to vector<256x256xf32>
      %136 = tpu.iota {dimensions = array<i32: 0>} : vector<256x256xi32>
      %137 = tpu.iota {dimensions = array<i32: 1>} : vector<256x256xi32>
      %138 = arith.cmpi slt, %136, %137 : vector<256x256xi32>
      %139 = arith.extui %138 : vector<256x256xi1> to vector<256x256xi32>
      %140 = arith.sitofp %139 : vector<256x256xi32> to vector<256x256xf32>
      %141 = arith.mulf %41, %127 : vector<256x256xf32>
      %142 = arith.addf %141, %135 : vector<256x256xf32>
      %cst_59 = arith.constant 0.000000e+00 : f32
      %cst_60 = arith.constant 1.000000e+00 : f32
      %143 = vector.broadcast %cst_59 : f32 to vector<256x256xf32>
      %144 = arith.maximumf %143, %142 : vector<256x256xf32>
      %145 = vector.broadcast %cst_60 : f32 to vector<256x256xf32>
      %146 = arith.minimumf %145, %144 : vector<256x256xf32>
      %147 = arith.mulf %146, %140 : vector<256x256xf32>
      %148 = tpu.transpose %147, [1, 0] : vector<256x256xf32> -> vector<256x256xf32>
      %149 = arith.addf %147, %148 : vector<256x256xf32>
      %c0_61 = arith.constant 0 : index
      %c0_62 = arith.constant 0 : index
      %150 = vector.load %arg7[%c0_61, %c0_62] : memref<256x256xf32, #tpu.memory_space<vmem>>, vector<256x256xf32>
      tpu.vector_store %arg7[%c0_61, %c0_62], %149 {strides = array<i32>} : memref<256x256xf32, #tpu.memory_space<vmem>>, vector<256x256xf32>,
    } else {
    }
    return
  }
  func.func @transform_0(%arg0: i32, %arg1: memref<9xf32, #tpu.memory_space<smem>>) -> (i32, i32) {
    %c0_i32 = arith.constant 0 : i32
    %c0_i32_0 = arith.constant 0 : i32
    %c0_i32_1 = arith.constant 0 : i32
    return %c0_i32, %c0_i32_0 : i32, i32
  }
  func.func @transform_1(%arg0: i32, %arg1: memref<9xf32, #tpu.memory_space<smem>>) -> (i32, i32, i32) {
    %c0_i32 = arith.constant 0 : i32
    %c0_i32_0 = arith.constant 0 : i32
    %c0_i32_1 = arith.constant 0 : i32
    return %arg0, %c0_i32, %c0_i32_0 : i32, i32, i32
  }
  func.func @transform_2(%arg0: i32, %arg1: memref<9xf32, #tpu.memory_space<smem>>) -> (i32, i32, i32) {
    %c0_i32 = arith.constant 0 : i32
    %c0_i32_0 = arith.constant 0 : i32
    %c0_i32_1 = arith.constant 0 : i32
    return %arg0, %c0_i32, %c0_i32_0 : i32, i32, i32
  }
  func.func @transform_3(%arg0: i32, %arg1: memref<9xf32, #tpu.memory_space<smem>>) -> (i32, i32, i32) {
    %c0_i32 = arith.constant 0 : i32
    %c0_i32_0 = arith.constant 0 : i32
    %c0_i32_1 = arith.constant 0 : i32
    return %arg0, %c0_i32, %c0_i32_0 : i32, i32, i32
  }
  func.func @transform_4(%arg0: i32, %arg1: memref<9xf32, #tpu.memory_space<smem>>) -> (i32, i32, i32) {
    %c0_i32 = arith.constant 0 : i32
    %c0_i32_0 = arith.constant 0 : i32
    %c0_i32_1 = arith.constant 0 : i32
    return %arg0, %c0_i32, %c0_i32_0 : i32, i32, i32
  }
}

</mosaic_0001>

<llo_original>
// kernel: sir_forward.3
$region0: #{sir_forward.3}
  #allocation0 [shape = 'u32[]', space=smem, size = 0x4, offset = 0x4, fixed_abs, tag = 'smem constant byte address 0x4 - core index']
  #allocation1 [shape = 'u32[144,128]{1,0:T(1,128)}', space=vmem, size = 0x12000, scoped, tag = 'internal scratch']
  #allocation2 [shape = 'f32[256,256]{1,0:T(8,128)}', space=vmem, size = 0x40000, scoped, tag = 'scratch operand']
  #allocation3 [shape = 'f32[8,256]{1,0:T(8,128)}', space=vmem, size = 0x2000, scoped, tag = 'scratch operand']
  #allocation4 [shape = 's32[1]{0}', space=sflag, size = 0x4, scoped, tag = 'scoped memory for sir_forward.3']
  #allocation5 [shape = 'u8[512]{0}', space=smem, size = 0x200, scoped, tag = 'prefetched SMEM operand 0']
  %s0 = inlined_call_operand.vmem [shape: f32[9], index: 0, kind: input, shape index: {}]
  %s1 = inlined_call_operand.vmem [shape: f32[256,256], index: 1, kind: input, shape index: {}]
  %s2 = inlined_call_operand.vmem [shape: f32[5,8,256], index: 2, kind: input, shape index: {}]
  %s3 = inlined_call_operand.vmem [shape: f32[5,512,256], index: 3, kind: input, shape index: {}]
  %s4 = inlined_call_operand.vmem [shape: f32[5,8,256], index: 4, kind: output, shape index: {0}]
  %s5 = inlined_call_operand.hbm [shape: bf16[5,256,256], index: 5, kind: output, shape index: {1}]
  %6 = xla_tuple %s4, %s5
  %s7 = sld [smem:[#allocation0]]
  $region65: #{sir_forward.3} parent=0
    _
  %s9 = ssub.s32 1, %s7
  %s10 = scalar_select 0, %s9, %s7
  %s11 = sshll.u32 %s0, 4
  %s12 = int_to_ptr.vmem [resolvable:$true] %s11
  %14 = dma.vmem_to_smem %s12, 16, [#allocation5], [#allocation4]
  %15 = dma.done [#allocation4], 16
  %16 = sfence
  $region1: #{sir_forward.3} parent=0
    #allocation6 [shape = 'u8[262144]{0}', space=vmem, size = 0x40000, scoped, tag = 'output window, operand 1']
    #allocation7 [shape = 's32[2]{0}', space=sflag, size = 0x8, scoped, tag = 'scoped memory for sir_forward.3']
    %17 = vsyncpa [#allocation7], 0
    %s18 = scalar_lea.sflag [#allocation7], 1
    %19 = vsyncpa %s18, 0
    loop: start=0, step=1, limit=7
    $region2: #{sir_forward.3} parent=1 // loop_pre_header
      _
    $region3: #{sir_forward.3} parent=1 // loop_header
      %s21 = sphi 0, %s25
      %p22 = scmp.ge.s32.totalorder %s21, 7
      %s29 = sphi 0, %s29
      %s31 = sphi 0, %s29
      %s32 = sphi 0, %s31
      %s46 = sphi 0, %s32
      %s52 = sphi 0, %s54
      %s55 = sphi 0, %s52
      %s56 = sphi 0, %s55
      %s72 = sphi 0, %s56
      %s78 = sphi 0, %s80
      %s81 = sphi 0, %s78
      %s82 = sphi 0, %s81
      %s98 = sphi 0, %s82
      %s104 = sphi 0, %s106
      %s107 = sphi 0, %s104
      %s108 = sphi 0, %s107
      %s124 = sphi 0, %s108
      %s130 = sphi 0, %s132
      %s133 = sphi 0, %s130
      %s134 = sphi 0, %s133
      %s150 = sphi 0, %s134
    $region4: #{sir_forward.3} parent=1 // loop_header_branch
      %24 = sbr.rel (%p22) target = $region8
    $region5: #{sir_forward.3} parent=1 // loop_body
      %s26 = ssub.s32 %s21, 1
      %s27 = ssub.s32 %s21, 2
      %s28 = sadd.s32 %s21, 1
      %s30 = sadd.s32 %s29, 1
      %p33 = scmp.eq.s32.totalorder %s21, 4
      %p34 = scmp.ne.s32.totalorder %s29, %s31
      %p35 = scmp.eq.s32.totalorder %s21, 0
      %p36 = por %p34, %p35
      %p37 = scmp.ne.s32.totalorder %s29, %s31
      %p38 = scmp.eq.s32.totalorder %s26, 4
      %p39 = por %p37, %p38
      %p40 = scmp.ne.s32.totalorder %s31, %s32
      %p41 = scmp.eq.s32.totalorder %s26, 0
      %p42 = por %p40, %p41
      %p43 = scmp.ne.s32.totalorder %s31, %s32
      %p44 = scmp.eq.s32.totalorder %s27, 4
      %p45 = por %p43, %p44
      %p47 = scmp.ne.s32.totalorder %s32, %s46
      %p48 = scmp.eq.s32.totalorder %s27, 0
      %p49 = por %p47, %p48
      %s50 = ssub.s32 %s21, %s28
      %p51 = scmp.eq.s32.totalorder %s50, 0
      %s53 = sadd.s32 %s52, 1
      %s54 = scalar_select %p51, %s52, %s53
      %p57 = pneg %p51
      %p58 = scmp.eq.s32.totalorder %s21, 4
      %p59 = por %p57, %p58
      %p60 = scmp.ne.s32.totalorder %s52, %s55
      %p61 = scmp.eq.s32.totalorder %s21, 0
      %p62 = por %p60, %p61
      %p63 = scmp.ne.s32.totalorder %s52, %s55
      %p64 = scmp.eq.s32.totalorder %s26, 4
      %p65 = por %p63, %p64
      %p66 = scmp.ne.s32.totalorder %s55, %s56
      %p67 = scmp.eq.s32.totalorder %s26, 0
      %p68 = por %p66, %p67
      %p69 = scmp.ne.s32.totalorder %s55, %s56
      %p70 = scmp.eq.s32.totalorder %s27, 4
      %p71 = por %p69, %p70
      %p73 = scmp.ne.s32.totalorder %s56, %s72
      %p74 = scmp.eq.s32.totalorder %s27, 0
      %p75 = por %p73, %p74
      %s76 = ssub.s32 %s21, %s28
      %p77 = scmp.eq.s32.totalorder %s76, 0
      %s79 = sadd.s32 %s78, 1
      %s80 = scalar_select %p77, %s78, %s79
      %p83 = pneg %p77
      %p84 = scmp.eq.s32.totalorder %s21, 4
      %p85 = por %p83, %p84
      %p86 = scmp.ne.s32.totalorder %s78, %s81
      %p87 = scmp.eq.s32.totalorder %s21, 0
      %p88 = por %p86, %p87
      %p89 = scmp.ne.s32.totalorder %s78, %s81
      %p90 = scmp.eq.s32.totalorder %s26, 4
      %p91 = por %p89, %p90
      %p92 = scmp.ne.s32.totalorder %s81, %s82
      %p93 = scmp.eq.s32.totalorder %s26, 0
      %p94 = por %p92, %p93
      %p95 = scmp.ne.s32.totalorder %s81, %s82
      %p96 = scmp.eq.s32.totalorder %s27, 4
      %p97 = por %p95, %p96
      %p99 = scmp.ne.s32.totalorder %s82, %s98
      %p100 = scmp.eq.s32.totalorder %s27, 0
      %p101 = por %p99, %p100
      %s102 = ssub.s32 %s21, %s28
      %p103 = scmp.eq.s32.totalorder %s102, 0
      %s105 = sadd.s32 %s104, 1
      %s106 = scalar_select %p103, %s104, %s105
      %p109 = pneg %p103
      %p110 = scmp.eq.s32.totalorder %s21, 4
      %p111 = por %p109, %p110
      %p112 = scmp.ne.s32.totalorder %s104, %s107
      %p113 = scmp.eq.s32.totalorder %s21, 0
      %p114 = por %p112, %p113
      %p115 = scmp.ne.s32.totalorder %s104, %s107
      %p116 = scmp.eq.s32.totalorder %s26, 4
      %p117 = por %p115, %p116
      %p118 = scmp.ne.s32.totalorder %s107, %s108
      %p119 = scmp.eq.s32.totalorder %s26, 0
      %p120 = por %p118, %p119
      %p121 = scmp.ne.s32.totalorder %s107, %s108
      %p122 = scmp.eq.s32.totalorder %s27, 4
      %p123 = por %p121, %p122
      %p125 = scmp.ne.s32.totalorder %s108, %s124
      %p126 = scmp.eq.s32.totalorder %s27, 0
      %p127 = por %p125, %p126
      %s128 = ssub.s32 %s21, %s28
      %p129 = scmp.eq.s32.totalorder %s128, 0
      %s131 = sadd.s32 %s130, 1
      %s132 = scalar_select %p129, %s130, %s131
      %p135 = pneg %p129
      %p136 = scmp.eq.s32.totalorder %s21, 4
      %p137 = por %p135, %p136
      %p138 = scmp.ne.s32.totalorder %s130, %s133
      %p139 = scmp.eq.s32.totalorder %s21, 0
      %p140 = por %p138, %p139
      %p141 = scmp.ne.s32.totalorder %s130, %s133
      %p142 = scmp.eq.s32.totalorder %s26, 4
      %p143 = por %p141, %p142
      %p144 = scmp.ne.s32.totalorder %s133, %s134
      %p145 = scmp.eq.s32.totalorder %s26, 0
      %p146 = por %p144, %p145
      %p147 = scmp.ne.s32.totalorder %s133, %s134
      %p148 = scmp.eq.s32.totalorder %s27, 4
      %p149 = por %p147, %p148
      %p151 = scmp.ne.s32.totalorder %s134, %s150
      %p152 = scmp.eq.s32.totalorder %s27, 0
      %p153 = por %p151, %p152
      %p154 = scmp.le.s32.totalorder 1, %s21
      %p155 = scmp.lt.s32.totalorder %s21, 6
      %p156 = pnand %p154, %p155
      %p157 = pneg %p156
      // Predicated region
      $region9: #{sir_forward.3} parent=5 // pred_check
        _
      $region10: #{sir_forward.3} parent=5 // pred_check_branch
        %159 = sbr.rel (%p156) target = $region12
      $region11: #{sir_forward.3} parent=5 // pred_region
        %s160 = ssub.s32 %s21, 1
        // Predicated region
        $region13: #{sir_forward.3} parent=11 // pred_check
          %p161 = pneg %p42
        $region14: #{sir_forward.3} parent=11 // pred_check_branch
          %163 = sbr.rel (%p161) target = $region16
        $region15: #{sir_forward.3} parent=11 // pred_region
          _
        $region16: #{sir_forward.3} parent=11 // pred_fallthru
          _
      $region12: #{sir_forward.3} parent=5 // pred_fallthru
        _
      %p164 = scmp.lt.s32.totalorder %s21, 5
      // Predicated region
      $region17: #{sir_forward.3} parent=5 // pred_check
        %p165 = pneg %p164
      $region18: #{sir_forward.3} parent=5 // pred_check_branch
        %167 = sbr.rel (%p165) target = $region20
      $region19: #{sir_forward.3} parent=5 // pred_region
        // Predicated region
        $region21: #{sir_forward.3} parent=19 // pred_check
          %p168 = pneg %p62
        $region22: #{sir_forward.3} parent=19 // pred_check_branch
          %170 = sbr.rel (%p168) target = $region24
        $region23: #{sir_forward.3} parent=19 // pred_region
          %p171 = scmp.lt.s32.totalorder %s21, 4
          %s172 = scalar_select %p171, %s21, 4
          %s173 = smul.addr %s172, 2
          %s174 = smul.addr %s173, 8
          %s175 = scalar_lea.vmem %s2, %s174
        $region24: #{sir_forward.3} parent=19 // pred_fallthru
          _
        // Predicated region
        $region25: #{sir_forward.3} parent=19 // pred_check
          %p176 = pneg %p88
        $region26: #{sir_forward.3} parent=19 // pred_check_branch
          %178 = sbr.rel (%p176) target = $region28
        $region27: #{sir_forward.3} parent=19 // pred_region
          %p179 = scmp.lt.s32.totalorder %s21, 4
          %s180 = scalar_select %p179, %s21, 4
          %s181 = smul.addr %s180, 128
          %s182 = smul.addr %s181, 8
          %s183 = scalar_lea.vmem %s3, %s182
        $region28: #{sir_forward.3} parent=19 // pred_fallthru
          _
      $region20: #{sir_forward.3} parent=5 // pred_fallthru
        _
      %p184 = scmp.le.s32.totalorder 1, %s21
      %p185 = scmp.lt.s32.totalorder %s21, 6
      %p186 = pnand %p184, %p185
      %p187 = pneg %p186
      // Predicated region
      $region29: #{sir_forward.3} parent=5 // pred_check
        _
      $region30: #{sir_forward.3} parent=5 // pred_check_branch
        %189 = sbr.rel (%p186) target = $region32
      $region31: #{sir_forward.3} parent=5 // pred_region
        %s190 = ssub.s32 %s21, 1
        %p191 = pneg %p42
        %p192 = pneg %p39
        %p193 = scmp.lt.s32.totalorder %s26, 4
        %s194 = scalar_select %p193, %s26, 4
        %s195 = smul.addr %s194, 2
        %s196 = smul.addr %s195, 8
        %s197 = scalar_lea.vmem %s2, %s196
        %p198 = pneg %p68
        %p199 = pneg %p65
        %p200 = scmp.lt.s32.totalorder %s26, 4
        %s201 = scalar_select %p200, %s26, 4
        %s202 = smul.addr %s201, 128
        %s203 = smul.addr %s202, 8
        %s204 = scalar_lea.vmem %s3, %s203
        %p205 = pneg %p94
        %p206 = pneg %p91
        %p207 = pneg %p120
        %p208 = pneg %p117
        %p209 = scmp.lt.s32.totalorder %s26, 4
        %s210 = scalar_select %p209, %s26, 4
        %s211 = smul.addr %s210, 2
        %s212 = smul.addr %s211, 8
        %s213 = scalar_lea.vmem %s4, %s212
        %p214 = pneg %p146
        %p215 = pneg %p143
        %s216 = sand.u32 %s133, 1
        %s217 = scalar_lea.sflag [#allocation7], %s216
        %s218 = sand.u32 %s133, 1
        %s219 = smul.addr %s218, 256
        %s220 = scalar_lea.vmem [#allocation6], %s219
        %p221 = scmp.lt.s32.totalorder %s26, 4
        %s222 = scalar_select %p221, %s26, 4
        %s223 = smul.addr %s222, 2
        %s224 = smul.addr %s223, 8
        %s225 = scalar_lea.vmem %s2, %s224
        %p226 = scmp.lt.s32.totalorder %s26, 4
        %s227 = scalar_select %p226, %s26, 4
        %s228 = smul.addr %s227, 128
        %s229 = smul.addr %s228, 8
        %s230 = scalar_lea.vmem %s3, %s229
        %p231 = scmp.lt.s32.totalorder %s26, 4
        %s232 = scalar_select %p231, %s26, 4
        %s233 = smul.addr %s232, 2
        %s234 = smul.addr %s233, 8
        %s235 = scalar_lea.vmem %s4, %s234
        %s236 = sld [smem:[#allocation5]]
        %s237 = sld [smem:[#allocation5 + $0x1]]
        %s238 = sld [smem:[#allocation5 + $0x2]]
        %s239 = sld [smem:[#allocation5 + $0x3]]
        %s240 = sld [smem:[#allocation5 + $0x4]]
        %s241 = sld [smem:[#allocation5 + $0x5]]
        %s242 = sld [smem:[#allocation5 + $0x6]]
        %s243 = sld [smem:[#allocation5 + $0x7]]
        %s244 = sld [smem:[#allocation5 + $0x8]]
        %p245 = scmp.eq.s32.totalorder %s26, 0
        // Predicated region
        $region33: #{sir_forward.3} parent=31 // pred_check
          %p246 = pneg %p245
        $region34: #{sir_forward.3} parent=31 // pred_check_branch
          %248 = sbr.rel (%p246) target = $region36
        $region35: #{sir_forward.3} parent=31 // pred_region
          %v249 = vld [vmem:[%s1] sm:$0xff]
          %v250 = vld [vmem:[%s1 + $0x8] sm:$0xff]
          %v251 = vld [vmem:[%s1 + $0x10] sm:$0xff]
          %v252 = vld [vmem:[%s1 + $0x18] sm:$0xff]
          %v253 = vld [vmem:[%s1 + $0x20] sm:$0xff]
          %v254 = vld [vmem:[%s1 + $0x28] sm:$0xff]
          %v255 = vld [vmem:[%s1 + $0x30] sm:$0xff]
          %v256 = vld [vmem:[%s1 + $0x38] sm:$0xff]
          %v257 = vld [vmem:[%s1 + $0x40] sm:$0xff]
          %v258 = vld [vmem:[%s1 + $0x48] sm:$0xff]
          %v259 = vld [vmem:[%s1 + $0x50] sm:$0xff]
          %v260 = vld [vmem:[%s1 + $0x58] sm:$0xff]
          %v261 = vld [vmem:[%s1 + $0x60] sm:$0xff]
          %v262 = vld [vmem:[%s1 + $0x68] sm:$0xff]
          %v263 = vld [vmem:[%s1 + $0x70] sm:$0xff]
          %v264 = vld [vmem:[%s1 + $0x78] sm:$0xff]
          %v265 = vld [vmem:[%s1 + $0x80] sm:$0xff]
          %v266 = vld [vmem:[%s1 + $0x88] sm:$0xff]
          %v267 = vld [vmem:[%s1 + $0x90] sm:$0xff]
          %v268 = vld [vmem:[%s1 + $0x98] sm:$0xff]
          %v269 = vld [vmem:[%s1 + $0xa0] sm:$0xff]
          %v270 = vld [vmem:[%s1 + $0xa8] sm:$0xff]
          %v271 = vld [vmem:[%s1 + $0xb0] sm:$0xff]
          %v272 = vld [vmem:[%s1 + $0xb8] sm:$0xff]
          %v273 = vld [vmem:[%s1 + $0xc0] sm:$0xff]
          %v274 = vld [vmem:[%s1 + $0xc8] sm:$0xff]
          %v275 = vld [vmem:[%s1 + $0xd0] sm:$0xff]
          %v276 = vld [vmem:[%s1 + $0xd8] sm:$0xff]
          %v277 = vld [vmem:[%s1 + $0xe0] sm:$0xff]
          %v278 = vld [vmem:[%s1 + $0xe8] sm:$0xff]
          %v279 = vld [vmem:[%s1 + $0xf0] sm:$0xff]
          %v280 = vld [vmem:[%s1 + $0xf8] sm:$0xff]
          %v281 = vld [vmem:[%s1 + $0x100] sm:$0xff]
          %v282 = vld [vmem:[%s1 + $0x108] sm:$0xff]
          %v283 = vld [vmem:[%s1 + $0x110] sm:$0xff]
          %v284 = vld [vmem:[%s1 + $0x118] sm:$0xff]
          %v285 = vld [vmem:[%s1 + $0x120] sm:$0xff]
          %v286 = vld [vmem:[%s1 + $0x128] sm:$0xff]
          %v287 = vld [vmem:[%s1 + $0x130] sm:$0xff]
          %v288 = vld [vmem:[%s1 + $0x138] sm:$0xff]
          %v289 = vld [vmem:[%s1 + $0x140] sm:$0xff]
          %v290 = vld [vmem:[%s1 + $0x148] sm:$0xff]
          %v291 = vld [vmem:[%s1 + $0x150] sm:$0xff]
          %v292 = vld [vmem:[%s1 + $0x158] sm:$0xff]
          %v293 = vld [vmem:[%s1 + $0x160] sm:$0xff]
          %v294 = vld [vmem:[%s1 + $0x168] sm:$0xff]
          %v295 = vld [vmem:[%s1 + $0x170] sm:$0xff]
          %v296 = vld [vmem:[%s1 + $0x178] sm:$0xff]
          %v297 = vld [vmem:[%s1 + $0x180] sm:$0xff]
          %v298 = vld [vmem:[%s1 + $0x188] sm:$0xff]
          %v299 = vld [vmem:[%s1 + $0x190] sm:$0xff]
          %v300 = vld [vmem:[%s1 + $0x198] sm:$0xff]
          %v301 = vld [vmem:[%s1 + $0x1a0] sm:$0xff]
          %v302 = vld [vmem:[%s1 + $0x1a8] sm:$0xff]
          %v303 = vld [vmem:[%s1 + $0x1b0] sm:$0xff]
          %v304 = vld [vmem:[%s1 + $0x1b8] sm:$0xff]
          %v305 = vld [vmem:[%s1 + $0x1c0] sm:$0xff]
          %v306 = vld [vmem:[%s1 + $0x1c8] sm:$0xff]
          %v307 = vld [vmem:[%s1 + $0x1d0] sm:$0xff]
          %v308 = vld [vmem:[%s1 + $0x1d8] sm:$0xff]
          %v309 = vld [vmem:[%s1 + $0x1e0] sm:$0xff]
          %v310 = vld [vmem:[%s1 + $0x1e8] sm:$0xff]
          %v311 = vld [vmem:[%s1 + $0x1f0] sm:$0xff]
          %v312 = vld [vmem:[%s1 + $0x1f8] sm:$0xff]
          %313 = vst [vmem:[#allocation2] sm:$0xff] %v249
          %314 = vst [vmem:[#allocation2 + $0x8] sm:$0xff] %v250
          %315 = vst [vmem:[#allocation2 + $0x10] sm:$0xff] %v251
          %316 = vst [vmem:[#allocation2 + $0x18] sm:$0xff] %v252
          %317 = vst [vmem:[#allocation2 + $0x20] sm:$0xff] %v253
          %318 = vst [vmem:[#allocation2 + $0x28] sm:$0xff] %v254
          %319 = vst [vmem:[#allocation2 + $0x30] sm:$0xff] %v255
          %320 = vst [vmem:[#allocation2 + $0x38] sm:$0xff] %v256
          %321 = vst [vmem:[#allocation2 + $0x40] sm:$0xff] %v257
          %322 = vst [vmem:[#allocation2 + $0x48] sm:$0xff] %v258
          %323 = vst [vmem:[#allocation2 + $0x50] sm:$0xff] %v259
          %324 = vst [vmem:[#allocation2 + $0x58] sm:$0xff] %v260
          %325 = vst [vmem:[#allocation2 + $0x60] sm:$0xff] %v261
          %326 = vst [vmem:[#allocation2 + $0x68] sm:$0xff] %v262
          %327 = vst [vmem:[#allocation2 + $0x70] sm:$0xff] %v263
          %328 = vst [vmem:[#allocation2 + $0x78] sm:$0xff] %v264
          %329 = vst [vmem:[#allocation2 + $0x80] sm:$0xff] %v265
          %330 = vst [vmem:[#allocation2 + $0x88] sm:$0xff] %v266
          %331 = vst [vmem:[#allocation2 + $0x90] sm:$0xff] %v267
          %332 = vst [vmem:[#allocation2 + $0x98] sm:$0xff] %v268
          %333 = vst [vmem:[#allocation2 + $0xa0] sm:$0xff] %v269
          %334 = vst [vmem:[#allocation2 + $0xa8] sm:$0xff] %v270
          %335 = vst [vmem:[#allocation2 + $0xb0] sm:$0xff] %v271
          %336 = vst [vmem:[#allocation2 + $0xb8] sm:$0xff] %v272
          %337 = vst [vmem:[#allocation2 + $0xc0] sm:$0xff] %v273
          %338 = vst [vmem:[#allocation2 + $0xc8] sm:$0xff] %v274
          %339 = vst [vmem:[#allocation2 + $0xd0] sm:$0xff] %v275
          %340 = vst [vmem:[#allocation2 + $0xd8] sm:$0xff] %v276
          %341 = vst [vmem:[#allocation2 + $0xe0] sm:$0xff] %v277
          %342 = vst [vmem:[#allocation2 + $0xe8] sm:$0xff] %v278
          %343 = vst [vmem:[#allocation2 + $0xf0] sm:$0xff] %v279
          %344 = vst [vmem:[#allocation2 + $0xf8] sm:$0xff] %v280
          %345 = vst [vmem:[#allocation2 + $0x100] sm:$0xff] %v281
          %346 = vst [vmem:[#allocation2 + $0x108] sm:$0xff] %v282
          %347 = vst [vmem:[#allocation2 + $0x110] sm:$0xff] %v283
          %348 = vst [vmem:[#allocation2 + $0x118] sm:$0xff] %v284
          %349 = vst [vmem:[#allocation2 + $0x120] sm:$0xff] %v285
          %350 = vst [vmem:[#allocation2 + $0x128] sm:$0xff] %v286
          %351 = vst [vmem:[#allocation2 + $0x130] sm:$0xff] %v287
          %352 = vst [vmem:[#allocation2 + $0x138] sm:$0xff] %v288
          %353 = vst [vmem:[#allocation2 + $0x140] sm:$0xff] %v289
          %354 = vst [vmem:[#allocation2 + $0x148] sm:$0xff] %v290
          %355 = vst [vmem:[#allocation2 + $0x150] sm:$0xff] %v291
          %356 = vst [vmem:[#allocation2 + $0x158] sm:$0xff] %v292
          %357 = vst [vmem:[#allocation2 + $0x160] sm:$0xff] %v293
          %358 = vst [vmem:[#allocation2 + $0x168] sm:$0xff] %v294
          %359 = vst [vmem:[#allocation2 + $0x170] sm:$0xff] %v295
          %360 = vst [vmem:[#allocation2 + $0x178] sm:$0xff] %v296
          %361 = vst [vmem:[#allocation2 + $0x180] sm:$0xff] %v297
          %362 = vst [vmem:[#allocation2 + $0x188] sm:$0xff] %v298
          %363 = vst [vmem:[#allocation2 + $0x190] sm:$0xff] %v299
          %364 = vst [vmem:[#allocation2 + $0x198] sm:$0xff] %v300
          %365 = vst [vmem:[#allocation2 + $0x1a0] sm:$0xff] %v301
          %366 = vst [vmem:[#allocation2 + $0x1a8] sm:$0xff] %v302
          %367 = vst [vmem:[#allocation2 + $0x1b0] sm:$0xff] %v303
          %368 = vst [vmem:[#allocation2 + $0x1b8] sm:$0xff] %v304
          %369 = vst [vmem:[#allocation2 + $0x1c0] sm:$0xff] %v305
          %370 = vst [vmem:[#allocation2 + $0x1c8] sm:$0xff] %v306
          %371 = vst [vmem:[#allocation2 + $0x1d0] sm:$0xff] %v307
          %372 = vst [vmem:[#allocation2 + $0x1d8] sm:$0xff] %v308
          %373 = vst [vmem:[#allocation2 + $0x1e0] sm:$0xff] %v309
          %374 = vst [vmem:[#allocation2 + $0x1e8] sm:$0xff] %v310
          %375 = vst [vmem:[#allocation2 + $0x1f0] sm:$0xff] %v311
          %376 = vst [vmem:[#allocation2 + $0x1f8] sm:$0xff] %v312
          %v377 = vld [vmem:[%s225] ss:$8 sm:$0x3]
          %v378 = vstv %s238
          %vm379 = vcmp.lt.f32.partialorder %v377, %v378
          %v380 = vsel %vm379, 1, 0
          %v381 = vcvt.s32.f32 %v380
          %v382 = vlaneseq
          %vm383 = vcmp.ge.s32.totalorder %v382, 0
          %vm384 = vcmp.lt.s32.totalorder %v382, 256
          %vm385 = vmand %vm383, %vm384
          %386 = vst.msk [vmem:[#allocation3] ss:$8 sm:$0x3] %vm385, %v381
          %387 = vst.msk [vmem:[#allocation3] ss:$8 sm:$0x0] %vm385, %v381
          %v388 = vsub.f32 1.0, %v381
          %s389 = scalar_lea.vmem [#allocation3], 1
          %390 = vst.msk [vmem:[%s389] ss:$8 sm:$0x3] %vm385, %v388
          %391 = vst.msk [vmem:[%s389] ss:$8 sm:$0x0] %vm385, %v388
          %s392 = scalar_lea.vmem [#allocation3], 2
          %393 = vst.msk [vmem:[%s392] ss:$8 sm:$0x3] %vm385, 0.0
          %394 = vst.msk [vmem:[%s392] ss:$8 sm:$0x0] %vm385, 0.0
          %s395 = scalar_lea.vmem [#allocation3], 3
          %396 = vst.msk [vmem:[%s395] ss:$8 sm:$0x3] %vm385, 1.0
          %397 = vst.msk [vmem:[%s395] ss:$8 sm:$0x0] %vm385, 1.0
          %398 = vst [vmem:[#allocation3] sm:$0xf0] 0.0
          %399 = vst [vmem:[#allocation3 + $0x8] sm:$0xf0] 0.0
        $region36: #{sir_forward.3} parent=31 // pred_fallthru
          _
        %p400 = scmp.gt.s32.totalorder %s26, 0
        // Predicated region
        $region37: #{sir_forward.3} parent=31 // pred_check
          %p401 = pneg %p400
        $region38: #{sir_forward.3} parent=31 // pred_check_branch
          %403 = sbr.rel (%p401) target = $region40
        $region39: #{sir_forward.3} parent=31 // pred_region
          %v404 = vld [vmem:[#allocation2] sm:$0xff]
          %v405 = vld [vmem:[#allocation2 + $0x8] sm:$0xff]
          %v406 = vld [vmem:[#allocation2 + $0x10] sm:$0xff]
          %v407 = vld [vmem:[#allocation2 + $0x18] sm:$0xff]
          %v408 = vld [vmem:[#allocation2 + $0x20] sm:$0xff]
          %v409 = vld [vmem:[#allocation2 + $0x28] sm:$0xff]
          %v410 = vld [vmem:[#allocation2 + $0x30] sm:$0xff]
          %v411 = vld [vmem:[#allocation2 + $0x38] sm:$0xff]
          %v412 = vld [vmem:[#allocation2 + $0x40] sm:$0xff]
          %v413 = vld [vmem:[#allocation2 + $0x48] sm:$0xff]
          %v414 = vld [vmem:[#allocation2 + $0x50] sm:$0xff]
          %v415 = vld [vmem:[#allocation2 + $0x58] sm:$0xff]
          %v416 = vld [vmem:[#allocation2 + $0x60] sm:$0xff]
          %v417 = vld [vmem:[#allocation2 + $0x68] sm:$0xff]
          %v418 = vld [vmem:[#allocation2 + $0x70] sm:$0xff]
          %v419 = vld [vmem:[#allocation2 + $0x78] sm:$0xff]
          %v420 = vld [vmem:[#allocation2 + $0x80] sm:$0xff]
          %v421 = vld [vmem:[#allocation2 + $0x88] sm:$0xff]
          %v422 = vld [vmem:[#allocation2 + $0x90] sm:$0xff]
          %v423 = vld [vmem:[#allocation2 + $0x98] sm:$0xff]
          %v424 = vld [vmem:[#allocation2 + $0xa0] sm:$0xff]
          %v425 = vld [vmem:[#allocation2 + $0xa8] sm:$0xff]
          %v426 = vld [vmem:[#allocation2 + $0xb0] sm:$0xff]
          %v427 = vld [vmem:[#allocation2 + $0xb8] sm:$0xff]
          %v428 = vld [vmem:[#allocation2 + $0xc0] sm:$0xff]
          %v429 = vld [vmem:[#allocation2 + $0xc8] sm:$0xff]
          %v430 = vld [vmem:[#allocation2 + $0xd0] sm:$0xff]
          %v431 = vld [vmem:[#allocation2 + $0xd8] sm:$0xff]
          %v432 = vld [vmem:[#allocation2 + $0xe0] sm:$0xff]
          %v433 = vld [vmem:[#allocation2 + $0xe8] sm:$0xff]
          %v434 = vld [vmem:[#allocation2 + $0xf0] sm:$0xff]
          %v435 = vld [vmem:[#allocation2 + $0xf8] sm:$0xff]
          %v436 = vld [vmem:[#allocation2 + $0x100] sm:$0xff]
          %v437 = vld [vmem:[#allocation2 + $0x108] sm:$0xff]
          %v438 = vld [vmem:[#allocation2 + $0x110] sm:$0xff]
          %v439 = vld [vmem:[#allocation2 + $0x118] sm:$0xff]
          %v440 = vld [vmem:[#allocation2 + $0x120] sm:$0xff]
          %v441 = vld [vmem:[#allocation2 + $0x128] sm:$0xff]
          %v442 = vld [vmem:[#allocation2 + $0x130] sm:$0xff]
          %v443 = vld [vmem:[#allocation2 + $0x138] sm:$0xff]
          %v444 = vld [vmem:[#allocation2 + $0x140] sm:$0xff]
          %v445 = vld [vmem:[#allocation2 + $0x148] sm:$0xff]
          %v446 = vld [vmem:[#allocation2 + $0x150] sm:$0xff]
          %v447 = vld [vmem:[#allocation2 + $0x158] sm:$0xff]
          %v448 = vld [vmem:[#allocation2 + $0x160] sm:$0xff]
          %v449 = vld [vmem:[#allocation2 + $0x168] sm:$0xff]
          %v450 = vld [vmem:[#allocation2 + $0x170] sm:$0xff]
          %v451 = vld [vmem:[#allocation2 + $0x178] sm:$0xff]
          %v452 = vld [vmem:[#allocation2 + $0x180] sm:$0xff]
          %v453 = vld [vmem:[#allocation2 + $0x188] sm:$0xff]
          %v454 = vld [vmem:[#allocation2 + $0x190] sm:$0xff]
          %v455 = vld [vmem:[#allocation2 + $0x198] sm:$0xff]
          %v456 = vld [vmem:[#allocation2 + $0x1a0] sm:$0xff]
          %v457 = vld [vmem:[#allocation2 + $0x1a8] sm:$0xff]
          %v458 = vld [vmem:[#allocation2 + $0x1b0] sm:$0xff]
          %v459 = vld [vmem:[#allocation2 + $0x1b8] sm:$0xff]
          %v460 = vld [vmem:[#allocation2 + $0x1c0] sm:$0xff]
          %v461 = vld [vmem:[#allocation2 + $0x1c8] sm:$0xff]
          %v462 = vld [vmem:[#allocation2 + $0x1d0] sm:$0xff]
          %v463 = vld [vmem:[#allocation2 + $0x1d8] sm:$0xff]
          %v464 = vld [vmem:[#allocation2 + $0x1e0] sm:$0xff]
          %v465 = vld [vmem:[#allocation2 + $0x1e8] sm:$0xff]
          %v466 = vld [vmem:[#allocation2 + $0x1f0] sm:$0xff]
          %v467 = vld [vmem:[#allocation2 + $0x1f8] sm:$0xff]
          %v468 = vld [vmem:[#allocation3] ss:$8 sm:$0x3]
          %s469 = scalar_lea.vmem [#allocation3], 1
          %v470 = vld [vmem:[%s469] ss:$8 sm:$0x3]
          %s471 = scalar_lea.vmem [#allocation3], 2
          %v472 = vld [vmem:[%s471] ss:$8 sm:$0x3]
          %v473 = vld [vmem:[#allocation3] sm:$0xf]
          %v474 = vld [vmem:[#allocation3 + $0x8] sm:$0xf]
          %475 = vmatprep.subr.mxu0 %v405
          %476 = vmatpush1.msra.mxu0 %v404
          %477 = vmatprep.subr.mxu0 %v407
          %478 = vmatpush1.msra.mxu0 %v406
          %479 = vmatprep.subr.mxu0 %v409
          %480 = vmatpush1.msra.mxu0 %v408
          %481 = vmatprep.subr.mxu0 %v411
          %482 = vmatpush1.msra.mxu0 %v410
          %483 = vmatprep.subr.mxu0 %v413
          %484 = vmatpush1.msra.mxu0 %v412
          %485 = vmatprep.subr.mxu0 %v415
          %486 = vmatpush1.msra.mxu0 %v414
          %487 = vmatprep.subr.mxu0 %v417
          %488 = vmatpush1.msra.mxu0 %v416
          %489 = vmatprep.subr.mxu0 %v419
          %490 = vmatpush1.msra.mxu0 %v418
          %491 = vmatprep.subr.mxu0 %v421
          %492 = vmatpush1.msra.mxu0 %v420
          %493 = vmatprep.subr.mxu0 %v423
          %494 = vmatpush1.msra.mxu0 %v422
          %495 = vmatprep.subr.mxu0 %v425
          %496 = vmatpush1.msra.mxu0 %v424
          %497 = vmatprep.subr.mxu0 %v427
          %498 = vmatpush1.msra.mxu0 %v426
          %499 = vmatprep.subr.mxu0 %v429
          %500 = vmatpush1.msra.mxu0 %v428
          %501 = vmatprep.subr.mxu0 %v431
          %502 = vmatpush1.msra.mxu0 %v430
          %503 = vmatprep.subr.mxu0 %v433
          %504 = vmatpush1.msra.mxu0 %v432
          %505 = vmatprep.subr.mxu0 %v435
          %506 = vmatpush1.msra.mxu0 %v434
          %507 = vmatprep.subr.mxu0 %v437
          %508 = vmatpush1.msra.mxu0 %v436
          %509 = vmatprep.subr.mxu0 %v439
          %510 = vmatpush1.msra.mxu0 %v438
          %511 = vmatprep.subr.mxu0 %v441
          %512 = vmatpush1.msra.mxu0 %v440
          %513 = vmatprep.subr.mxu0 %v443
          %514 = vmatpush1.msra.mxu0 %v442
          %515 = vmatprep.subr.mxu0 %v445
          %516 = vmatpush1.msra.mxu0 %v444
          %517 = vmatprep.subr.mxu0 %v447
          %518 = vmatpush1.msra.mxu0 %v446
          %519 = vmatprep.subr.mxu0 %v449
          %520 = vmatpush1.msra.mxu0 %v448
          %521 = vmatprep.subr.mxu0 %v451
          %522 = vmatpush1.msra.mxu0 %v450
          %523 = vmatprep.subr.mxu0 %v453
          %524 = vmatpush1.msra.mxu0 %v452
          %525 = vmatprep.subr.mxu0 %v455
          %526 = vmatpush1.msra.mxu0 %v454
          %527 = vmatprep.subr.mxu0 %v457
          %528 = vmatpush1.msra.mxu0 %v456
          %529 = vmatprep.subr.mxu0 %v459
          %530 = vmatpush1.msra.mxu0 %v458
          %531 = vmatprep.subr.mxu0 %v461
          %532 = vmatpush1.msra.mxu0 %v460
          %533 = vmatprep.subr.mxu0 %v463
          %534 = vmatpush1.msra.mxu0 %v462
          %535 = vmatprep.subr.mxu0 %v465
          %536 = vmatpush1.msra.mxu0 %v464
          %537 = vmatprep.subr.mxu0 %v467
          %538 = vmatpush1.msra.mxu0 %v466
          %539 = vmatprep.mubr.f32.mxu0 %v474
          %540 = vmatmul.mubr.f32.gmra.mrb[0].mxu0 %v473
          %v541 = vpop.f32.mrb[0].mxu0
          %v542 = vadd.f32 0.0, %v541
          %v543 = vpop.f32.mrb[0].mxu0
          %v544 = vadd.f32 0.0, %v543
          %545 = vdwg.mxu0
          %v546 = vsub.f32 1.0, %v468
          %v549 = vcombine.low %v542, %v544
          %v551 = vunpack.c.l.s4 1966171168
          %v552 = vunpack.c.0.s8 %v551
          %v553 = vlaneseq
          %v554 = vshrl.u32 %v553, 7
          %v555 = vsub.s32 %v552, %v554
          %v556 = vrot.slane %v549, %v555
          %v558 = vunpack.c.l.s4 1966171168
          %v559 = vunpack.c.0.s8 %v558
          %v560 = vlaneseq
          %v561 = vshrl.u32 %v560, 7
          %v562 = vsub.s32 %v559, %v561
          %v563 = vrot.slane %v556, %v562
          %v565 = vmul.f32 %v546, %v563
          %v566 = vstv %s237
          %v567 = vmul.f32 %v566, %v472
          %v568 = vadd.f32 %v470, %v567
          %v569 = vmul.f32 %v568, %v565
          %v570 = vmax.f32 %v542, 1.0
          %v571 = vmax.f32 %v544, 1.0
          %v574 = vcombine.low %v570, %v571
          %v576 = vunpack.c.l.s4 1966171168
          %v577 = vunpack.c.0.s8 %v576
          %v578 = vlaneseq
          %v579 = vshrl.u32 %v578, 7
          %v580 = vsub.s32 %v577, %v579
          %v581 = vrot.slane %v574, %v580
          %v582 = vcombine.high %v581, %v581
          %v584 = vunpack.c.l.s4 1966171168
          %v585 = vunpack.c.0.s8 %v584
          %v586 = vlaneseq
          %v587 = vshrl.u32 %v586, 7
          %v588 = vsub.s32 %v585, %v587
          %v589 = vrot.slane %v582, %v588
          %v590 = vcombine.high %v589, %v589
          %v592 = vrcp.pop %v590
          %v593 = vmul.f32 %v569, %v592
          %v594 = vstv %s243
          %v595 = vmul.f32 %v593, %v594
          %v596 = vsub.f32 0.0, %v595
          %v597 = vmul.f32 %v596, 1.442695
          %v598 = vpow.pop %v597
          %v599 = vsub.f32 1.0, %v598
          %v600 = vmax.f32 %v599, 1e-10
          %v601 = vmin.f32 %v600, 1.0
          %v602 = vld [vmem:[%s225] ss:$8 sm:$0x3]
          %vm603 = vcmp.lt.f32.partialorder %v602, %v601
          %v604 = vsel %vm603, 1, 0
          %v605 = vcvt.s32.f32 %v604
          %v606 = vstv %s236
          %v607 = vmul.f32 %v606, %v468
          %v608 = vmax.f32 %v607, 1e-10
          %v609 = vmin.f32 %v608, 1.0
          %s610 = scalar_lea.vmem %s225, 1
          %v611 = vld [vmem:[%s610] ss:$8 sm:$0x3]
          %vm612 = vcmp.lt.f32.partialorder %v611, %v609
          %v613 = vsel %vm612, 1, 0
          %v614 = vcvt.s32.f32 %v613
          %v615 = vadd.f32 %v468, %v605
          %v616 = vsub.f32 %v615, %v614
          %v617 = vlaneseq
          %vm618 = vcmp.ge.s32.totalorder %v617, 0
          %vm619 = vcmp.lt.s32.totalorder %v617, 256
          %vm620 = vmand %vm618, %vm619
          %621 = vst.msk [vmem:[#allocation3] ss:$8 sm:$0x3] %vm620, %v616
          %622 = vst.msk [vmem:[#allocation3] ss:$8 sm:$0x0] %vm620, %v616
          %v623 = vmul.f32 %v470, %v605
          %v624 = vsub.f32 %v470, %v623
          %625 = vst.msk [vmem:[%s469] ss:$8 sm:$0x3] %vm620, %v624
          %626 = vst.msk [vmem:[%s469] ss:$8 sm:$0x0] %vm620, %v624
          %v627 = vadd.f32 %v472, %v614
          %v628 = vmul.f32 %v472, %v605
          %v629 = vsub.f32 %v627, %v628
          %630 = vst.msk [vmem:[%s471] ss:$8 sm:$0x3] %vm620, %v629
          %631 = vst.msk [vmem:[%s471] ss:$8 sm:$0x0] %vm620, %v629
          %v632 = vcombine.high %v556, %v556
          %v634 = vunpack.c.l.s4 1966171168
          %v635 = vunpack.c.0.s8 %v634
          %v636 = vlaneseq
          %v637 = vshrl.u32 %v636, 7
          %v638 = vsub.s32 %v635, %v637
          %v639 = vrot.slane %v632, %v638
          %v640 = vcombine.high %v639, %v639
          %s642 = scalar_lea.vmem [#allocation3], 4
          %643 = vst.msk [vmem:[%s642] ss:$8 sm:$0x3] %vm620, %v640
          %644 = vst.msk [vmem:[%s642] ss:$8 sm:$0x0] %vm620, %v640
        $region40: #{sir_forward.3} parent=31 // pred_fallthru
          _
        %v645 = vld [vmem:[#allocation3] ss:$8 sm:$0x3]
        %s646 = scalar_lea.vmem [#allocation3], 1
        %v647 = vld [vmem:[%s646] ss:$8 sm:$0x3]
        %s648 = scalar_lea.vmem [#allocation3], 2
        %v649 = vld [vmem:[%s648] ss:$8 sm:$0x3]
        %v650 = vmax.f32 %v647, %v649
        %vm651 = vcmp.ge.f32.partialorder %v645, %v650
        %vm652 = vcmp.ge.f32.partialorder %v647, %v649
        %v653 = vsel %vm652, 1.0, 2.0
        %v654 = vsel %vm651, 0.0, %v653
        %v655 = vlaneseq
        %vm656 = vcmp.ge.s32.totalorder %v655, 0
        %vm657 = vcmp.lt.s32.totalorder %v655, 256
        %vm658 = vmand %vm656, %vm657
        %s659 = scalar_lea.vmem [#allocation3], 5
        %660 = vst.msk [vmem:[%s659] ss:$8 sm:$0x3] %vm658, %v654
        %661 = vst.msk [vmem:[%s659] ss:$8 sm:$0x0] %vm658, %v654
        %v662 = vld [vmem:[#allocation3] sm:$0xff]
        %v663 = vld [vmem:[#allocation3 + $0x8] sm:$0xff]
        %664 = vst [vmem:[%s235] sm:$0xff] %v662
        %665 = vst [vmem:[%s235 + $0x8] sm:$0xff] %v663
        %v666 = vld [vmem:[#allocation2] sm:$0xff]
        %v667 = vld [vmem:[#allocation2 + $0x8] sm:$0xff]
        %v668 = vld [vmem:[#allocation2 + $0x10] sm:$0xff]
        %v669 = vld [vmem:[#allocation2 + $0x18] sm:$0xff]
        %v670 = vld [vmem:[#allocation2 + $0x20] sm:$0xff]
        %v671 = vld [vmem:[#allocation2 + $0x28] sm:$0xff]
        %v672 = vld [vmem:[#allocation2 + $0x30] sm:$0xff]
        %v673 = vld [vmem:[#allocation2 + $0x38] sm:$0xff]
        %v674 = vld [vmem:[#allocation2 + $0x40] sm:$0xff]
        %v675 = vld [vmem:[#allocation2 + $0x48] sm:$0xff]
        %v676 = vld [vmem:[#allocation2 + $0x50] sm:$0xff]
        %v677 = vld [vmem:[#allocation2 + $0x58] sm:$0xff]
        %v678 = vld [vmem:[#allocation2 + $0x60] sm:$0xff]
        %v679 = vld [vmem:[#allocation2 + $0x68] sm:$0xff]
        %v680 = vld [vmem:[#allocation2 + $0x70] sm:$0xff]
        %v681 = vld [vmem:[#allocation2 + $0x78] sm:$0xff]
        %v682 = vld [vmem:[#allocation2 + $0x80] sm:$0xff]
        %v683 = vld [vmem:[#allocation2 + $0x88] sm:$0xff]
        %v684 = vld [vmem:[#allocation2 + $0x90] sm:$0xff]
        %v685 = vld [vmem:[#allocation2 + $0x98] sm:$0xff]
        %v686 = vld [vmem:[#allocation2 + $0xa0] sm:$0xff]
        %v687 = vld [vmem:[#allocation2 + $0xa8] sm:$0xff]
        %v688 = vld [vmem:[#allocation2 + $0xb0] sm:$0xff]
        %v689 = vld [vmem:[#allocation2 + $0xb8] sm:$0xff]
        %v690 = vld [vmem:[#allocation2 + $0xc0] sm:$0xff]
        %v691 = vld [vmem:[#allocation2 + $0xc8] sm:$0xff]
        %v692 = vld [vmem:[#allocation2 + $0xd0] sm:$0xff]
        %v693 = vld [vmem:[#allocation2 + $0xd8] sm:$0xff]
        %v694 = vld [vmem:[#allocation2 + $0xe0] sm:$0xff]
        %v695 = vld [vmem:[#allocation2 + $0xe8] sm:$0xff]
        %v696 = vld [vmem:[#allocation2 + $0xf0] sm:$0xff]
        %v697 = vld [vmem:[#allocation2 + $0xf8] sm:$0xff]
        %v698 = vld [vmem:[#allocation2 + $0x100] sm:$0xff]
        %v699 = vld [vmem:[#allocation2 + $0x108] sm:$0xff]
        %v700 = vld [vmem:[#allocation2 + $0x110] sm:$0xff]
        %v701 = vld [vmem:[#allocation2 + $0x118] sm:$0xff]
        %v702 = vld [vmem:[#allocation2 + $0x120] sm:$0xff]
        %v703 = vld [vmem:[#allocation2 + $0x128] sm:$0xff]
        %v704 = vld [vmem:[#allocation2 + $0x130] sm:$0xff]
        %v705 = vld [vmem:[#allocation2 + $0x138] sm:$0xff]
        %v706 = vld [vmem:[#allocation2 + $0x140] sm:$0xff]
        %v707 = vld [vmem:[#allocation2 + $0x148] sm:$0xff]
        %v708 = vld [vmem:[#allocation2 + $0x150] sm:$0xff]
        %v709 = vld [vmem:[#allocation2 + $0x158] sm:$0xff]
        %v710 = vld [vmem:[#allocation2 + $0x160] sm:$0xff]
        %v711 = vld [vmem:[#allocation2 + $0x168] sm:$0xff]
        %v712 = vld [vmem:[#allocation2 + $0x170] sm:$0xff]
        %v713 = vld [vmem:[#allocation2 + $0x178] sm:$0xff]
        %v714 = vld [vmem:[#allocation2 + $0x180] sm:$0xff]
        %v715 = vld [vmem:[#allocation2 + $0x188] sm:$0xff]
        %v716 = vld [vmem:[#allocation2 + $0x190] sm:$0xff]
        %v717 = vld [vmem:[#allocation2 + $0x198] sm:$0xff]
        %v718 = vld [vmem:[#allocation2 + $0x1a0] sm:$0xff]
        %v719 = vld [vmem:[#allocation2 + $0x1a8] sm:$0xff]
        %v720 = vld [vmem:[#allocation2 + $0x1b0] sm:$0xff]
        %v721 = vld [vmem:[#allocation2 + $0x1b8] sm:$0xff]
        %v722 = vld [vmem:[#allocation2 + $0x1c0] sm:$0xff]
        %v723 = vld [vmem:[#allocation2 + $0x1c8] sm:$0xff]
        %v724 = vld [vmem:[#allocation2 + $0x1d0] sm:$0xff]
        %v725 = vld [vmem:[#allocation2 + $0x1d8] sm:$0xff]
        %v726 = vld [vmem:[#allocation2 + $0x1e0] sm:$0xff]
        %v727 = vld [vmem:[#allocation2 + $0x1e8] sm:$0xff]
        %v728 = vld [vmem:[#allocation2 + $0x1f0] sm:$0xff]
        %v729 = vld [vmem:[#allocation2 + $0x1f8] sm:$0xff]
        %v730 = vpack.c.bf16 %v668, %v666
        %v731 = vpack.c.bf16 %v669, %v667
        %v732 = vpack.c.bf16 %v672, %v670
        %v733 = vpack.c.bf16 %v673, %v671
        %v734 = vpack.c.bf16 %v676, %v674
        %v735 = vpack.c.bf16 %v677, %v675
        %v736 = vpack.c.bf16 %v680, %v678
        %v737 = vpack.c.bf16 %v681, %v679
        %v738 = vpack.c.bf16 %v684, %v682
        %v739 = vpack.c.bf16 %v685, %v683
        %v740 = vpack.c.bf16 %v688, %v686
        %v741 = vpack.c.bf16 %v689, %v687
        %v742 = vpack.c.bf16 %v692, %v690
        %v743 = vpack.c.bf16 %v693, %v691
        %v744 = vpack.c.bf16 %v696, %v694
        %v745 = vpack.c.bf16 %v697, %v695
        %v746 = vpack.c.bf16 %v700, %v698
        %v747 = vpack.c.bf16 %v701, %v699
        %v748 = vpack.c.bf16 %v704, %v702
        %v749 = vpack.c.bf16 %v705, %v703
        %v750 = vpack.c.bf16 %v708, %v706
        %v751 = vpack.c.bf16 %v709, %v707
        %v752 = vpack.c.bf16 %v712, %v710
        %v753 = vpack.c.bf16 %v713, %v711
        %v754 = vpack.c.bf16 %v716, %v714
        %v755 = vpack.c.bf16 %v717, %v715
        %v756 = vpack.c.bf16 %v720, %v718
        %v757 = vpack.c.bf16 %v721, %v719
        %v758 = vpack.c.bf16 %v724, %v722
        %v759 = vpack.c.bf16 %v725, %v723
        %v760 = vpack.c.bf16 %v728, %v726
        %v761 = vpack.c.bf16 %v729, %v727
        %v794 = vunpack.c.l.b16 %v730
        %v795 = vunpack.c.l.b16 %v731
        %v796 = vunpack.c.h.b16 %v730
        %v797 = vunpack.c.h.b16 %v731
        %v798 = vunpack.c.l.b16 %v732
        %v799 = vunpack.c.l.b16 %v733
        %v800 = vunpack.c.h.b16 %v732
        %v801 = vunpack.c.h.b16 %v733
        %v802 = vunpack.c.l.b16 %v734
        %v803 = vunpack.c.l.b16 %v735
        %v804 = vunpack.c.h.b16 %v734
        %v805 = vunpack.c.h.b16 %v735
        %v806 = vunpack.c.l.b16 %v736
        %v807 = vunpack.c.l.b16 %v737
        %v808 = vunpack.c.h.b16 %v736
        %v809 = vunpack.c.h.b16 %v737
        %v810 = vunpack.c.l.b16 %v738
        %v811 = vunpack.c.l.b16 %v739
        %v812 = vunpack.c.h.b16 %v738
        %v813 = vunpack.c.h.b16 %v739
        %v814 = vunpack.c.l.b16 %v740
        %v815 = vunpack.c.l.b16 %v741
        %v816 = vunpack.c.h.b16 %v740
        %v817 = vunpack.c.h.b16 %v741
        %v818 = vunpack.c.l.b16 %v742
        %v819 = vunpack.c.l.b16 %v743
        %v820 = vunpack.c.h.b16 %v742
        %v821 = vunpack.c.h.b16 %v743
        %v822 = vunpack.c.l.b16 %v744
        %v823 = vunpack.c.l.b16 %v745
        %v824 = vunpack.c.h.b16 %v744
        %v825 = vunpack.c.h.b16 %v745
        %v826 = vunpack.c.l.b16 %v746
        %v827 = vunpack.c.l.b16 %v747
        %v828 = vunpack.c.h.b16 %v746
        %v829 = vunpack.c.h.b16 %v747
        %v830 = vunpack.c.l.b16 %v748
        %v831 = vunpack.c.l.b16 %v749
        %v832 = vunpack.c.h.b16 %v748
        %v833 = vunpack.c.h.b16 %v749
        %v834 = vunpack.c.l.b16 %v750
        %v835 = vunpack.c.l.b16 %v751
        %v836 = vunpack.c.h.b16 %v750
        %v837 = vunpack.c.h.b16 %v751
        %v838 = vunpack.c.l.b16 %v752
        %v839 = vunpack.c.l.b16 %v753
        %v840 = vunpack.c.h.b16 %v752
        %v841 = vunpack.c.h.b16 %v753
        %v842 = vunpack.c.l.b16 %v754
        %v843 = vunpack.c.l.b16 %v755
        %v844 = vunpack.c.h.b16 %v754
        %v845 = vunpack.c.h.b16 %v755
        %v846 = vunpack.c.l.b16 %v756
        %v847 = vunpack.c.l.b16 %v757
        %v848 = vunpack.c.h.b16 %v756
        %v849 = vunpack.c.h.b16 %v757
        %v850 = vunpack.c.l.b16 %v758
        %v851 = vunpack.c.l.b16 %v759
        %v852 = vunpack.c.h.b16 %v758
        %v853 = vunpack.c.h.b16 %v759
        %v854 = vunpack.c.l.b16 %v760
        %v855 = vunpack.c.l.b16 %v761
        %v856 = vunpack.c.h.b16 %v760
        %v857 = vunpack.c.h.b16 %v761
        %v858 = vpack.c.b16 %v795, %v794
        %v859 = vpack.c.b16 %v797, %v796
        %v860 = vpack.c.b16 %v799, %v798
        %v861 = vpack.c.b16 %v801, %v800
        %v862 = vpack.c.b16 %v803, %v802
        %v863 = vpack.c.b16 %v805, %v804
        %v864 = vpack.c.b16 %v807, %v806
        %v865 = vpack.c.b16 %v809, %v808
        %v866 = vpack.c.b16 %v811, %v810
        %v867 = vpack.c.b16 %v813, %v812
        %v868 = vpack.c.b16 %v815, %v814
        %v869 = vpack.c.b16 %v817, %v816
        %v870 = vpack.c.b16 %v819, %v818
        %v871 = vpack.c.b16 %v821, %v820
        %v872 = vpack.c.b16 %v823, %v822
        %v873 = vpack.c.b16 %v825, %v824
        %v874 = vpack.c.b16 %v827, %v826
        %v875 = vpack.c.b16 %v829, %v828
        %v876 = vpack.c.b16 %v831, %v830
        %v877 = vpack.c.b16 %v833, %v832
        %v878 = vpack.c.b16 %v835, %v834
        %v879 = vpack.c.b16 %v837, %v836
        %v880 = vpack.c.b16 %v839, %v838
        %v881 = vpack.c.b16 %v841, %v840
        %v882 = vpack.c.b16 %v843, %v842
        %v883 = vpack.c.b16 %v845, %v844
        %v884 = vpack.c.b16 %v847, %v846
        %v885 = vpack.c.b16 %v849, %v848
        %v886 = vpack.c.b16 %v851, %v850
        %v887 = vpack.c.b16 %v853, %v852
        %v888 = vpack.c.b16 %v855, %v854
        %v889 = vpack.c.b16 %v857, %v856
        %922 = vst [vmem:[%s220] sm:$0xff] %v858
        %923 = vst [vmem:[%s220 + $0x8] sm:$0xff] %v859
        %924 = vst [vmem:[%s220 + $0x10] sm:$0xff] %v860
        %925 = vst [vmem:[%s220 + $0x18] sm:$0xff] %v861
        %926 = vst [vmem:[%s220 + $0x20] sm:$0xff] %v862
        %927 = vst [vmem:[%s220 + $0x28] sm:$0xff] %v863
        %928 = vst [vmem:[%s220 + $0x30] sm:$0xff] %v864
        %929 = vst [vmem:[%s220 + $0x38] sm:$0xff] %v865
        %930 = vst [vmem:[%s220 + $0x40] sm:$0xff] %v866
        %931 = vst [vmem:[%s220 + $0x48] sm:$0xff] %v867
        %932 = vst [vmem:[%s220 + $0x50] sm:$0xff] %v868
        %933 = vst [vmem:[%s220 + $0x58] sm:$0xff] %v869
        %934 = vst [vmem:[%s220 + $0x60] sm:$0xff] %v870
        %935 = vst [vmem:[%s220 + $0x68] sm:$0xff] %v871
        %936 = vst [vmem:[%s220 + $0x70] sm:$0xff] %v872
        %937 = vst [vmem:[%s220 + $0x78] sm:$0xff] %v873
        %938 = vst [vmem:[%s220 + $0x80] sm:$0xff] %v874
        %939 = vst [vmem:[%s220 + $0x88] sm:$0xff] %v875
        %940 = vst [vmem:[%s220 + $0x90] sm:$0xff] %v876
        %941 = vst [vmem:[%s220 + $0x98] sm:$0xff] %v877
        %942 = vst [vmem:[%s220 + $0xa0] sm:$0xff] %v878
        %943 = vst [vmem:[%s220 + $0xa8] sm:$0xff] %v879
        %944 = vst [vmem:[%s220 + $0xb0] sm:$0xff] %v880
        %945 = vst [vmem:[%s220 + $0xb8] sm:$0xff] %v881
        %946 = vst [vmem:[%s220 + $0xc0] sm:$0xff] %v882
        %947 = vst [vmem:[%s220 + $0xc8] sm:$0xff] %v883
        %948 = vst [vmem:[%s220 + $0xd0] sm:$0xff] %v884
        %949 = vst [vmem:[%s220 + $0xd8] sm:$0xff] %v885
        %950 = vst [vmem:[%s220 + $0xe0] sm:$0xff] %v886
        %951 = vst [vmem:[%s220 + $0xe8] sm:$0xff] %v887
        %952 = vst [vmem:[%s220 + $0xf0] sm:$0xff] %v888
        %953 = vst [vmem:[%s220 + $0xf8] sm:$0xff] %v889
        %p954 = scmp.ge.s32.totalorder %s26, 1
        %p955 = scmp.lt.s32.totalorder %s26, 4
        %p956 = pnand %p954, %p955
        %p957 = pneg %p956
        // Predicated region
        $region41: #{sir_forward.3} parent=31 // pred_check
          _
        $region42: #{sir_forward.3} parent=31 // pred_check_branch
          %959 = sbr.rel (%p956) target = $region44
        $region43: #{sir_forward.3} parent=31 // pred_region
          %v960 = vld [vmem:[#allocation2] sm:$0xff]
          %v961 = vld [vmem:[#allocation2 + $0x8] sm:$0xff]
          %v962 = vld [vmem:[#allocation2 + $0x10] sm:$0xff]
          %v963 = vld [vmem:[#allocation2 + $0x18] sm:$0xff]
          %v964 = vld [vmem:[#allocation2 + $0x20] sm:$0xff]
          %v965 = vld [vmem:[#allocation2 + $0x28] sm:$0xff]
          %v966 = vld [vmem:[#allocation2 + $0x30] sm:$0xff]
          %v967 = vld [vmem:[#allocation2 + $0x38] sm:$0xff]
          %v968 = vld [vmem:[#allocation2 + $0x40] sm:$0xff]
          %v969 = vld [vmem:[#allocation2 + $0x48] sm:$0xff]
          %v970 = vld [vmem:[#allocation2 + $0x50] sm:$0xff]
          %v971 = vld [vmem:[#allocation2 + $0x58] sm:$0xff]
          %v972 = vld [vmem:[#allocation2 + $0x60] sm:$0xff]
          %v973 = vld [vmem:[#allocation2 + $0x68] sm:$0xff]
          %v974 = vld [vmem:[#allocation2 + $0x70] sm:$0xff]
          %v975 = vld [vmem:[#allocation2 + $0x78] sm:$0xff]
          %v976 = vld [vmem:[#allocation2 + $0x80] sm:$0xff]
          %v977 = vld [vmem:[#allocation2 + $0x88] sm:$0xff]
          %v978 = vld [vmem:[#allocation2 + $0x90] sm:$0xff]
          %v979 = vld [vmem:[#allocation2 + $0x98] sm:$0xff]
          %v980 = vld [vmem:[#allocation2 + $0xa0] sm:$0xff]
          %v981 = vld [vmem:[#allocation2 + $0xa8] sm:$0xff]
          %v982 = vld [vmem:[#allocation2 + $0xb0] sm:$0xff]
          %v983 = vld [vmem:[#allocation2 + $0xb8] sm:$0xff]
          %v984 = vld [vmem:[#allocation2 + $0xc0] sm:$0xff]
          %v985 = vld [vmem:[#allocation2 + $0xc8] sm:$0xff]
          %v986 = vld [vmem:[#allocation2 + $0xd0] sm:$0xff]
          %v987 = vld [vmem:[#allocation2 + $0xd8] sm:$0xff]
          %v988 = vld [vmem:[#allocation2 + $0xe0] sm:$0xff]
          %v989 = vld [vmem:[#allocation2 + $0xe8] sm:$0xff]
          %v990 = vld [vmem:[#allocation2 + $0xf0] sm:$0xff]
          %v991 = vld [vmem:[#allocation2 + $0xf8] sm:$0xff]
          %v992 = vld [vmem:[#allocation2 + $0x100] sm:$0xff]
          %v993 = vld [vmem:[#allocation2 + $0x108] sm:$0xff]
          %v994 = vld [vmem:[#allocation2 + $0x110] sm:$0xff]
          %v995 = vld [vmem:[#allocation2 + $0x118] sm:$0xff]
          %v996 = vld [vmem:[#allocation2 + $0x120] sm:$0xff]
          %v997 = vld [vmem:[#allocation2 + $0x128] sm:$0xff]
          %v998 = vld [vmem:[#allocation2 + $0x130] sm:$0xff]
          %v999 = vld [vmem:[#allocation2 + $0x138] sm:$0xff]
          %v1000 = vld [vmem:[#allocation2 + $0x140] sm:$0xff]
          %v1001 = vld [vmem:[#allocation2 + $0x148] sm:$0xff]
          %v1002 = vld [vmem:[#allocation2 + $0x150] sm:$0xff]
          %v1003 = vld [vmem:[#allocation2 + $0x158] sm:$0xff]
          %v1004 = vld [vmem:[#allocation2 + $0x160] sm:$0xff]
          %v1005 = vld [vmem:[#allocation2 + $0x168] sm:$0xff]
          %v1006 = vld [vmem:[#allocation2 + $0x170] sm:$0xff]
          %v1007 = vld [vmem:[#allocation2 + $0x178] sm:$0xff]
          %v1008 = vld [vmem:[#allocation2 + $0x180] sm:$0xff]
          %v1009 = vld [vmem:[#allocation2 + $0x188] sm:$0xff]
          %v1010 = vld [vmem:[#allocation2 + $0x190] sm:$0xff]
          %v1011 = vld [vmem:[#allocation2 + $0x198] sm:$0xff]
          %v1012 = vld [vmem:[#allocation2 + $0x1a0] sm:$0xff]
          %v1013 = vld [vmem:[#allocation2 + $0x1a8] sm:$0xff]
          %v1014 = vld [vmem:[#allocation2 + $0x1b0] sm:$0xff]
          %v1015 = vld [vmem:[#allocation2 + $0x1b8] sm:$0xff]
          %v1016 = vld [vmem:[#allocation2 + $0x1c0] sm:$0xff]
          %v1017 = vld [vmem:[#allocation2 + $0x1c8] sm:$0xff]
          %v1018 = vld [vmem:[#allocation2 + $0x1d0] sm:$0xff]
          %v1019 = vld [vmem:[#allocation2 + $0x1d8] sm:$0xff]
          %v1020 = vld [vmem:[#allocation2 + $0x1e0] sm:$0xff]
          %v1021 = vld [vmem:[#allocation2 + $0x1e8] sm:$0xff]
          %v1022 = vld [vmem:[#allocation2 + $0x1f0] sm:$0xff]
          %v1023 = vld [vmem:[#allocation2 + $0x1f8] sm:$0xff]
          %s1024 = scalar_lea.vmem [#allocation3], 4
          %v1025 = vld [vmem:[%s1024] ss:$8 sm:$0x3]
          %v1027 = vlaneseq
          %v1028 = vshrl.u32 %v1027, 7
          %v1029 = vsub.s32 0, %v1028
          %v1030 = vrot.slane %v1025, %v1029
          %v1031 = vlaneseq
          %v1032 = vshrl.u32 %v1031, 7
          %v1033 = vsub.s32 1, %v1032
          %v1034 = vrot.slane %v1025, %v1033
          %vm1037 = vcmask 1040384
          %v1038 = vsel %vm1037, %v1030, 0.0
          %v1039 = vsel %vm1037, %v1034, 0.0
          %v1040 = vadd.f32 %v1038, %v1039
          %1041 = vadd.xlane.f32.xlu0 %v1040
          %v1042 = vpop.xlane.xlu0 %1041
          %v1043 = vmul.f32 %v1042, 0.00390625
          %v1044 = vlog2.pop %v1043
          %v1045 = vmul.f32 %v1044, 0.6931472
          %v1046 = vand.u32 2147483647, %v1045
          %vm1047 = vcmp.lt.f32.partialorder %v1046, 1e-12
          %v1048 = vsel %vm1047, 1e-12, %v1045
          %v1049 = vstv %s244
          %v1050 = vrcp.pop %v1048
          %v1051 = vmul.f32 %v1049, %v1050
          %s1052 = ssub.f32 0.0, %s239
          %v1053 = vstv %s1052
          %v1054 = vmul.f32 %v1053, %v1051
          %s1055 = smul.f32 %s239, 2.0
          %v1056 = vstv %s1055
          %v1057 = vadd.f32 %v1054, %v1056
          %v1058 = vmax.f32 %v1057, 1e-10
          %v1059 = vmin.f32 %v1058, 1.0
          %s1060 = ssub.f32 0.0, %s240
          %v1061 = vstv %s1060
          %v1062 = vmul.f32 %v1061, %v1051
          %s1063 = smul.f32 %s240, 2.0
          %v1064 = vstv %s1063
          %v1065 = vadd.f32 %v1062, %v1064
          %v1066 = vmax.f32 %v1065, 1e-10
          %v1067 = vmin.f32 %v1066, 1.0
          %v1068 = vstv %s241
          %v1069 = vmul.f32 %v1068, %v1051
          %v1070 = vmax.f32 %v1069, 1e-10
          %v1071 = vmin.f32 %v1070, 1.0
          %v1072 = vstv %s242
          %v1073 = vmul.f32 %v1072, %v1051
          %v1074 = vmax.f32 %v1073, 1e-10
          %v1075 = vmin.f32 %v1074, 1.0
          %v1076 = vld [vmem:[%s659] ss:$8 sm:$0x3]
          %v1078 = vlaneseq
          %v1079 = vshrl.u32 %v1078, 7
          %v1080 = vsub.s32 0, %v1079
          %v1081 = vrot.slane %v1076, %v1080
          %v1082 = vlaneseq
          %v1083 = vshrl.u32 %v1082, 7
          %v1084 = vsub.s32 1, %v1083
          %v1085 = vrot.slane %v1076, %v1084
          %1088 = vxpose.xlu0.b32.start [1/16] %v1081, 128
          %1089 = vxpose.xlu0.b32.cont [2/16] 0.0, 128
          %1090 = vxpose.xlu0.b32.cont [3/16] 0.0, 128
          %1091 = vxpose.xlu0.b32.cont [4/16] 0.0, 128
          %1092 = vxpose.xlu0.b32.cont [5/16] 0.0, 128
          %1093 = vxpose.xlu0.b32.cont [6/16] 0.0, 128
          %1094 = vxpose.xlu0.b32.cont [7/16] 0.0, 128
          %1095 = vxpose.xlu0.b32.cont [8/16] 0.0, 128
          %1096 = vxpose.xlu0.b32.cont [9/16] 0.0, 128
          %1097 = vxpose.xlu0.b32.cont [10/16] 0.0, 128
          %1098 = vxpose.xlu0.b32.cont [11/16] 0.0, 128
          %1099 = vxpose.xlu0.b32.cont [12/16] 0.0, 128
          %1100 = vxpose.xlu0.b32.cont [13/16] 0.0, 128
          %1101 = vxpose.xlu0.b32.cont [14/16] 0.0, 128
          %1102 = vxpose.xlu0.b32.cont [15/16] 0.0, 128
          %1103 = vxpose.xlu0.b32.end [16/16] 0.0, 128
          %v1104 = vpop.trf.xlu0
          %v1105 = vpop.trf.xlu0
          %v1106 = vpop.trf.xlu0
          %v1107 = vpop.trf.xlu0
          %v1108 = vpop.trf.xlu0
          %v1109 = vpop.trf.xlu0
          %v1110 = vpop.trf.xlu0
          %v1111 = vpop.trf.xlu0
          %v1112 = vpop.trf.xlu0
          %v1113 = vpop.trf.xlu0
          %v1114 = vpop.trf.xlu0
          %v1115 = vpop.trf.xlu0
          %v1116 = vpop.trf.xlu0
          %v1117 = vpop.trf.xlu0
          %v1118 = vpop.trf.xlu0
          %v1119 = vpop.trf.xlu0
          %1120 = vxpose.xlu0.b32.start [1/16] %v1085, 128
          %1121 = vxpose.xlu0.b32.cont [2/16] 0.0, 128
          %1122 = vxpose.xlu0.b32.cont [3/16] 0.0, 128
          %1123 = vxpose.xlu0.b32.cont [4/16] 0.0, 128
          %1124 = vxpose.xlu0.b32.cont [5/16] 0.0, 128
          %1125 = vxpose.xlu0.b32.cont [6/16] 0.0, 128
          %1126 = vxpose.xlu0.b32.cont [7/16] 0.0, 128
          %1127 = vxpose.xlu0.b32.cont [8/16] 0.0, 128
          %1128 = vxpose.xlu0.b32.cont [9/16] 0.0, 128
          %1129 = vxpose.xlu0.b32.cont [10/16] 0.0, 128
          %1130 = vxpose.xlu0.b32.cont [11/16] 0.0, 128
          %1131 = vxpose.xlu0.b32.cont [12/16] 0.0, 128
          %1132 = vxpose.xlu0.b32.cont [13/16] 0.0, 128
          %1133 = vxpose.xlu0.b32.cont [14/16] 0.0, 128
          %1134 = vxpose.xlu0.b32.cont [15/16] 0.0, 128
          %1135 = vxpose.xlu0.b32.end [16/16] 0.0, 128
          %v1136 = vpop.trf.xlu0
          %v1137 = vpop.trf.xlu0
          %v1138 = vpop.trf.xlu0
          %v1139 = vpop.trf.xlu0
          %v1140 = vpop.trf.xlu0
          %v1141 = vpop.trf.xlu0
          %v1142 = vpop.trf.xlu0
          %v1143 = vpop.trf.xlu0
          %v1144 = vpop.trf.xlu0
          %v1145 = vpop.trf.xlu0
          %v1146 = vpop.trf.xlu0
          %v1147 = vpop.trf.xlu0
          %v1148 = vpop.trf.xlu0
          %v1149 = vpop.trf.xlu0
          %v1150 = vpop.trf.xlu0
          %v1151 = vpop.trf.xlu0
          %1153 = vset.pattern.permute.xlu0 0
          %1154 = vperm.xlu0 %1153, %v1104
          %v1155 = vpop.permute.xlu0 %1154
          %1158 = vset.pattern.permute.xlu0 0
          %1159 = vperm.xlu0 %1158, %v1105
          %v1160 = vpop.permute.xlu0 %1159
          %1163 = vset.pattern.permute.xlu0 0
          %1164 = vperm.xlu0 %1163, %v1106
          %v1165 = vpop.permute.xlu0 %1164
          %1168 = vset.pattern.permute.xlu0 0
          %1169 = vperm.xlu0 %1168, %v1107
          %v1170 = vpop.permute.xlu0 %1169
          %1173 = vset.pattern.permute.xlu0 0
          %1174 = vperm.xlu0 %1173, %v1108
          %v1175 = vpop.permute.xlu0 %1174
          %1178 = vset.pattern.permute.xlu0 0
          %1179 = vperm.xlu0 %1178, %v1109
          %v1180 = vpop.permute.xlu0 %1179
          %1183 = vset.pattern.permute.xlu0 0
          %1184 = vperm.xlu0 %1183, %v1110
          %v1185 = vpop.permute.xlu0 %1184
          %1188 = vset.pattern.permute.xlu0 0
          %1189 = vperm.xlu0 %1188, %v1111
          %v1190 = vpop.permute.xlu0 %1189
          %1193 = vset.pattern.permute.xlu0 0
          %1194 = vperm.xlu0 %1193, %v1112
          %v1195 = vpop.permute.xlu0 %1194
          %1198 = vset.pattern.permute.xlu0 0
          %1199 = vperm.xlu0 %1198, %v1113
          %v1200 = vpop.permute.xlu0 %1199
          %1203 = vset.pattern.permute.xlu0 0
          %1204 = vperm.xlu0 %1203, %v1114
          %v1205 = vpop.permute.xlu0 %1204
          %1208 = vset.pattern.permute.xlu0 0
          %1209 = vperm.xlu0 %1208, %v1115
          %v1210 = vpop.permute.xlu0 %1209
          %1213 = vset.pattern.permute.xlu0 0
          %1214 = vperm.xlu0 %1213, %v1116
          %v1215 = vpop.permute.xlu0 %1214
          %1218 = vset.pattern.permute.xlu0 0
          %1219 = vperm.xlu0 %1218, %v1117
          %v1220 = vpop.permute.xlu0 %1219
          %1223 = vset.pattern.permute.xlu0 0
          %1224 = vperm.xlu0 %1223, %v1118
          %v1225 = vpop.permute.xlu0 %1224
          %1228 = vset.pattern.permute.xlu0 0
          %1229 = vperm.xlu0 %1228, %v1119
          %v1230 = vpop.permute.xlu0 %1229
          %1233 = vset.pattern.permute.xlu0 0
          %1234 = vperm.xlu0 %1233, %v1136
          %v1235 = vpop.permute.xlu0 %1234
          %1238 = vset.pattern.permute.xlu0 0
          %1239 = vperm.xlu0 %1238, %v1137
          %v1240 = vpop.permute.xlu0 %1239
          %1243 = vset.pattern.permute.xlu0 0
          %1244 = vperm.xlu0 %1243, %v1138
          %v1245 = vpop.permute.xlu0 %1244
          %1248 = vset.pattern.permute.xlu0 0
          %1249 = vperm.xlu0 %1248, %v1139
          %v1250 = vpop.permute.xlu0 %1249
          %1253 = vset.pattern.permute.xlu0 0
          %1254 = vperm.xlu0 %1253, %v1140
          %v1255 = vpop.permute.xlu0 %1254
          %1258 = vset.pattern.permute.xlu0 0
          %1259 = vperm.xlu0 %1258, %v1141
          %v1260 = vpop.permute.xlu0 %1259
          %1263 = vset.pattern.permute.xlu0 0
          %1264 = vperm.xlu0 %1263, %v1142
          %v1265 = vpop.permute.xlu0 %1264
          %1268 = vset.pattern.permute.xlu0 0
          %1269 = vperm.xlu0 %1268, %v1143
          %v1270 = vpop.permute.xlu0 %1269
          %1273 = vset.pattern.permute.xlu0 0
          %1274 = vperm.xlu0 %1273, %v1144
          %v1275 = vpop.permute.xlu0 %1274
          %1278 = vset.pattern.permute.xlu0 0
          %1279 = vperm.xlu0 %1278, %v1145
          %v1280 = vpop.permute.xlu0 %1279
          %1283 = vset.pattern.permute.xlu0 0
          %1284 = vperm.xlu0 %1283, %v1146
          %v1285 = vpop.permute.xlu0 %1284
          %1288 = vset.pattern.permute.xlu0 0
          %1289 = vperm.xlu0 %1288, %v1147
          %v1290 = vpop.permute.xlu0 %1289
          %1293 = vset.pattern.permute.xlu0 0
          %1294 = vperm.xlu0 %1293, %v1148
          %v1295 = vpop.permute.xlu0 %1294
          %1298 = vset.pattern.permute.xlu0 0
          %1299 = vperm.xlu0 %1298, %v1149
          %v1300 = vpop.permute.xlu0 %1299
          %1303 = vset.pattern.permute.xlu0 0
          %1304 = vperm.xlu0 %1303, %v1150
          %v1305 = vpop.permute.xlu0 %1304
          %1308 = vset.pattern.permute.xlu0 0
          %1309 = vperm.xlu0 %1308, %v1151
          %v1310 = vpop.permute.xlu0 %1309
          %vm1312 = vcmp.eq.f32.partialorder %v1155, %v1081
          %vm1313 = vcmp.eq.f32.partialorder %v1155, %v1085
          %vm1314 = vcmp.eq.f32.partialorder %v1160, %v1081
          %vm1315 = vcmp.eq.f32.partialorder %v1160, %v1085
          %vm1316 = vcmp.eq.f32.partialorder %v1165, %v1081
          %vm1317 = vcmp.eq.f32.partialorder %v1165, %v1085
          %vm1318 = vcmp.eq.f32.partialorder %v1170, %v1081
          %vm1319 = vcmp.eq.f32.partialorder %v1170, %v1085
          %vm1320 = vcmp.eq.f32.partialorder %v1175, %v1081
          %vm1321 = vcmp.eq.f32.partialorder %v1175, %v1085
          %vm1322 = vcmp.eq.f32.partialorder %v1180, %v1081
          %vm1323 = vcmp.eq.f32.partialorder %v1180, %v1085
          %vm1324 = vcmp.eq.f32.partialorder %v1185, %v1081
          %vm1325 = vcmp.eq.f32.partialorder %v1185, %v1085
          %vm1326 = vcmp.eq.f32.partialorder %v1190, %v1081
          %vm1327 = vcmp.eq.f32.partialorder %v1190, %v1085
          %vm1328 = vcmp.eq.f32.partialorder %v1195, %v1081
          %vm1329 = vcmp.eq.f32.partialorder %v1195, %v1085
          %vm1330 = vcmp.eq.f32.partialorder %v1200, %v1081
          %vm1331 = vcmp.eq.f32.partialorder %v1200, %v1085
          %vm1332 = vcmp.eq.f32.partialorder %v1205, %v1081
          %vm1333 = vcmp.eq.f32.partialorder %v1205, %v1085
          %vm1334 = vcmp.eq.f32.partialorder %v1210, %v1081
          %vm1335 = vcmp.eq.f32.partialorder %v1210, %v1085
          %vm1336 = vcmp.eq.f32.partialorder %v1215, %v1081
          %vm1337 = vcmp.eq.f32.partialorder %v1215, %v1085
          %vm1338 = vcmp.eq.f32.partialorder %v1220, %v1081
          %vm1339 = vcmp.eq.f32.partialorder %v1220, %v1085
          %vm1340 = vcmp.eq.f32.partialorder %v1225, %v1081
          %vm1341 = vcmp.eq.f32.partialorder %v1225, %v1085
          %vm1342 = vcmp.eq.f32.partialorder %v1230, %v1081
          %vm1343 = vcmp.eq.f32.partialorder %v1230, %v1085
          %vm1344 = vcmp.eq.f32.partialorder %v1235, %v1081
          %vm1345 = vcmp.eq.f32.partialorder %v1235, %v1085
          %vm1346 = vcmp.eq.f32.partialorder %v1240, %v1081
          %vm1347 = vcmp.eq.f32.partialorder %v1240, %v1085
          %vm1348 = vcmp.eq.f32.partialorder %v1245, %v1081
          %vm1349 = vcmp.eq.f32.partialorder %v1245, %v1085
          %vm1350 = vcmp.eq.f32.partialorder %v1250, %v1081
          %vm1351 = vcmp.eq.f32.partialorder %v1250, %v1085
          %vm1352 = vcmp.eq.f32.partialorder %v1255, %v1081
          %vm1353 = vcmp.eq.f32.partialorder %v1255, %v1085
          %vm1354 = vcmp.eq.f32.partialorder %v1260, %v1081
          %vm1355 = vcmp.eq.f32.partialorder %v1260, %v1085
          %vm1356 = vcmp.eq.f32.partialorder %v1265, %v1081
          %vm1357 = vcmp.eq.f32.partialorder %v1265, %v1085
          %vm1358 = vcmp.eq.f32.partialorder %v1270, %v1081
          %vm1359 = vcmp.eq.f32.partialorder %v1270, %v1085
          %vm1360 = vcmp.eq.f32.partialorder %v1275, %v1081
          %vm1361 = vcmp.eq.f32.partialorder %v1275, %v1085
          %vm1362 = vcmp.eq.f32.partialorder %v1280, %v1081
          %vm1363 = vcmp.eq.f32.partialorder %v1280, %v1085
          %vm1364 = vcmp.eq.f32.partialorder %v1285, %v1081
          %vm1365 = vcmp.eq.f32.partialorder %v1285, %v1085
          %vm1366 = vcmp.eq.f32.partialorder %v1290, %v1081
          %vm1367 = vcmp.eq.f32.partialorder %v1290, %v1085
          %vm1368 = vcmp.eq.f32.partialorder %v1295, %v1081
          %vm1369 = vcmp.eq.f32.partialorder %v1295, %v1085
          %vm1370 = vcmp.eq.f32.partialorder %v1300, %v1081
          %vm1371 = vcmp.eq.f32.partialorder %v1300, %v1085
          %vm1372 = vcmp.eq.f32.partialorder %v1305, %v1081
          %vm1373 = vcmp.eq.f32.partialorder %v1305, %v1085
          %vm1374 = vcmp.eq.f32.partialorder %v1310, %v1081
          %vm1375 = vcmp.eq.f32.partialorder %v1310, %v1085
          %v1376 = vsel %vm1312, 1, 0
          %v1377 = vsel %vm1313, 1, 0
          %v1378 = vsel %vm1314, 1, 0
          %v1379 = vsel %vm1315, 1, 0
          %v1380 = vsel %vm1316, 1, 0
          %v1381 = vsel %vm1317, 1, 0
          %v1382 = vsel %vm1318, 1, 0
          %v1383 = vsel %vm1319, 1, 0
          %v1384 = vsel %vm1320, 1, 0
          %v1385 = vsel %vm1321, 1, 0
          %v1386 = vsel %vm1322, 1, 0
          %v1387 = vsel %vm1323, 1, 0
          %v1388 = vsel %vm1324, 1, 0
          %v1389 = vsel %vm1325, 1, 0
          %v1390 = vsel %vm1326, 1, 0
          %v1391 = vsel %vm1327, 1, 0
          %v1392 = vsel %vm1328, 1, 0
          %v1393 = vsel %vm1329, 1, 0
          %v1394 = vsel %vm1330, 1, 0
          %v1395 = vsel %vm1331, 1, 0
          %v1396 = vsel %vm1332, 1, 0
          %v1397 = vsel %vm1333, 1, 0
          %v1398 = vsel %vm1334, 1, 0
          %v1399 = vsel %vm1335, 1, 0
          %v1400 = vsel %vm1336, 1, 0
          %v1401 = vsel %vm1337, 1, 0
          %v1402 = vsel %vm1338, 1, 0
          %v1403 = vsel %vm1339, 1, 0
          %v1404 = vsel %vm1340, 1, 0
          %v1405 = vsel %vm1341, 1, 0
          %v1406 = vsel %vm1342, 1, 0
          %v1407 = vsel %vm1343, 1, 0
          %v1408 = vsel %vm1344, 1, 0
          %v1409 = vsel %vm1345, 1, 0
          %v1410 = vsel %vm1346, 1, 0
          %v1411 = vsel %vm1347, 1, 0
          %v1412 = vsel %vm1348, 1, 0
          %v1413 = vsel %vm1349, 1, 0
          %v1414 = vsel %vm1350, 1, 0
          %v1415 = vsel %vm1351, 1, 0
          %v1416 = vsel %vm1352, 1, 0
          %v1417 = vsel %vm1353, 1, 0
          %v1418 = vsel %vm1354, 1, 0
          %v1419 = vsel %vm1355, 1, 0
          %v1420 = vsel %vm1356, 1, 0
          %v1421 = vsel %vm1357, 1, 0
          %v1422 = vsel %vm1358, 1, 0
          %v1423 = vsel %vm1359, 1, 0
          %v1424 = vsel %vm1360, 1, 0
          %v1425 = vsel %vm1361, 1, 0
          %v1426 = vsel %vm1362, 1, 0
          %v1427 = vsel %vm1363, 1, 0
          %v1428 = vsel %vm1364, 1, 0
          %v1429 = vsel %vm1365, 1, 0
          %v1430 = vsel %vm1366, 1, 0
          %v1431 = vsel %vm1367, 1, 0
          %v1432 = vsel %vm1368, 1, 0
          %v1433 = vsel %vm1369, 1, 0
          %v1434 = vsel %vm1370, 1, 0
          %v1435 = vsel %vm1371, 1, 0
          %v1436 = vsel %vm1372, 1, 0
          %v1437 = vsel %vm1373, 1, 0
          %v1438 = vsel %vm1374, 1, 0
          %v1439 = vsel %vm1375, 1, 0
          %v1440 = vcvt.s32.f32 %v1376
          %v1441 = vcvt.s32.f32 %v1377
          %v1442 = vcvt.s32.f32 %v1378
          %v1443 = vcvt.s32.f32 %v1379
          %v1444 = vcvt.s32.f32 %v1380
          %v1445 = vcvt.s32.f32 %v1381
          %v1446 = vcvt.s32.f32 %v1382
          %v1447 = vcvt.s32.f32 %v1383
          %v1448 = vcvt.s32.f32 %v1384
          %v1449 = vcvt.s32.f32 %v1385
          %v1450 = vcvt.s32.f32 %v1386
          %v1451 = vcvt.s32.f32 %v1387
          %v1452 = vcvt.s32.f32 %v1388
          %v1453 = vcvt.s32.f32 %v1389
          %v1454 = vcvt.s32.f32 %v1390
          %v1455 = vcvt.s32.f32 %v1391
          %v1456 = vcvt.s32.f32 %v1392
          %v1457 = vcvt.s32.f32 %v1393
          %v1458 = vcvt.s32.f32 %v1394
          %v1459 = vcvt.s32.f32 %v1395
          %v1460 = vcvt.s32.f32 %v1396
          %v1461 = vcvt.s32.f32 %v1397
          %v1462 = vcvt.s32.f32 %v1398
          %v1463 = vcvt.s32.f32 %v1399
          %v1464 = vcvt.s32.f32 %v1400
          %v1465 = vcvt.s32.f32 %v1401
          %v1466 = vcvt.s32.f32 %v1402
          %v1467 = vcvt.s32.f32 %v1403
          %v1468 = vcvt.s32.f32 %v1404
          %v1469 = vcvt.s32.f32 %v1405
          %v1470 = vcvt.s32.f32 %v1406
          %v1471 = vcvt.s32.f32 %v1407
          %v1472 = vcvt.s32.f32 %v1408
          %v1473 = vcvt.s32.f32 %v1409
          %v1474 = vcvt.s32.f32 %v1410
          %v1475 = vcvt.s32.f32 %v1411
          %v1476 = vcvt.s32.f32 %v1412
          %v1477 = vcvt.s32.f32 %v1413
          %v1478 = vcvt.s32.f32 %v1414
          %v1479 = vcvt.s32.f32 %v1415
          %v1480 = vcvt.s32.f32 %v1416
          %v1481 = vcvt.s32.f32 %v1417
          %v1482 = vcvt.s32.f32 %v1418
          %v1483 = vcvt.s32.f32 %v1419
          %v1484 = vcvt.s32.f32 %v1420
          %v1485 = vcvt.s32.f32 %v1421
          %v1486 = vcvt.s32.f32 %v1422
          %v1487 = vcvt.s32.f32 %v1423
          %v1488 = vcvt.s32.f32 %v1424
          %v1489 = vcvt.s32.f32 %v1425
          %v1490 = vcvt.s32.f32 %v1426
          %v1491 = vcvt.s32.f32 %v1427
          %v1492 = vcvt.s32.f32 %v1428
          %v1493 = vcvt.s32.f32 %v1429
          %v1494 = vcvt.s32.f32 %v1430
          %v1495 = vcvt.s32.f32 %v1431
          %v1496 = vcvt.s32.f32 %v1432
          %v1497 = vcvt.s32.f32 %v1433
          %v1498 = vcvt.s32.f32 %v1434
          %v1499 = vcvt.s32.f32 %v1435
          %v1500 = vcvt.s32.f32 %v1436
          %v1501 = vcvt.s32.f32 %v1437
          %v1502 = vcvt.s32.f32 %v1438
          %v1503 = vcvt.s32.f32 %v1439
          %v1504 = vmul.f32 %v960, %v1440
          %v1505 = vmul.f32 %v961, %v1441
          %v1506 = vmul.f32 %v962, %v1442
          %v1507 = vmul.f32 %v963, %v1443
          %v1508 = vmul.f32 %v964, %v1444
          %v1509 = vmul.f32 %v965, %v1445
          %v1510 = vmul.f32 %v966, %v1446
          %v1511 = vmul.f32 %v967, %v1447
          %v1512 = vmul.f32 %v968, %v1448
          %v1513 = vmul.f32 %v969, %v1449
          %v1514 = vmul.f32 %v970, %v1450
          %v1515 = vmul.f32 %v971, %v1451
          %v1516 = vmul.f32 %v972, %v1452
          %v1517 = vmul.f32 %v973, %v1453
          %v1518 = vmul.f32 %v974, %v1454
          %v1519 = vmul.f32 %v975, %v1455
          %v1520 = vmul.f32 %v976, %v1456
          %v1521 = vmul.f32 %v977, %v1457
          %v1522 = vmul.f32 %v978, %v1458
          %v1523 = vmul.f32 %v979, %v1459
          %v1524 = vmul.f32 %v980, %v1460
          %v1525 = vmul.f32 %v981, %v1461
          %v1526 = vmul.f32 %v982, %v1462
          %v1527 = vmul.f32 %v983, %v1463
          %v1528 = vmul.f32 %v984, %v1464
          %v1529 = vmul.f32 %v985, %v1465
          %v1530 = vmul.f32 %v986, %v1466
          %v1531 = vmul.f32 %v987, %v1467
          %v1532 = vmul.f32 %v988, %v1468
          %v1533 = vmul.f32 %v989, %v1469
          %v1534 = vmul.f32 %v990, %v1470
          %v1535 = vmul.f32 %v991, %v1471
          %v1536 = vmul.f32 %v992, %v1472
          %v1537 = vmul.f32 %v993, %v1473
          %v1538 = vmul.f32 %v994, %v1474
          %v1539 = vmul.f32 %v995, %v1475
          %v1540 = vmul.f32 %v996, %v1476
          %v1541 = vmul.f32 %v997, %v1477
          %v1542 = vmul.f32 %v998, %v1478
          %v1543 = vmul.f32 %v999, %v1479
          %v1544 = vmul.f32 %v1000, %v1480
          %v1545 = vmul.f32 %v1001, %v1481
          %v1546 = vmul.f32 %v1002, %v1482
          %v1547 = vmul.f32 %v1003, %v1483
          %v1548 = vmul.f32 %v1004, %v1484
          %v1549 = vmul.f32 %v1005, %v1485
          %v1550 = vmul.f32 %v1006, %v1486
          %v1551 = vmul.f32 %v1007, %v1487
          %v1552 = vmul.f32 %v1008, %v1488
          %v1553 = vmul.f32 %v1009, %v1489
          %v1554 = vmul.f32 %v1010, %v1490
          %v1555 = vmul.f32 %v1011, %v1491
          %v1556 = vmul.f32 %v1012, %v1492
          %v1557 = vmul.f32 %v1013, %v1493
          %v1558 = vmul.f32 %v1014, %v1494
          %v1559 = vmul.f32 %v1015, %v1495
          %v1560 = vmul.f32 %v1016, %v1496
          %v1561 = vmul.f32 %v1017, %v1497
          %v1562 = vmul.f32 %v1018, %v1498
          %v1563 = vmul.f32 %v1019, %v1499
          %v1564 = vmul.f32 %v1020, %v1500
          %v1565 = vmul.f32 %v1021, %v1501
          %v1566 = vmul.f32 %v1022, %v1502
          %v1567 = vmul.f32 %v1023, %v1503
          %v1568 = vadd.f32 %v1504, %v1506
          %v1569 = vadd.f32 %v1568, %v1508
          %v1570 = vadd.f32 %v1569, %v1510
          %v1571 = vadd.f32 %v1570, %v1512
          %v1572 = vadd.f32 %v1571, %v1514
          %v1573 = vadd.f32 %v1572, %v1516
          %v1574 = vadd.f32 %v1573, %v1518
          %v1575 = vadd.f32 %v1574, %v1520
          %v1576 = vadd.f32 %v1575, %v1522
          %v1577 = vadd.f32 %v1576, %v1524
          %v1578 = vadd.f32 %v1577, %v1526
          %v1579 = vadd.f32 %v1578, %v1528
          %v1580 = vadd.f32 %v1579, %v1530
          %v1581 = vadd.f32 %v1580, %v1532
          %v1582 = vadd.f32 %v1581, %v1534
          %v1583 = vadd.f32 %v1582, %v1536
          %v1584 = vadd.f32 %v1583, %v1538
          %v1585 = vadd.f32 %v1584, %v1540
          %v1586 = vadd.f32 %v1585, %v1542
          %v1587 = vadd.f32 %v1586, %v1544
          %v1588 = vadd.f32 %v1587, %v1546
          %v1589 = vadd.f32 %v1588, %v1548
          %v1590 = vadd.f32 %v1589, %v1550
          %v1591 = vadd.f32 %v1590, %v1552
          %v1592 = vadd.f32 %v1591, %v1554
          %v1593 = vadd.f32 %v1592, %v1556
          %v1594 = vadd.f32 %v1593, %v1558
          %v1595 = vadd.f32 %v1594, %v1560
          %v1596 = vadd.f32 %v1595, %v1562
          %v1597 = vadd.f32 %v1596, %v1564
          %v1598 = vadd.f32 %v1597, %v1566
          %v1599 = vrot.slane %v1598, 4
          %v1600 = vadd.f32 %v1598, %v1599
          %v1601 = vrot.slane %v1600, 2
          %v1602 = vadd.f32 %v1600, %v1601
          %v1603 = vrot.slane %v1602, 1
          %v1604 = vadd.f32 %v1602, %v1603
          %v1605 = vadd.f32 %v1505, %v1507
          %v1606 = vadd.f32 %v1605, %v1509
          %v1607 = vadd.f32 %v1606, %v1511
          %v1608 = vadd.f32 %v1607, %v1513
          %v1609 = vadd.f32 %v1608, %v1515
          %v1610 = vadd.f32 %v1609, %v1517
          %v1611 = vadd.f32 %v1610, %v1519
          %v1612 = vadd.f32 %v1611, %v1521
          %v1613 = vadd.f32 %v1612, %v1523
          %v1614 = vadd.f32 %v1613, %v1525
          %v1615 = vadd.f32 %v1614, %v1527
          %v1616 = vadd.f32 %v1615, %v1529
          %v1617 = vadd.f32 %v1616, %v1531
          %v1618 = vadd.f32 %v1617, %v1533
          %v1619 = vadd.f32 %v1618, %v1535
          %v1620 = vadd.f32 %v1619, %v1537
          %v1621 = vadd.f32 %v1620, %v1539
          %v1622 = vadd.f32 %v1621, %v1541
          %v1623 = vadd.f32 %v1622, %v1543
          %v1624 = vadd.f32 %v1623, %v1545
          %v1625 = vadd.f32 %v1624, %v1547
          %v1626 = vadd.f32 %v1625, %v1549
          %v1627 = vadd.f32 %v1626, %v1551
          %v1628 = vadd.f32 %v1627, %v1553
          %v1629 = vadd.f32 %v1628, %v1555
          %v1630 = vadd.f32 %v1629, %v1557
          %v1631 = vadd.f32 %v1630, %v1559
          %v1632 = vadd.f32 %v1631, %v1561
          %v1633 = vadd.f32 %v1632, %v1563
          %v1634 = vadd.f32 %v1633, %v1565
          %v1635 = vadd.f32 %v1634, %v1567
          %v1636 = vrot.slane %v1635, 4
          %v1637 = vadd.f32 %v1635, %v1636
          %v1638 = vrot.slane %v1637, 2
          %v1639 = vadd.f32 %v1637, %v1638
          %v1640 = vrot.slane %v1639, 1
          %v1641 = vadd.f32 %v1639, %v1640
          %v1642 = vadd.f32 %v1604, %v1641
          %1643 = vadd.xlane.f32.xlu0 %v1642
          %v1644 = vpop.xlane.xlu0 %1643
          %v1645 = vsub.f32 %v1042, %v1644
          %v1646 = vmul.f32 %v1071, %v1644
          %v1647 = vmul.f32 %v1646, 1.5318628e-05
          %v1648 = vmax.f32 %v1647, 0.0
          %v1649 = vmin.f32 %v1648, 1.0
          %v1650 = vmul.f32 %v1075, %v1645
          %v1651 = vmul.f32 %v1650, 1.5318628e-05
          %v1652 = vmax.f32 %v1651, 0.0
          %v1653 = vmin.f32 %v1652, 1.0
          %v1654 = vld [vmem:[%s230] sm:$0xff]
          %v1655 = vld [vmem:[%s230 + $0x8] sm:$0xff]
          %v1656 = vld [vmem:[%s230 + $0x10] sm:$0xff]
          %v1657 = vld [vmem:[%s230 + $0x18] sm:$0xff]
          %v1658 = vld [vmem:[%s230 + $0x20] sm:$0xff]
          %v1659 = vld [vmem:[%s230 + $0x28] sm:$0xff]
          %v1660 = vld [vmem:[%s230 + $0x30] sm:$0xff]
          %v1661 = vld [vmem:[%s230 + $0x38] sm:$0xff]
          %v1662 = vld [vmem:[%s230 + $0x40] sm:$0xff]
          %v1663 = vld [vmem:[%s230 + $0x48] sm:$0xff]
          %v1664 = vld [vmem:[%s230 + $0x50] sm:$0xff]
          %v1665 = vld [vmem:[%s230 + $0x58] sm:$0xff]
          %v1666 = vld [vmem:[%s230 + $0x60] sm:$0xff]
          %v1667 = vld [vmem:[%s230 + $0x68] sm:$0xff]
          %v1668 = vld [vmem:[%s230 + $0x70] sm:$0xff]
          %v1669 = vld [vmem:[%s230 + $0x78] sm:$0xff]
          %v1670 = vld [vmem:[%s230 + $0x80] sm:$0xff]
          %v1671 = vld [vmem:[%s230 + $0x88] sm:$0xff]
          %v1672 = vld [vmem:[%s230 + $0x90] sm:$0xff]
          %v1673 = vld [vmem:[%s230 + $0x98] sm:$0xff]
          %v1674 = vld [vmem:[%s230 + $0xa0] sm:$0xff]
          %v1675 = vld [vmem:[%s230 + $0xa8] sm:$0xff]
          %v1676 = vld [vmem:[%s230 + $0xb0] sm:$0xff]
          %v1677 = vld [vmem:[%s230 + $0xb8] sm:$0xff]
          %v1678 = vld [vmem:[%s230 + $0xc0] sm:$0xff]
          %v1679 = vld [vmem:[%s230 + $0xc8] sm:$0xff]
          %v1680 = vld [vmem:[%s230 + $0xd0] sm:$0xff]
          %v1681 = vld [vmem:[%s230 + $0xd8] sm:$0xff]
          %v1682 = vld [vmem:[%s230 + $0xe0] sm:$0xff]
          %v1683 = vld [vmem:[%s230 + $0xe8] sm:$0xff]
          %v1684 = vld [vmem:[%s230 + $0xf0] sm:$0xff]
          %v1685 = vld [vmem:[%s230 + $0xf8] sm:$0xff]
          %v1686 = vld [vmem:[%s230 + $0x100] sm:$0xff]
          %v1687 = vld [vmem:[%s230 + $0x108] sm:$0xff]
          %v1688 = vld [vmem:[%s230 + $0x110] sm:$0xff]
          %v1689 = vld [vmem:[%s230 + $0x118] sm:$0xff]
          %v1690 = vld [vmem:[%s230 + $0x120] sm:$0xff]
          %v1691 = vld [vmem:[%s230 + $0x128] sm:$0xff]
          %v1692 = vld [vmem:[%s230 + $0x130] sm:$0xff]
          %v1693 = vld [vmem:[%s230 + $0x138] sm:$0xff]
          %v1694 = vld [vmem:[%s230 + $0x140] sm:$0xff]
          %v1695 = vld [vmem:[%s230 + $0x148] sm:$0xff]
          %v1696 = vld [vmem:[%s230 + $0x150] sm:$0xff]
          %v1697 = vld [vmem:[%s230 + $0x158] sm:$0xff]
          %v1698 = vld [vmem:[%s230 + $0x160] sm:$0xff]
          %v1699 = vld [vmem:[%s230 + $0x168] sm:$0xff]
          %v1700 = vld [vmem:[%s230 + $0x170] sm:$0xff]
          %v1701 = vld [vmem:[%s230 + $0x178] sm:$0xff]
          %v1702 = vld [vmem:[%s230 + $0x180] sm:$0xff]
          %v1703 = vld [vmem:[%s230 + $0x188] sm:$0xff]
          %v1704 = vld [vmem:[%s230 + $0x190] sm:$0xff]
          %v1705 = vld [vmem:[%s230 + $0x198] sm:$0xff]
          %v1706 = vld [vmem:[%s230 + $0x1a0] sm:$0xff]
          %v1707 = vld [vmem:[%s230 + $0x1a8] sm:$0xff]
          %v1708 = vld [vmem:[%s230 + $0x1b0] sm:$0xff]
          %v1709 = vld [vmem:[%s230 + $0x1b8] sm:$0xff]
          %v1710 = vld [vmem:[%s230 + $0x1c0] sm:$0xff]
          %v1711 = vld [vmem:[%s230 + $0x1c8] sm:$0xff]
          %v1712 = vld [vmem:[%s230 + $0x1d0] sm:$0xff]
          %v1713 = vld [vmem:[%s230 + $0x1d8] sm:$0xff]
          %v1714 = vld [vmem:[%s230 + $0x1e0] sm:$0xff]
          %v1715 = vld [vmem:[%s230 + $0x1e8] sm:$0xff]
          %v1716 = vld [vmem:[%s230 + $0x1f0] sm:$0xff]
          %v1717 = vld [vmem:[%s230 + $0x1f8] sm:$0xff]
          %v1718 = vld [vmem:[%s230 + $0x200] sm:$0xff]
          %v1719 = vld [vmem:[%s230 + $0x208] sm:$0xff]
          %v1720 = vld [vmem:[%s230 + $0x210] sm:$0xff]
          %v1721 = vld [vmem:[%s230 + $0x218] sm:$0xff]
          %v1722 = vld [vmem:[%s230 + $0x220] sm:$0xff]
          %v1723 = vld [vmem:[%s230 + $0x228] sm:$0xff]
          %v1724 = vld [vmem:[%s230 + $0x230] sm:$0xff]
          %v1725 = vld [vmem:[%s230 + $0x238] sm:$0xff]
          %v1726 = vld [vmem:[%s230 + $0x240] sm:$0xff]
          %v1727 = vld [vmem:[%s230 + $0x248] sm:$0xff]
          %v1728 = vld [vmem:[%s230 + $0x250] sm:$0xff]
          %v1729 = vld [vmem:[%s230 + $0x258] sm:$0xff]
          %v1730 = vld [vmem:[%s230 + $0x260] sm:$0xff]
          %v1731 = vld [vmem:[%s230 + $0x268] sm:$0xff]
          %v1732 = vld [vmem:[%s230 + $0x270] sm:$0xff]
          %v1733 = vld [vmem:[%s230 + $0x278] sm:$0xff]
          %v1734 = vld [vmem:[%s230 + $0x280] sm:$0xff]
          %v1735 = vld [vmem:[%s230 + $0x288] sm:$0xff]
          %v1736 = vld [vmem:[%s230 + $0x290] sm:$0xff]
          %v1737 = vld [vmem:[%s230 + $0x298] sm:$0xff]
          %v1738 = vld [vmem:[%s230 + $0x2a0] sm:$0xff]
          %v1739 = vld [vmem:[%s230 + $0x2a8] sm:$0xff]
          %v1740 = vld [vmem:[%s230 + $0x2b0] sm:$0xff]
          %v1741 = vld [vmem:[%s230 + $0x2b8] sm:$0xff]
          %v1742 = vld [vmem:[%s230 + $0x2c0] sm:$0xff]
          %v1743 = vld [vmem:[%s230 + $0x2c8] sm:$0xff]
          %v1744 = vld [vmem:[%s230 + $0x2d0] sm:$0xff]
          %v1745 = vld [vmem:[%s230 + $0x2d8] sm:$0xff]
          %v1746 = vld [vmem:[%s230 + $0x2e0] sm:$0xff]
          %v1747 = vld [vmem:[%s230 + $0x2e8] sm:$0xff]
          %v1748 = vld [vmem:[%s230 + $0x2f0] sm:$0xff]
          %v1749 = vld [vmem:[%s230 + $0x2f8] sm:$0xff]
          %v1750 = vld [vmem:[%s230 + $0x300] sm:$0xff]
          %v1751 = vld [vmem:[%s230 + $0x308] sm:$0xff]
          %v1752 = vld [vmem:[%s230 + $0x310] sm:$0xff]
          %v1753 = vld [vmem:[%s230 + $0x318] sm:$0xff]
          %v1754 = vld [vmem:[%s230 + $0x320] sm:$0xff]
          %v1755 = vld [vmem:[%s230 + $0x328] sm:$0xff]
          %v1756 = vld [vmem:[%s230 + $0x330] sm:$0xff]
          %v1757 = vld [vmem:[%s230 + $0x338] sm:$0xff]
          %v1758 = vld [vmem:[%s230 + $0x340] sm:$0xff]
          %v1759 = vld [vmem:[%s230 + $0x348] sm:$0xff]
          %v1760 = vld [vmem:[%s230 + $0x350] sm:$0xff]
          %v1761 = vld [vmem:[%s230 + $0x358] sm:$0xff]
          %v1762 = vld [vmem:[%s230 + $0x360] sm:$0xff]
          %v1763 = vld [vmem:[%s230 + $0x368] sm:$0xff]
          %v1764 = vld [vmem:[%s230 + $0x370] sm:$0xff]
          %v1765 = vld [vmem:[%s230 + $0x378] sm:$0xff]
          %v1766 = vld [vmem:[%s230 + $0x380] sm:$0xff]
          %v1767 = vld [vmem:[%s230 + $0x388] sm:$0xff]
          %v1768 = vld [vmem:[%s230 + $0x390] sm:$0xff]
          %v1769 = vld [vmem:[%s230 + $0x398] sm:$0xff]
          %v1770 = vld [vmem:[%s230 + $0x3a0] sm:$0xff]
          %v1771 = vld [vmem:[%s230 + $0x3a8] sm:$0xff]
          %v1772 = vld [vmem:[%s230 + $0x3b0] sm:$0xff]
          %v1773 = vld [vmem:[%s230 + $0x3b8] sm:$0xff]
          %v1774 = vld [vmem:[%s230 + $0x3c0] sm:$0xff]
          %v1775 = vld [vmem:[%s230 + $0x3c8] sm:$0xff]
          %v1776 = vld [vmem:[%s230 + $0x3d0] sm:$0xff]
          %v1777 = vld [vmem:[%s230 + $0x3d8] sm:$0xff]
          %v1778 = vld [vmem:[%s230 + $0x3e0] sm:$0xff]
          %v1779 = vld [vmem:[%s230 + $0x3e8] sm:$0xff]
          %v1780 = vld [vmem:[%s230 + $0x3f0] sm:$0xff]
          %v1781 = vld [vmem:[%s230 + $0x3f8] sm:$0xff]
          %v1782 = vlaneseq
          %v1783 = vshrl.u32 %v1782, 7
          %v1784 = vsub.s32 0, %v1783
          %v1785 = vrot.slane %v1059, %v1784
          %v1786 = vlaneseq
          %v1787 = vshrl.u32 %v1786, 7
          %v1788 = vsub.s32 0, %v1787
          %v1789 = vrot.slane %v1067, %v1788
          %v1790 = vsel %vm1312, %v1785, %v1789
          %v1791 = vsel %vm1313, %v1785, %v1789
          %v1792 = vsel %vm1314, %v1785, %v1789
          %v1793 = vsel %vm1315, %v1785, %v1789
          %v1794 = vsel %vm1316, %v1785, %v1789
          %v1795 = vsel %vm1317, %v1785, %v1789
          %v1796 = vsel %vm1318, %v1785, %v1789
          %v1797 = vsel %vm1319, %v1785, %v1789
          %v1798 = vsel %vm1320, %v1785, %v1789
          %v1799 = vsel %vm1321, %v1785, %v1789
          %v1800 = vsel %vm1322, %v1785, %v1789
          %v1801 = vsel %vm1323, %v1785, %v1789
          %v1802 = vsel %vm1324, %v1785, %v1789
          %v1803 = vsel %vm1325, %v1785, %v1789
          %v1804 = vsel %vm1326, %v1785, %v1789
          %v1805 = vsel %vm1327, %v1785, %v1789
          %v1806 = vsel %vm1328, %v1785, %v1789
          %v1807 = vsel %vm1329, %v1785, %v1789
          %v1808 = vsel %vm1330, %v1785, %v1789
          %v1809 = vsel %vm1331, %v1785, %v1789
          %v1810 = vsel %vm1332, %v1785, %v1789
          %v1811 = vsel %vm1333, %v1785, %v1789
          %v1812 = vsel %vm1334, %v1785, %v1789
          %v1813 = vsel %vm1335, %v1785, %v1789
          %v1814 = vsel %vm1336, %v1785, %v1789
          %v1815 = vsel %vm1337, %v1785, %v1789
          %v1816 = vsel %vm1338, %v1785, %v1789
          %v1817 = vsel %vm1339, %v1785, %v1789
          %v1818 = vsel %vm1340, %v1785, %v1789
          %v1819 = vsel %vm1341, %v1785, %v1789
          %v1820 = vsel %vm1342, %v1785, %v1789
          %v1821 = vsel %vm1343, %v1785, %v1789
          %v1822 = vsel %vm1344, %v1785, %v1789
          %v1823 = vsel %vm1345, %v1785, %v1789
          %v1824 = vsel %vm1346, %v1785, %v1789
          %v1825 = vsel %vm1347, %v1785, %v1789
          %v1826 = vsel %vm1348, %v1785, %v1789
          %v1827 = vsel %vm1349, %v1785, %v1789
          %v1828 = vsel %vm1350, %v1785, %v1789
          %v1829 = vsel %vm1351, %v1785, %v1789
          %v1830 = vsel %vm1352, %v1785, %v1789
          %v1831 = vsel %vm1353, %v1785, %v1789
          %v1832 = vsel %vm1354, %v1785, %v1789
          %v1833 = vsel %vm1355, %v1785, %v1789
          %v1834 = vsel %vm1356, %v1785, %v1789
          %v1835 = vsel %vm1357, %v1785, %v1789
          %v1836 = vsel %vm1358, %v1785, %v1789
          %v1837 = vsel %vm1359, %v1785, %v1789
          %v1838 = vsel %vm1360, %v1785, %v1789
          %v1839 = vsel %vm1361, %v1785, %v1789
          %v1840 = vsel %vm1362, %v1785, %v1789
          %v1841 = vsel %vm1363, %v1785, %v1789
          %v1842 = vsel %vm1364, %v1785, %v1789
          %v1843 = vsel %vm1365, %v1785, %v1789
          %v1844 = vsel %vm1366, %v1785, %v1789
          %v1845 = vsel %vm1367, %v1785, %v1789
          %v1846 = vsel %vm1368, %v1785, %v1789
          %v1847 = vsel %vm1369, %v1785, %v1789
          %v1848 = vsel %vm1370, %v1785, %v1789
          %v1849 = vsel %vm1371, %v1785, %v1789
          %v1850 = vsel %vm1372, %v1785, %v1789
          %v1851 = vsel %vm1373, %v1785, %v1789
          %v1852 = vsel %vm1374, %v1785, %v1789
          %v1853 = vsel %vm1375, %v1785, %v1789
          %vm1854 = vcmp.ge.f32.partialorder %v1654, %v1790
          %vm1855 = vcmp.ge.f32.partialorder %v1655, %v1791
          %vm1856 = vcmp.ge.f32.partialorder %v1656, %v1792
          %vm1857 = vcmp.ge.f32.partialorder %v1657, %v1793
          %vm1858 = vcmp.ge.f32.partialorder %v1658, %v1794
          %vm1859 = vcmp.ge.f32.partialorder %v1659, %v1795
          %vm1860 = vcmp.ge.f32.partialorder %v1660, %v1796
          %vm1861 = vcmp.ge.f32.partialorder %v1661, %v1797
          %vm1862 = vcmp.ge.f32.partialorder %v1662, %v1798
          %vm1863 = vcmp.ge.f32.partialorder %v1663, %v1799
          %vm1864 = vcmp.ge.f32.partialorder %v1664, %v1800
          %vm1865 = vcmp.ge.f32.partialorder %v1665, %v1801
          %vm1866 = vcmp.ge.f32.partialorder %v1666, %v1802
          %vm1867 = vcmp.ge.f32.partialorder %v1667, %v1803
          %vm1868 = vcmp.ge.f32.partialorder %v1668, %v1804
          %vm1869 = vcmp.ge.f32.partialorder %v1669, %v1805
          %vm1870 = vcmp.ge.f32.partialorder %v1670, %v1806
          %vm1871 = vcmp.ge.f32.partialorder %v1671, %v1807
          %vm1872 = vcmp.ge.f32.partialorder %v1672, %v1808
          %vm1873 = vcmp.ge.f32.partialorder %v1673, %v1809
          %vm1874 = vcmp.ge.f32.partialorder %v1674, %v1810
          %vm1875 = vcmp.ge.f32.partialorder %v1675, %v1811
          %vm1876 = vcmp.ge.f32.partialorder %v1676, %v1812
          %vm1877 = vcmp.ge.f32.partialorder %v1677, %v1813
          %vm1878 = vcmp.ge.f32.partialorder %v1678, %v1814
          %vm1879 = vcmp.ge.f32.partialorder %v1679, %v1815
          %vm1880 = vcmp.ge.f32.partialorder %v1680, %v1816
          %vm1881 = vcmp.ge.f32.partialorder %v1681, %v1817
          %vm1882 = vcmp.ge.f32.partialorder %v1682, %v1818
          %vm1883 = vcmp.ge.f32.partialorder %v1683, %v1819
          %vm1884 = vcmp.ge.f32.partialorder %v1684, %v1820
          %vm1885 = vcmp.ge.f32.partialorder %v1685, %v1821
          %vm1886 = vcmp.ge.f32.partialorder %v1686, %v1822
          %vm1887 = vcmp.ge.f32.partialorder %v1687, %v1823
          %vm1888 = vcmp.ge.f32.partialorder %v1688, %v1824
          %vm1889 = vcmp.ge.f32.partialorder %v1689, %v1825
          %vm1890 = vcmp.ge.f32.partialorder %v1690, %v1826
          %vm1891 = vcmp.ge.f32.partialorder %v1691, %v1827
          %vm1892 = vcmp.ge.f32.partialorder %v1692, %v1828
          %vm1893 = vcmp.ge.f32.partialorder %v1693, %v1829
          %vm1894 = vcmp.ge.f32.partialorder %v1694, %v1830
          %vm1895 = vcmp.ge.f32.partialorder %v1695, %v1831
          %vm1896 = vcmp.ge.f32.partialorder %v1696, %v1832
          %vm1897 = vcmp.ge.f32.partialorder %v1697, %v1833
          %vm1898 = vcmp.ge.f32.partialorder %v1698, %v1834
          %vm1899 = vcmp.ge.f32.partialorder %v1699, %v1835
          %vm1900 = vcmp.ge.f32.partialorder %v1700, %v1836
          %vm1901 = vcmp.ge.f32.partialorder %v1701, %v1837
          %vm1902 = vcmp.ge.f32.partialorder %v1702, %v1838
          %vm1903 = vcmp.ge.f32.partialorder %v1703, %v1839
          %vm1904 = vcmp.ge.f32.partialorder %v1704, %v1840
          %vm1905 = vcmp.ge.f32.partialorder %v1705, %v1841
          %vm1906 = vcmp.ge.f32.partialorder %v1706, %v1842
          %vm1907 = vcmp.ge.f32.partialorder %v1707, %v1843
          %vm1908 = vcmp.ge.f32.partialorder %v1708, %v1844
          %vm1909 = vcmp.ge.f32.partialorder %v1709, %v1845
          %vm1910 = vcmp.ge.f32.partialorder %v1710, %v1846
          %vm1911 = vcmp.ge.f32.partialorder %v1711, %v1847
          %vm1912 = vcmp.ge.f32.partialorder %v1712, %v1848
          %vm1913 = vcmp.ge.f32.partialorder %v1713, %v1849
          %vm1914 = vcmp.ge.f32.partialorder %v1714, %v1850
          %vm1915 = vcmp.ge.f32.partialorder %v1715, %v1851
          %vm1916 = vcmp.ge.f32.partialorder %v1716, %v1852
          %vm1917 = vcmp.ge.f32.partialorder %v1717, %v1853
          %v1918 = vsel %vm1854, 1, 0
          %v1919 = vsel %vm1855, 1, 0
          %v1920 = vsel %vm1856, 1, 0
          %v1921 = vsel %vm1857, 1, 0
          %v1922 = vsel %vm1858, 1, 0
          %v1923 = vsel %vm1859, 1, 0
          %v1924 = vsel %vm1860, 1, 0
          %v1925 = vsel %vm1861, 1, 0
          %v1926 = vsel %vm1862, 1, 0
          %v1927 = vsel %vm1863, 1, 0
          %v1928 = vsel %vm1864, 1, 0
          %v1929 = vsel %vm1865, 1, 0
          %v1930 = vsel %vm1866, 1, 0
          %v1931 = vsel %vm1867, 1, 0
          %v1932 = vsel %vm1868, 1, 0
          %v1933 = vsel %vm1869, 1, 0
          %v1934 = vsel %vm1870, 1, 0
          %v1935 = vsel %vm1871, 1, 0
          %v1936 = vsel %vm1872, 1, 0
          %v1937 = vsel %vm1873, 1, 0
          %v1938 = vsel %vm1874, 1, 0
          %v1939 = vsel %vm1875, 1, 0
          %v1940 = vsel %vm1876, 1, 0
          %v1941 = vsel %vm1877, 1, 0
          %v1942 = vsel %vm1878, 1, 0
          %v1943 = vsel %vm1879, 1, 0
          %v1944 = vsel %vm1880, 1, 0
          %v1945 = vsel %vm1881, 1, 0
          %v1946 = vsel %vm1882, 1, 0
          %v1947 = vsel %vm1883, 1, 0
          %v1948 = vsel %vm1884, 1, 0
          %v1949 = vsel %vm1885, 1, 0
          %v1950 = vsel %vm1886, 1, 0
          %v1951 = vsel %vm1887, 1, 0
          %v1952 = vsel %vm1888, 1, 0
          %v1953 = vsel %vm1889, 1, 0
          %v1954 = vsel %vm1890, 1, 0
          %v1955 = vsel %vm1891, 1, 0
          %v1956 = vsel %vm1892, 1, 0
          %v1957 = vsel %vm1893, 1, 0
          %v1958 = vsel %vm1894, 1, 0
          %v1959 = vsel %vm1895, 1, 0
          %v1960 = vsel %vm1896, 1, 0
          %v1961 = vsel %vm1897, 1, 0
          %v1962 = vsel %vm1898, 1, 0
          %v1963 = vsel %vm1899, 1, 0
          %v1964 = vsel %vm1900, 1, 0
          %v1965 = vsel %vm1901, 1, 0
          %v1966 = vsel %vm1902, 1, 0
          %v1967 = vsel %vm1903, 1, 0
          %v1968 = vsel %vm1904, 1, 0
          %v1969 = vsel %vm1905, 1, 0
          %v1970 = vsel %vm1906, 1, 0
          %v1971 = vsel %vm1907, 1, 0
          %v1972 = vsel %vm1908, 1, 0
          %v1973 = vsel %vm1909, 1, 0
          %v1974 = vsel %vm1910, 1, 0
          %v1975 = vsel %vm1911, 1, 0
          %v1976 = vsel %vm1912, 1, 0
          %v1977 = vsel %vm1913, 1, 0
          %v1978 = vsel %vm1914, 1, 0
          %v1979 = vsel %vm1915, 1, 0
          %v1980 = vsel %vm1916, 1, 0
          %v1981 = vsel %vm1917, 1, 0
          %v1982 = vcvt.s32.f32 %v1918
          %v1983 = vcvt.s32.f32 %v1919
          %v1984 = vcvt.s32.f32 %v1920
          %v1985 = vcvt.s32.f32 %v1921
          %v1986 = vcvt.s32.f32 %v1922
          %v1987 = vcvt.s32.f32 %v1923
          %v1988 = vcvt.s32.f32 %v1924
          %v1989 = vcvt.s32.f32 %v1925
          %v1990 = vcvt.s32.f32 %v1926
          %v1991 = vcvt.s32.f32 %v1927
          %v1992 = vcvt.s32.f32 %v1928
          %v1993 = vcvt.s32.f32 %v1929
          %v1994 = vcvt.s32.f32 %v1930
          %v1995 = vcvt.s32.f32 %v1931
          %v1996 = vcvt.s32.f32 %v1932
          %v1997 = vcvt.s32.f32 %v1933
          %v1998 = vcvt.s32.f32 %v1934
          %v1999 = vcvt.s32.f32 %v1935
          %v2000 = vcvt.s32.f32 %v1936
          %v2001 = vcvt.s32.f32 %v1937
          %v2002 = vcvt.s32.f32 %v1938
          %v2003 = vcvt.s32.f32 %v1939
          %v2004 = vcvt.s32.f32 %v1940
          %v2005 = vcvt.s32.f32 %v1941
          %v2006 = vcvt.s32.f32 %v1942
          %v2007 = vcvt.s32.f32 %v1943
          %v2008 = vcvt.s32.f32 %v1944
          %v2009 = vcvt.s32.f32 %v1945
          %v2010 = vcvt.s32.f32 %v1946
          %v2011 = vcvt.s32.f32 %v1947
          %v2012 = vcvt.s32.f32 %v1948
          %v2013 = vcvt.s32.f32 %v1949
          %v2014 = vcvt.s32.f32 %v1950
          %v2015 = vcvt.s32.f32 %v1951
          %v2016 = vcvt.s32.f32 %v1952
          %v2017 = vcvt.s32.f32 %v1953
          %v2018 = vcvt.s32.f32 %v1954
          %v2019 = vcvt.s32.f32 %v1955
          %v2020 = vcvt.s32.f32 %v1956
          %v2021 = vcvt.s32.f32 %v1957
          %v2022 = vcvt.s32.f32 %v1958
          %v2023 = vcvt.s32.f32 %v1959
          %v2024 = vcvt.s32.f32 %v1960
          %v2025 = vcvt.s32.f32 %v1961
          %v2026 = vcvt.s32.f32 %v1962
          %v2027 = vcvt.s32.f32 %v1963
          %v2028 = vcvt.s32.f32 %v1964
          %v2029 = vcvt.s32.f32 %v1965
          %v2030 = vcvt.s32.f32 %v1966
          %v2031 = vcvt.s32.f32 %v1967
          %v2032 = vcvt.s32.f32 %v1968
          %v2033 = vcvt.s32.f32 %v1969
          %v2034 = vcvt.s32.f32 %v1970
          %v2035 = vcvt.s32.f32 %v1971
          %v2036 = vcvt.s32.f32 %v1972
          %v2037 = vcvt.s32.f32 %v1973
          %v2038 = vcvt.s32.f32 %v1974
          %v2039 = vcvt.s32.f32 %v1975
          %v2040 = vcvt.s32.f32 %v1976
          %v2041 = vcvt.s32.f32 %v1977
          %v2042 = vcvt.s32.f32 %v1978
          %v2043 = vcvt.s32.f32 %v1979
          %v2044 = vcvt.s32.f32 %v1980
          %v2045 = vcvt.s32.f32 %v1981
          %v2046 = vlaneseq
          %v2047 = vshrl.u32 %v2046, 7
          %v2048 = vsub.s32 0, %v2047
          %v2049 = vrot.slane %v1649, %v2048
          %v2050 = vlaneseq
          %v2051 = vshrl.u32 %v2050, 7
          %v2052 = vsub.s32 0, %v2051
          %v2053 = vrot.slane %v1653, %v2052
          %v2054 = vsel %vm1312, %v2049, %v2053
          %v2055 = vsel %vm1313, %v2049, %v2053
          %v2056 = vsel %vm1314, %v2049, %v2053
          %v2057 = vsel %vm1315, %v2049, %v2053
          %v2058 = vsel %vm1316, %v2049, %v2053
          %v2059 = vsel %vm1317, %v2049, %v2053
          %v2060 = vsel %vm1318, %v2049, %v2053
          %v2061 = vsel %vm1319, %v2049, %v2053
          %v2062 = vsel %vm1320, %v2049, %v2053
          %v2063 = vsel %vm1321, %v2049, %v2053
          %v2064 = vsel %vm1322, %v2049, %v2053
          %v2065 = vsel %vm1323, %v2049, %v2053
          %v2066 = vsel %vm1324, %v2049, %v2053
          %v2067 = vsel %vm1325, %v2049, %v2053
          %v2068 = vsel %vm1326, %v2049, %v2053
          %v2069 = vsel %vm1327, %v2049, %v2053
          %v2070 = vsel %vm1328, %v2049, %v2053
          %v2071 = vsel %vm1329, %v2049, %v2053
          %v2072 = vsel %vm1330, %v2049, %v2053
          %v2073 = vsel %vm1331, %v2049, %v2053
          %v2074 = vsel %vm1332, %v2049, %v2053
          %v2075 = vsel %vm1333, %v2049, %v2053
          %v2076 = vsel %vm1334, %v2049, %v2053
          %v2077 = vsel %vm1335, %v2049, %v2053
          %v2078 = vsel %vm1336, %v2049, %v2053
          %v2079 = vsel %vm1337, %v2049, %v2053
          %v2080 = vsel %vm1338, %v2049, %v2053
          %v2081 = vsel %vm1339, %v2049, %v2053
          %v2082 = vsel %vm1340, %v2049, %v2053
          %v2083 = vsel %vm1341, %v2049, %v2053
          %v2084 = vsel %vm1342, %v2049, %v2053
          %v2085 = vsel %vm1343, %v2049, %v2053
          %v2086 = vsel %vm1344, %v2049, %v2053
          %v2087 = vsel %vm1345, %v2049, %v2053
          %v2088 = vsel %vm1346, %v2049, %v2053
          %v2089 = vsel %vm1347, %v2049, %v2053
          %v2090 = vsel %vm1348, %v2049, %v2053
          %v2091 = vsel %vm1349, %v2049, %v2053
          %v2092 = vsel %vm1350, %v2049, %v2053
          %v2093 = vsel %vm1351, %v2049, %v2053
          %v2094 = vsel %vm1352, %v2049, %v2053
          %v2095 = vsel %vm1353, %v2049, %v2053
          %v2096 = vsel %vm1354, %v2049, %v2053
          %v2097 = vsel %vm1355, %v2049, %v2053
          %v2098 = vsel %vm1356, %v2049, %v2053
          %v2099 = vsel %vm1357, %v2049, %v2053
          %v2100 = vsel %vm1358, %v2049, %v2053
          %v2101 = vsel %vm1359, %v2049, %v2053
          %v2102 = vsel %vm1360, %v2049, %v2053
          %v2103 = vsel %vm1361, %v2049, %v2053
          %v2104 = vsel %vm1362, %v2049, %v2053
          %v2105 = vsel %vm1363, %v2049, %v2053
          %v2106 = vsel %vm1364, %v2049, %v2053
          %v2107 = vsel %vm1365, %v2049, %v2053
          %v2108 = vsel %vm1366, %v2049, %v2053
          %v2109 = vsel %vm1367, %v2049, %v2053
          %v2110 = vsel %vm1368, %v2049, %v2053
          %v2111 = vsel %vm1369, %v2049, %v2053
          %v2112 = vsel %vm1370, %v2049, %v2053
          %v2113 = vsel %vm1371, %v2049, %v2053
          %v2114 = vsel %vm1372, %v2049, %v2053
          %v2115 = vsel %vm1373, %v2049, %v2053
          %v2116 = vsel %vm1374, %v2049, %v2053
          %v2117 = vsel %vm1375, %v2049, %v2053
          %vm2118 = vcmp.lt.f32.partialorder %v1718, %v2054
          %vm2119 = vcmp.lt.f32.partialorder %v1719, %v2055
          %vm2120 = vcmp.lt.f32.partialorder %v1720, %v2056
          %vm2121 = vcmp.lt.f32.partialorder %v1721, %v2057
          %vm2122 = vcmp.lt.f32.partialorder %v1722, %v2058
          %vm2123 = vcmp.lt.f32.partialorder %v1723, %v2059
          %vm2124 = vcmp.lt.f32.partialorder %v1724, %v2060
          %vm2125 = vcmp.lt.f32.partialorder %v1725, %v2061
          %vm2126 = vcmp.lt.f32.partialorder %v1726, %v2062
          %vm2127 = vcmp.lt.f32.partialorder %v1727, %v2063
          %vm2128 = vcmp.lt.f32.partialorder %v1728, %v2064
          %vm2129 = vcmp.lt.f32.partialorder %v1729, %v2065
          %vm2130 = vcmp.lt.f32.partialorder %v1730, %v2066
          %vm2131 = vcmp.lt.f32.partialorder %v1731, %v2067
          %vm2132 = vcmp.lt.f32.partialorder %v1732, %v2068
          %vm2133 = vcmp.lt.f32.partialorder %v1733, %v2069
          %vm2134 = vcmp.lt.f32.partialorder %v1734, %v2070
          %vm2135 = vcmp.lt.f32.partialorder %v1735, %v2071
          %vm2136 = vcmp.lt.f32.partialorder %v1736, %v2072
          %vm2137 = vcmp.lt.f32.partialorder %v1737, %v2073
          %vm2138 = vcmp.lt.f32.partialorder %v1738, %v2074
          %vm2139 = vcmp.lt.f32.partialorder %v1739, %v2075
          %vm2140 = vcmp.lt.f32.partialorder %v1740, %v2076
          %vm2141 = vcmp.lt.f32.partialorder %v1741, %v2077
          %vm2142 = vcmp.lt.f32.partialorder %v1742, %v2078
          %vm2143 = vcmp.lt.f32.partialorder %v1743, %v2079
          %vm2144 = vcmp.lt.f32.partialorder %v1744, %v2080
          %vm2145 = vcmp.lt.f32.partialorder %v1745, %v2081
          %vm2146 = vcmp.lt.f32.partialorder %v1746, %v2082
          %vm2147 = vcmp.lt.f32.partialorder %v1747, %v2083
          %vm2148 = vcmp.lt.f32.partialorder %v1748, %v2084
          %vm2149 = vcmp.lt.f32.partialorder %v1749, %v2085
          %vm2150 = vcmp.lt.f32.partialorder %v1750, %v2086
          %vm2151 = vcmp.lt.f32.partialorder %v1751, %v2087
          %vm2152 = vcmp.lt.f32.partialorder %v1752, %v2088
          %vm2153 = vcmp.lt.f32.partialorder %v1753, %v2089
          %vm2154 = vcmp.lt.f32.partialorder %v1754, %v2090
          %vm2155 = vcmp.lt.f32.partialorder %v1755, %v2091
          %vm2156 = vcmp.lt.f32.partialorder %v1756, %v2092
          %vm2157 = vcmp.lt.f32.partialorder %v1757, %v2093
          %vm2158 = vcmp.lt.f32.partialorder %v1758, %v2094
          %vm2159 = vcmp.lt.f32.partialorder %v1759, %v2095
          %vm2160 = vcmp.lt.f32.partialorder %v1760, %v2096
          %vm2161 = vcmp.lt.f32.partialorder %v1761, %v2097
          %vm2162 = vcmp.lt.f32.partialorder %v1762, %v2098
          %vm2163 = vcmp.lt.f32.partialorder %v1763, %v2099
          %vm2164 = vcmp.lt.f32.partialorder %v1764, %v2100
          %vm2165 = vcmp.lt.f32.partialorder %v1765, %v2101
          %vm2166 = vcmp.lt.f32.partialorder %v1766, %v2102
          %vm2167 = vcmp.lt.f32.partialorder %v1767, %v2103
          %vm2168 = vcmp.lt.f32.partialorder %v1768, %v2104
          %vm2169 = vcmp.lt.f32.partialorder %v1769, %v2105
          %vm2170 = vcmp.lt.f32.partialorder %v1770, %v2106
          %vm2171 = vcmp.lt.f32.partialorder %v1771, %v2107
          %vm2172 = vcmp.lt.f32.partialorder %v1772, %v2108
          %vm2173 = vcmp.lt.f32.partialorder %v1773, %v2109
          %vm2174 = vcmp.lt.f32.partialorder %v1774, %v2110
          %vm2175 = vcmp.lt.f32.partialorder %v1775, %v2111
          %vm2176 = vcmp.lt.f32.partialorder %v1776, %v2112
          %vm2177 = vcmp.lt.f32.partialorder %v1777, %v2113
          %vm2178 = vcmp.lt.f32.partialorder %v1778, %v2114
          %vm2179 = vcmp.lt.f32.partialorder %v1779, %v2115
          %vm2180 = vcmp.lt.f32.partialorder %v1780, %v2116
          %vm2181 = vcmp.lt.f32.partialorder %v1781, %v2117
          %v2182 = vsel %vm2118, 1, 0
          %v2183 = vsel %vm2119, 1, 0
          %v2184 = vsel %vm2120, 1, 0
          %v2185 = vsel %vm2121, 1, 0
          %v2186 = vsel %vm2122, 1, 0
          %v2187 = vsel %vm2123, 1, 0
          %v2188 = vsel %vm2124, 1, 0
          %v2189 = vsel %vm2125, 1, 0
          %v2190 = vsel %vm2126, 1, 0
          %v2191 = vsel %vm2127, 1, 0
          %v2192 = vsel %vm2128, 1, 0
          %v2193 = vsel %vm2129, 1, 0
          %v2194 = vsel %vm2130, 1, 0
          %v2195 = vsel %vm2131, 1, 0
          %v2196 = vsel %vm2132, 1, 0
          %v2197 = vsel %vm2133, 1, 0
          %v2198 = vsel %vm2134, 1, 0
          %v2199 = vsel %vm2135, 1, 0
          %v2200 = vsel %vm2136, 1, 0
          %v2201 = vsel %vm2137, 1, 0
          %v2202 = vsel %vm2138, 1, 0
          %v2203 = vsel %vm2139, 1, 0
          %v2204 = vsel %vm2140, 1, 0
          %v2205 = vsel %vm2141, 1, 0
          %v2206 = vsel %vm2142, 1, 0
          %v2207 = vsel %vm2143, 1, 0
          %v2208 = vsel %vm2144, 1, 0
          %v2209 = vsel %vm2145, 1, 0
          %v2210 = vsel %vm2146, 1, 0
          %v2211 = vsel %vm2147, 1, 0
          %v2212 = vsel %vm2148, 1, 0
          %v2213 = vsel %vm2149, 1, 0
          %v2214 = vsel %vm2150, 1, 0
          %v2215 = vsel %vm2151, 1, 0
          %v2216 = vsel %vm2152, 1, 0
          %v2217 = vsel %vm2153, 1, 0
          %v2218 = vsel %vm2154, 1, 0
          %v2219 = vsel %vm2155, 1, 0
          %v2220 = vsel %vm2156, 1, 0
          %v2221 = vsel %vm2157, 1, 0
          %v2222 = vsel %vm2158, 1, 0
          %v2223 = vsel %vm2159, 1, 0
          %v2224 = vsel %vm2160, 1, 0
          %v2225 = vsel %vm2161, 1, 0
          %v2226 = vsel %vm2162, 1, 0
          %v2227 = vsel %vm2163, 1, 0
          %v2228 = vsel %vm2164, 1, 0
          %v2229 = vsel %vm2165, 1, 0
          %v2230 = vsel %vm2166, 1, 0
          %v2231 = vsel %vm2167, 1, 0
          %v2232 = vsel %vm2168, 1, 0
          %v2233 = vsel %vm2169, 1, 0
          %v2234 = vsel %vm2170, 1, 0
          %v2235 = vsel %vm2171, 1, 0
          %v2236 = vsel %vm2172, 1, 0
          %v2237 = vsel %vm2173, 1, 0
          %v2238 = vsel %vm2174, 1, 0
          %v2239 = vsel %vm2175, 1, 0
          %v2240 = vsel %vm2176, 1, 0
          %v2241 = vsel %vm2177, 1, 0
          %v2242 = vsel %vm2178, 1, 0
          %v2243 = vsel %vm2179, 1, 0
          %v2244 = vsel %vm2180, 1, 0
          %v2245 = vsel %vm2181, 1, 0
          %v2246 = vcvt.s32.f32 %v2182
          %v2247 = vcvt.s32.f32 %v2183
          %v2248 = vcvt.s32.f32 %v2184
          %v2249 = vcvt.s32.f32 %v2185
          %v2250 = vcvt.s32.f32 %v2186
          %v2251 = vcvt.s32.f32 %v2187
          %v2252 = vcvt.s32.f32 %v2188
          %v2253 = vcvt.s32.f32 %v2189
          %v2254 = vcvt.s32.f32 %v2190
          %v2255 = vcvt.s32.f32 %v2191
          %v2256 = vcvt.s32.f32 %v2192
          %v2257 = vcvt.s32.f32 %v2193
          %v2258 = vcvt.s32.f32 %v2194
          %v2259 = vcvt.s32.f32 %v2195
          %v2260 = vcvt.s32.f32 %v2196
          %v2261 = vcvt.s32.f32 %v2197
          %v2262 = vcvt.s32.f32 %v2198
          %v2263 = vcvt.s32.f32 %v2199
          %v2264 = vcvt.s32.f32 %v2200
          %v2265 = vcvt.s32.f32 %v2201
          %v2266 = vcvt.s32.f32 %v2202
          %v2267 = vcvt.s32.f32 %v2203
          %v2268 = vcvt.s32.f32 %v2204
          %v2269 = vcvt.s32.f32 %v2205
          %v2270 = vcvt.s32.f32 %v2206
          %v2271 = vcvt.s32.f32 %v2207
          %v2272 = vcvt.s32.f32 %v2208
          %v2273 = vcvt.s32.f32 %v2209
          %v2274 = vcvt.s32.f32 %v2210
          %v2275 = vcvt.s32.f32 %v2211
          %v2276 = vcvt.s32.f32 %v2212
          %v2277 = vcvt.s32.f32 %v2213
          %v2278 = vcvt.s32.f32 %v2214
          %v2279 = vcvt.s32.f32 %v2215
          %v2280 = vcvt.s32.f32 %v2216
          %v2281 = vcvt.s32.f32 %v2217
          %v2282 = vcvt.s32.f32 %v2218
          %v2283 = vcvt.s32.f32 %v2219
          %v2284 = vcvt.s32.f32 %v2220
          %v2285 = vcvt.s32.f32 %v2221
          %v2286 = vcvt.s32.f32 %v2222
          %v2287 = vcvt.s32.f32 %v2223
          %v2288 = vcvt.s32.f32 %v2224
          %v2289 = vcvt.s32.f32 %v2225
          %v2290 = vcvt.s32.f32 %v2226
          %v2291 = vcvt.s32.f32 %v2227
          %v2292 = vcvt.s32.f32 %v2228
          %v2293 = vcvt.s32.f32 %v2229
          %v2294 = vcvt.s32.f32 %v2230
          %v2295 = vcvt.s32.f32 %v2231
          %v2296 = vcvt.s32.f32 %v2232
          %v2297 = vcvt.s32.f32 %v2233
          %v2298 = vcvt.s32.f32 %v2234
          %v2299 = vcvt.s32.f32 %v2235
          %v2300 = vcvt.s32.f32 %v2236
          %v2301 = vcvt.s32.f32 %v2237
          %v2302 = vcvt.s32.f32 %v2238
          %v2303 = vcvt.s32.f32 %v2239
          %v2304 = vcvt.s32.f32 %v2240
          %v2305 = vcvt.s32.f32 %v2241
          %v2306 = vcvt.s32.f32 %v2242
          %v2307 = vcvt.s32.f32 %v2243
          %v2308 = vcvt.s32.f32 %v2244
          %v2309 = vcvt.s32.f32 %v2245
          %v2310 = vlaneseq
          %v2311 = vshrl.u32 %v2310, 7
          %v2312 = vadd.s32 %v2311, 8
          %v2313 = vadd.s32 %v2311, 16
          %v2314 = vadd.s32 %v2311, 24
          %v2315 = vadd.s32 %v2311, 32
          %v2316 = vadd.s32 %v2311, 40
          %v2317 = vadd.s32 %v2311, 48
          %v2318 = vadd.s32 %v2311, 56
          %v2319 = vadd.s32 %v2311, 64
          %v2320 = vadd.s32 %v2311, 72
          %v2321 = vadd.s32 %v2311, 80
          %v2322 = vadd.s32 %v2311, 88
          %v2323 = vadd.s32 %v2311, 96
          %v2324 = vadd.s32 %v2311, 104
          %v2325 = vadd.s32 %v2311, 112
          %v2326 = vadd.s32 %v2311, 120
          %v2327 = vadd.s32 %v2311, 128
          %v2328 = vadd.s32 %v2311, 136
          %v2329 = vadd.s32 %v2311, 144
          %v2330 = vadd.s32 %v2311, 152
          %v2331 = vadd.s32 %v2311, 160
          %v2332 = vadd.s32 %v2311, 168
          %v2333 = vadd.s32 %v2311, 176
          %v2334 = vadd.s32 %v2311, 184
          %v2335 = vadd.s32 %v2311, 192
          %v2336 = vadd.s32 %v2311, 200
          %v2337 = vadd.s32 %v2311, 208
          %v2338 = vadd.s32 %v2311, 216
          %v2339 = vadd.s32 %v2311, 224
          %v2340 = vadd.s32 %v2311, 232
          %v2341 = vadd.s32 %v2311, 240
          %v2342 = vadd.s32 %v2311, 248
          %v2343 = vlaneseq
          %v2344 = vand.u32 %v2343, 127
          %v2345 = vadd.s32 %v2344, 128
          %vm2346 = vcmp.lt.s32.totalorder %v2311, %v2344
          %vm2347 = vcmp.lt.s32.totalorder %v2311, %v2345
          %vm2348 = vcmp.lt.s32.totalorder %v2312, %v2344
          %vm2349 = vcmp.lt.s32.totalorder %v2312, %v2345
          %vm2350 = vcmp.lt.s32.totalorder %v2313, %v2344
          %vm2351 = vcmp.lt.s32.totalorder %v2313, %v2345
          %vm2352 = vcmp.lt.s32.totalorder %v2314, %v2344
          %vm2353 = vcmp.lt.s32.totalorder %v2314, %v2345
          %vm2354 = vcmp.lt.s32.totalorder %v2315, %v2344
          %vm2355 = vcmp.lt.s32.totalorder %v2315, %v2345
          %vm2356 = vcmp.lt.s32.totalorder %v2316, %v2344
          %vm2357 = vcmp.lt.s32.totalorder %v2316, %v2345
          %vm2358 = vcmp.lt.s32.totalorder %v2317, %v2344
          %vm2359 = vcmp.lt.s32.totalorder %v2317, %v2345
          %vm2360 = vcmp.lt.s32.totalorder %v2318, %v2344
          %vm2361 = vcmp.lt.s32.totalorder %v2318, %v2345
          %vm2362 = vcmp.lt.s32.totalorder %v2319, %v2344
          %vm2363 = vcmp.lt.s32.totalorder %v2319, %v2345
          %vm2364 = vcmp.lt.s32.totalorder %v2320, %v2344
          %vm2365 = vcmp.lt.s32.totalorder %v2320, %v2345
          %vm2366 = vcmp.lt.s32.totalorder %v2321, %v2344
          %vm2367 = vcmp.lt.s32.totalorder %v2321, %v2345
          %vm2368 = vcmp.lt.s32.totalorder %v2322, %v2344
          %vm2369 = vcmp.lt.s32.totalorder %v2322, %v2345
          %vm2370 = vcmp.lt.s32.totalorder %v2323, %v2344
          %vm2371 = vcmp.lt.s32.totalorder %v2323, %v2345
          %vm2372 = vcmp.lt.s32.totalorder %v2324, %v2344
          %vm2373 = vcmp.lt.s32.totalorder %v2324, %v2345
          %vm2374 = vcmp.lt.s32.totalorder %v2325, %v2344
          %vm2375 = vcmp.lt.s32.totalorder %v2325, %v2345
          %vm2376 = vcmp.lt.s32.totalorder %v2326, %v2344
          %vm2377 = vcmp.lt.s32.totalorder %v2326, %v2345
          %vm2378 = vcmp.lt.s32.totalorder %v2327, %v2344
          %vm2379 = vcmp.lt.s32.totalorder %v2327, %v2345
          %vm2380 = vcmp.lt.s32.totalorder %v2328, %v2344
          %vm2381 = vcmp.lt.s32.totalorder %v2328, %v2345
          %vm2382 = vcmp.lt.s32.totalorder %v2329, %v2344
          %vm2383 = vcmp.lt.s32.totalorder %v2329, %v2345
          %vm2384 = vcmp.lt.s32.totalorder %v2330, %v2344
          %vm2385 = vcmp.lt.s32.totalorder %v2330, %v2345
          %vm2386 = vcmp.lt.s32.totalorder %v2331, %v2344
          %vm2387 = vcmp.lt.s32.totalorder %v2331, %v2345
          %vm2388 = vcmp.lt.s32.totalorder %v2332, %v2344
          %vm2389 = vcmp.lt.s32.totalorder %v2332, %v2345
          %vm2390 = vcmp.lt.s32.totalorder %v2333, %v2344
          %vm2391 = vcmp.lt.s32.totalorder %v2333, %v2345
          %vm2392 = vcmp.lt.s32.totalorder %v2334, %v2344
          %vm2393 = vcmp.lt.s32.totalorder %v2334, %v2345
          %vm2394 = vcmp.lt.s32.totalorder %v2335, %v2344
          %vm2395 = vcmp.lt.s32.totalorder %v2335, %v2345
          %vm2396 = vcmp.lt.s32.totalorder %v2336, %v2344
          %vm2397 = vcmp.lt.s32.totalorder %v2336, %v2345
          %vm2398 = vcmp.lt.s32.totalorder %v2337, %v2344
          %vm2399 = vcmp.lt.s32.totalorder %v2337, %v2345
          %vm2400 = vcmp.lt.s32.totalorder %v2338, %v2344
          %vm2401 = vcmp.lt.s32.totalorder %v2338, %v2345
          %vm2402 = vcmp.lt.s32.totalorder %v2339, %v2344
          %vm2403 = vcmp.lt.s32.totalorder %v2339, %v2345
          %vm2404 = vcmp.lt.s32.totalorder %v2340, %v2344
          %vm2405 = vcmp.lt.s32.totalorder %v2340, %v2345
          %vm2406 = vcmp.lt.s32.totalorder %v2341, %v2344
          %vm2407 = vcmp.lt.s32.totalorder %v2341, %v2345
          %vm2408 = vcmp.lt.s32.totalorder %v2342, %v2344
          %vm2409 = vcmp.lt.s32.totalorder %v2342, %v2345
          %v2410 = vsel %vm2346, 1, 0
          %v2411 = vsel %vm2347, 1, 0
          %v2412 = vsel %vm2348, 1, 0
          %v2413 = vsel %vm2349, 1, 0
          %v2414 = vsel %vm2350, 1, 0
          %v2415 = vsel %vm2351, 1, 0
          %v2416 = vsel %vm2352, 1, 0
          %v2417 = vsel %vm2353, 1, 0
          %v2418 = vsel %vm2354, 1, 0
          %v2419 = vsel %vm2355, 1, 0
          %v2420 = vsel %vm2356, 1, 0
          %v2421 = vsel %vm2357, 1, 0
          %v2422 = vsel %vm2358, 1, 0
          %v2423 = vsel %vm2359, 1, 0
          %v2424 = vsel %vm2360, 1, 0
          %v2425 = vsel %vm2361, 1, 0
          %v2426 = vsel %vm2362, 1, 0
          %v2427 = vsel %vm2363, 1, 0
          %v2428 = vsel %vm2364, 1, 0
          %v2429 = vsel %vm2365, 1, 0
          %v2430 = vsel %vm2366, 1, 0
          %v2431 = vsel %vm2367, 1, 0
          %v2432 = vsel %vm2368, 1, 0
          %v2433 = vsel %vm2369, 1, 0
          %v2434 = vsel %vm2370, 1, 0
          %v2435 = vsel %vm2371, 1, 0
          %v2436 = vsel %vm2372, 1, 0
          %v2437 = vsel %vm2373, 1, 0
          %v2438 = vsel %vm2374, 1, 0
          %v2439 = vsel %vm2375, 1, 0
          %v2440 = vsel %vm2376, 1, 0
          %v2441 = vsel %vm2377, 1, 0
          %v2442 = vsel %vm2378, 1, 0
          %v2443 = vsel %vm2379, 1, 0
          %v2444 = vsel %vm2380, 1, 0
          %v2445 = vsel %vm2381, 1, 0
          %v2446 = vsel %vm2382, 1, 0
          %v2447 = vsel %vm2383, 1, 0
          %v2448 = vsel %vm2384, 1, 0
          %v2449 = vsel %vm2385, 1, 0
          %v2450 = vsel %vm2386, 1, 0
          %v2451 = vsel %vm2387, 1, 0
          %v2452 = vsel %vm2388, 1, 0
          %v2453 = vsel %vm2389, 1, 0
          %v2454 = vsel %vm2390, 1, 0
          %v2455 = vsel %vm2391, 1, 0
          %v2456 = vsel %vm2392, 1, 0
          %v2457 = vsel %vm2393, 1, 0
          %v2458 = vsel %vm2394, 1, 0
          %v2459 = vsel %vm2395, 1, 0
          %v2460 = vsel %vm2396, 1, 0
          %v2461 = vsel %vm2397, 1, 0
          %v2462 = vsel %vm2398, 1, 0
          %v2463 = vsel %vm2399, 1, 0
          %v2464 = vsel %vm2400, 1, 0
          %v2465 = vsel %vm2401, 1, 0
          %v2466 = vsel %vm2402, 1, 0
          %v2467 = vsel %vm2403, 1, 0
          %v2468 = vsel %vm2404, 1, 0
          %v2469 = vsel %vm2405, 1, 0
          %v2470 = vsel %vm2406, 1, 0
          %v2471 = vsel %vm2407, 1, 0
          %v2472 = vsel %vm2408, 1, 0
          %v2473 = vsel %vm2409, 1, 0
          %v2474 = vcvt.s32.f32 %v2410
          %v2475 = vcvt.s32.f32 %v2411
          %v2476 = vcvt.s32.f32 %v2412
          %v2477 = vcvt.s32.f32 %v2413
          %v2478 = vcvt.s32.f32 %v2414
          %v2479 = vcvt.s32.f32 %v2415
          %v2480 = vcvt.s32.f32 %v2416
          %v2481 = vcvt.s32.f32 %v2417
          %v2482 = vcvt.s32.f32 %v2418
          %v2483 = vcvt.s32.f32 %v2419
          %v2484 = vcvt.s32.f32 %v2420
          %v2485 = vcvt.s32.f32 %v2421
          %v2486 = vcvt.s32.f32 %v2422
          %v2487 = vcvt.s32.f32 %v2423
          %v2488 = vcvt.s32.f32 %v2424
          %v2489 = vcvt.s32.f32 %v2425
          %v2490 = vcvt.s32.f32 %v2426
          %v2491 = vcvt.s32.f32 %v2427
          %v2492 = vcvt.s32.f32 %v2428
          %v2493 = vcvt.s32.f32 %v2429
          %v2494 = vcvt.s32.f32 %v2430
          %v2495 = vcvt.s32.f32 %v2431
          %v2496 = vcvt.s32.f32 %v2432
          %v2497 = vcvt.s32.f32 %v2433
          %v2498 = vcvt.s32.f32 %v2434
          %v2499 = vcvt.s32.f32 %v2435
          %v2500 = vcvt.s32.f32 %v2436
          %v2501 = vcvt.s32.f32 %v2437
          %v2502 = vcvt.s32.f32 %v2438
          %v2503 = vcvt.s32.f32 %v2439
          %v2504 = vcvt.s32.f32 %v2440
          %v2505 = vcvt.s32.f32 %v2441
          %v2506 = vcvt.s32.f32 %v2442
          %v2507 = vcvt.s32.f32 %v2443
          %v2508 = vcvt.s32.f32 %v2444
          %v2509 = vcvt.s32.f32 %v2445
          %v2510 = vcvt.s32.f32 %v2446
          %v2511 = vcvt.s32.f32 %v2447
          %v2512 = vcvt.s32.f32 %v2448
          %v2513 = vcvt.s32.f32 %v2449
          %v2514 = vcvt.s32.f32 %v2450
          %v2515 = vcvt.s32.f32 %v2451
          %v2516 = vcvt.s32.f32 %v2452
          %v2517 = vcvt.s32.f32 %v2453
          %v2518 = vcvt.s32.f32 %v2454
          %v2519 = vcvt.s32.f32 %v2455
          %v2520 = vcvt.s32.f32 %v2456
          %v2521 = vcvt.s32.f32 %v2457
          %v2522 = vcvt.s32.f32 %v2458
          %v2523 = vcvt.s32.f32 %v2459
          %v2524 = vcvt.s32.f32 %v2460
          %v2525 = vcvt.s32.f32 %v2461
          %v2526 = vcvt.s32.f32 %v2462
          %v2527 = vcvt.s32.f32 %v2463
          %v2528 = vcvt.s32.f32 %v2464
          %v2529 = vcvt.s32.f32 %v2465
          %v2530 = vcvt.s32.f32 %v2466
          %v2531 = vcvt.s32.f32 %v2467
          %v2532 = vcvt.s32.f32 %v2468
          %v2533 = vcvt.s32.f32 %v2469
          %v2534 = vcvt.s32.f32 %v2470
          %v2535 = vcvt.s32.f32 %v2471
          %v2536 = vcvt.s32.f32 %v2472
          %v2537 = vcvt.s32.f32 %v2473
          %v2538 = vmul.f32 %v960, %v1982
          %v2539 = vmul.f32 %v961, %v1983
          %v2540 = vmul.f32 %v962, %v1984
          %v2541 = vmul.f32 %v963, %v1985
          %v2542 = vmul.f32 %v964, %v1986
          %v2543 = vmul.f32 %v965, %v1987
          %v2544 = vmul.f32 %v966, %v1988
          %v2545 = vmul.f32 %v967, %v1989
          %v2546 = vmul.f32 %v968, %v1990
          %v2547 = vmul.f32 %v969, %v1991
          %v2548 = vmul.f32 %v970, %v1992
          %v2549 = vmul.f32 %v971, %v1993
          %v2550 = vmul.f32 %v972, %v1994
          %v2551 = vmul.f32 %v973, %v1995
          %v2552 = vmul.f32 %v974, %v1996
          %v2553 = vmul.f32 %v975, %v1997
          %v2554 = vmul.f32 %v976, %v1998
          %v2555 = vmul.f32 %v977, %v1999
          %v2556 = vmul.f32 %v978, %v2000
          %v2557 = vmul.f32 %v979, %v2001
          %v2558 = vmul.f32 %v980, %v2002
          %v2559 = vmul.f32 %v981, %v2003
          %v2560 = vmul.f32 %v982, %v2004
          %v2561 = vmul.f32 %v983, %v2005
          %v2562 = vmul.f32 %v984, %v2006
          %v2563 = vmul.f32 %v985, %v2007
          %v2564 = vmul.f32 %v986, %v2008
          %v2565 = vmul.f32 %v987, %v2009
          %v2566 = vmul.f32 %v988, %v2010
          %v2567 = vmul.f32 %v989, %v2011
          %v2568 = vmul.f32 %v990, %v2012
          %v2569 = vmul.f32 %v991, %v2013
          %v2570 = vmul.f32 %v992, %v2014
          %v2571 = vmul.f32 %v993, %v2015
          %v2572 = vmul.f32 %v994, %v2016
          %v2573 = vmul.f32 %v995, %v2017
          %v2574 = vmul.f32 %v996, %v2018
          %v2575 = vmul.f32 %v997, %v2019
          %v2576 = vmul.f32 %v998, %v2020
          %v2577 = vmul.f32 %v999, %v2021
          %v2578 = vmul.f32 %v1000, %v2022
          %v2579 = vmul.f32 %v1001, %v2023
          %v2580 = vmul.f32 %v1002, %v2024
          %v2581 = vmul.f32 %v1003, %v2025
          %v2582 = vmul.f32 %v1004, %v2026
          %v2583 = vmul.f32 %v1005, %v2027
          %v2584 = vmul.f32 %v1006, %v2028
          %v2585 = vmul.f32 %v1007, %v2029
          %v2586 = vmul.f32 %v1008, %v2030
          %v2587 = vmul.f32 %v1009, %v2031
          %v2588 = vmul.f32 %v1010, %v2032
          %v2589 = vmul.f32 %v1011, %v2033
          %v2590 = vmul.f32 %v1012, %v2034
          %v2591 = vmul.f32 %v1013, %v2035
          %v2592 = vmul.f32 %v1014, %v2036
          %v2593 = vmul.f32 %v1015, %v2037
          %v2594 = vmul.f32 %v1016, %v2038
          %v2595 = vmul.f32 %v1017, %v2039
          %v2596 = vmul.f32 %v1018, %v2040
          %v2597 = vmul.f32 %v1019, %v2041
          %v2598 = vmul.f32 %v1020, %v2042
          %v2599 = vmul.f32 %v1021, %v2043
          %v2600 = vmul.f32 %v1022, %v2044
          %v2601 = vmul.f32 %v1023, %v2045
          %v2602 = vadd.f32 %v2538, %v2246
          %v2603 = vadd.f32 %v2539, %v2247
          %v2604 = vadd.f32 %v2540, %v2248
          %v2605 = vadd.f32 %v2541, %v2249
          %v2606 = vadd.f32 %v2542, %v2250
          %v2607 = vadd.f32 %v2543, %v2251
          %v2608 = vadd.f32 %v2544, %v2252
          %v2609 = vadd.f32 %v2545, %v2253
          %v2610 = vadd.f32 %v2546, %v2254
          %v2611 = vadd.f32 %v2547, %v2255
          %v2612 = vadd.f32 %v2548, %v2256
          %v2613 = vadd.f32 %v2549, %v2257
          %v2614 = vadd.f32 %v2550, %v2258
          %v2615 = vadd.f32 %v2551, %v2259
          %v2616 = vadd.f32 %v2552, %v2260
          %v2617 = vadd.f32 %v2553, %v2261
          %v2618 = vadd.f32 %v2554, %v2262
          %v2619 = vadd.f32 %v2555, %v2263
          %v2620 = vadd.f32 %v2556, %v2264
          %v2621 = vadd.f32 %v2557, %v2265
          %v2622 = vadd.f32 %v2558, %v2266
          %v2623 = vadd.f32 %v2559, %v2267
          %v2624 = vadd.f32 %v2560, %v2268
          %v2625 = vadd.f32 %v2561, %v2269
          %v2626 = vadd.f32 %v2562, %v2270
          %v2627 = vadd.f32 %v2563, %v2271
          %v2628 = vadd.f32 %v2564, %v2272
          %v2629 = vadd.f32 %v2565, %v2273
          %v2630 = vadd.f32 %v2566, %v2274
          %v2631 = vadd.f32 %v2567, %v2275
          %v2632 = vadd.f32 %v2568, %v2276
          %v2633 = vadd.f32 %v2569, %v2277
          %v2634 = vadd.f32 %v2570, %v2278
          %v2635 = vadd.f32 %v2571, %v2279
          %v2636 = vadd.f32 %v2572, %v2280
          %v2637 = vadd.f32 %v2573, %v2281
          %v2638 = vadd.f32 %v2574, %v2282
          %v2639 = vadd.f32 %v2575, %v2283
          %v2640 = vadd.f32 %v2576, %v2284
          %v2641 = vadd.f32 %v2577, %v2285
          %v2642 = vadd.f32 %v2578, %v2286
          %v2643 = vadd.f32 %v2579, %v2287
          %v2644 = vadd.f32 %v2580, %v2288
          %v2645 = vadd.f32 %v2581, %v2289
          %v2646 = vadd.f32 %v2582, %v2290
          %v2647 = vadd.f32 %v2583, %v2291
          %v2648 = vadd.f32 %v2584, %v2292
          %v2649 = vadd.f32 %v2585, %v2293
          %v2650 = vadd.f32 %v2586, %v2294
          %v2651 = vadd.f32 %v2587, %v2295
          %v2652 = vadd.f32 %v2588, %v2296
          %v2653 = vadd.f32 %v2589, %v2297
          %v2654 = vadd.f32 %v2590, %v2298
          %v2655 = vadd.f32 %v2591, %v2299
          %v2656 = vadd.f32 %v2592, %v2300
          %v2657 = vadd.f32 %v2593, %v2301
          %v2658 = vadd.f32 %v2594, %v2302
          %v2659 = vadd.f32 %v2595, %v2303
          %v2660 = vadd.f32 %v2596, %v2304
          %v2661 = vadd.f32 %v2597, %v2305
          %v2662 = vadd.f32 %v2598, %v2306
          %v2663 = vadd.f32 %v2599, %v2307
          %v2664 = vadd.f32 %v2600, %v2308
          %v2665 = vadd.f32 %v2601, %v2309
          %v2666 = vmax.f32 %v2602, 0.0
          %v2667 = vmax.f32 %v2603, 0.0
          %v2668 = vmax.f32 %v2604, 0.0
          %v2669 = vmax.f32 %v2605, 0.0
          %v2670 = vmax.f32 %v2606, 0.0
          %v2671 = vmax.f32 %v2607, 0.0
          %v2672 = vmax.f32 %v2608, 0.0
          %v2673 = vmax.f32 %v2609, 0.0
          %v2674 = vmax.f32 %v2610, 0.0
          %v2675 = vmax.f32 %v2611, 0.0
          %v2676 = vmax.f32 %v2612, 0.0
          %v2677 = vmax.f32 %v2613, 0.0
          %v2678 = vmax.f32 %v2614, 0.0
          %v2679 = vmax.f32 %v2615, 0.0
          %v2680 = vmax.f32 %v2616, 0.0
          %v2681 = vmax.f32 %v2617, 0.0
          %v2682 = vmax.f32 %v2618, 0.0
          %v2683 = vmax.f32 %v2619, 0.0
          %v2684 = vmax.f32 %v2620, 0.0
          %v2685 = vmax.f32 %v2621, 0.0
          %v2686 = vmax.f32 %v2622, 0.0
          %v2687 = vmax.f32 %v2623, 0.0
          %v2688 = vmax.f32 %v2624, 0.0
          %v2689 = vmax.f32 %v2625, 0.0
          %v2690 = vmax.f32 %v2626, 0.0
          %v2691 = vmax.f32 %v2627, 0.0
          %v2692 = vmax.f32 %v2628, 0.0
          %v2693 = vmax.f32 %v2629, 0.0
          %v2694 = vmax.f32 %v2630, 0.0
          %v2695 = vmax.f32 %v2631, 0.0
          %v2696 = vmax.f32 %v2632, 0.0
          %v2697 = vmax.f32 %v2633, 0.0
          %v2698 = vmax.f32 %v2634, 0.0
          %v2699 = vmax.f32 %v2635, 0.0
          %v2700 = vmax.f32 %v2636, 0.0
          %v2701 = vmax.f32 %v2637, 0.0
          %v2702 = vmax.f32 %v2638, 0.0
          %v2703 = vmax.f32 %v2639, 0.0
          %v2704 = vmax.f32 %v2640, 0.0
          %v2705 = vmax.f32 %v2641, 0.0
          %v2706 = vmax.f32 %v2642, 0.0
          %v2707 = vmax.f32 %v2643, 0.0
          %v2708 = vmax.f32 %v2644, 0.0
          %v2709 = vmax.f32 %v2645, 0.0
          %v2710 = vmax.f32 %v2646, 0.0
          %v2711 = vmax.f32 %v2647, 0.0
          %v2712 = vmax.f32 %v2648, 0.0
          %v2713 = vmax.f32 %v2649, 0.0
          %v2714 = vmax.f32 %v2650, 0.0
          %v2715 = vmax.f32 %v2651, 0.0
          %v2716 = vmax.f32 %v2652, 0.0
          %v2717 = vmax.f32 %v2653, 0.0
          %v2718 = vmax.f32 %v2654, 0.0
          %v2719 = vmax.f32 %v2655, 0.0
          %v2720 = vmax.f32 %v2656, 0.0
          %v2721 = vmax.f32 %v2657, 0.0
          %v2722 = vmax.f32 %v2658, 0.0
          %v2723 = vmax.f32 %v2659, 0.0
          %v2724 = vmax.f32 %v2660, 0.0
          %v2725 = vmax.f32 %v2661, 0.0
          %v2726 = vmax.f32 %v2662, 0.0
          %v2727 = vmax.f32 %v2663, 0.0
          %v2728 = vmax.f32 %v2664, 0.0
          %v2729 = vmax.f32 %v2665, 0.0
          %v2730 = vmin.f32 %v2666, 1.0
          %v2731 = vmin.f32 %v2667, 1.0
          %v2732 = vmin.f32 %v2668, 1.0
          %v2733 = vmin.f32 %v2669, 1.0
          %v2734 = vmin.f32 %v2670, 1.0
          %v2735 = vmin.f32 %v2671, 1.0
          %v2736 = vmin.f32 %v2672, 1.0
          %v2737 = vmin.f32 %v2673, 1.0
          %v2738 = vmin.f32 %v2674, 1.0
          %v2739 = vmin.f32 %v2675, 1.0
          %v2740 = vmin.f32 %v2676, 1.0
          %v2741 = vmin.f32 %v2677, 1.0
          %v2742 = vmin.f32 %v2678, 1.0
          %v2743 = vmin.f32 %v2679, 1.0
          %v2744 = vmin.f32 %v2680, 1.0
          %v2745 = vmin.f32 %v2681, 1.0
          %v2746 = vmin.f32 %v2682, 1.0
          %v2747 = vmin.f32 %v2683, 1.0
          %v2748 = vmin.f32 %v2684, 1.0
          %v2749 = vmin.f32 %v2685, 1.0
          %v2750 = vmin.f32 %v2686, 1.0
          %v2751 = vmin.f32 %v2687, 1.0
          %v2752 = vmin.f32 %v2688, 1.0
          %v2753 = vmin.f32 %v2689, 1.0
          %v2754 = vmin.f32 %v2690, 1.0
          %v2755 = vmin.f32 %v2691, 1.0
          %v2756 = vmin.f32 %v2692, 1.0
          %v2757 = vmin.f32 %v2693, 1.0
          %v2758 = vmin.f32 %v2694, 1.0
          %v2759 = vmin.f32 %v2695, 1.0
          %v2760 = vmin.f32 %v2696, 1.0
          %v2761 = vmin.f32 %v2697, 1.0
          %v2762 = vmin.f32 %v2698, 1.0
          %v2763 = vmin.f32 %v2699, 1.0
          %v2764 = vmin.f32 %v2700, 1.0
          %v2765 = vmin.f32 %v2701, 1.0
          %v2766 = vmin.f32 %v2702, 1.0
          %v2767 = vmin.f32 %v2703, 1.0
          %v2768 = vmin.f32 %v2704, 1.0
          %v2769 = vmin.f32 %v2705, 1.0
          %v2770 = vmin.f32 %v2706, 1.0
          %v2771 = vmin.f32 %v2707, 1.0
          %v2772 = vmin.f32 %v2708, 1.0
          %v2773 = vmin.f32 %v2709, 1.0
          %v2774 = vmin.f32 %v2710, 1.0
          %v2775 = vmin.f32 %v2711, 1.0
          %v2776 = vmin.f32 %v2712, 1.0
          %v2777 = vmin.f32 %v2713, 1.0
          %v2778 = vmin.f32 %v2714, 1.0
          %v2779 = vmin.f32 %v2715, 1.0
          %v2780 = vmin.f32 %v2716, 1.0
          %v2781 = vmin.f32 %v2717, 1.0
          %v2782 = vmin.f32 %v2718, 1.0
          %v2783 = vmin.f32 %v2719, 1.0
          %v2784 = vmin.f32 %v2720, 1.0
          %v2785 = vmin.f32 %v2721, 1.0
          %v2786 = vmin.f32 %v2722, 1.0
          %v2787 = vmin.f32 %v2723, 1.0
          %v2788 = vmin.f32 %v2724, 1.0
          %v2789 = vmin.f32 %v2725, 1.0
          %v2790 = vmin.f32 %v2726, 1.0
          %v2791 = vmin.f32 %v2727, 1.0
          %v2792 = vmin.f32 %v2728, 1.0
          %v2793 = vmin.f32 %v2729, 1.0
          %v2794 = vmul.f32 %v2730, %v2474
          %v2795 = vmul.f32 %v2731, %v2475
          %v2796 = vmul.f32 %v2732, %v2476
          %v2797 = vmul.f32 %v2733, %v2477
          %v2798 = vmul.f32 %v2734, %v2478
          %v2799 = vmul.f32 %v2735, %v2479
          %v2800 = vmul.f32 %v2736, %v2480
          %v2801 = vmul.f32 %v2737, %v2481
          %v2802 = vmul.f32 %v2738, %v2482
          %v2803 = vmul.f32 %v2739, %v2483
          %v2804 = vmul.f32 %v2740, %v2484
          %v2805 = vmul.f32 %v2741, %v2485
          %v2806 = vmul.f32 %v2742, %v2486
          %v2807 = vmul.f32 %v2743, %v2487
          %v2808 = vmul.f32 %v2744, %v2488
          %v2809 = vmul.f32 %v2745, %v2489
          %v2810 = vmul.f32 %v2746, %v2490
          %v2811 = vmul.f32 %v2747, %v2491
          %v2812 = vmul.f32 %v2748, %v2492
          %v2813 = vmul.f32 %v2749, %v2493
          %v2814 = vmul.f32 %v2750, %v2494
          %v2815 = vmul.f32 %v2751, %v2495
          %v2816 = vmul.f32 %v2752, %v2496
          %v2817 = vmul.f32 %v2753, %v2497
          %v2818 = vmul.f32 %v2754, %v2498
          %v2819 = vmul.f32 %v2755, %v2499
          %v2820 = vmul.f32 %v2756, %v2500
          %v2821 = vmul.f32 %v2757, %v2501
          %v2822 = vmul.f32 %v2758, %v2502
          %v2823 = vmul.f32 %v2759, %v2503
          %v2824 = vmul.f32 %v2760, %v2504
          %v2825 = vmul.f32 %v2761, %v2505
          %v2826 = vmul.f32 %v2762, %v2506
          %v2827 = vmul.f32 %v2763, %v2507
          %v2828 = vmul.f32 %v2764, %v2508
          %v2829 = vmul.f32 %v2765, %v2509
          %v2830 = vmul.f32 %v2766, %v2510
          %v2831 = vmul.f32 %v2767, %v2511
          %v2832 = vmul.f32 %v2768, %v2512
          %v2833 = vmul.f32 %v2769, %v2513
          %v2834 = vmul.f32 %v2770, %v2514
          %v2835 = vmul.f32 %v2771, %v2515
          %v2836 = vmul.f32 %v2772, %v2516
          %v2837 = vmul.f32 %v2773, %v2517
          %v2838 = vmul.f32 %v2774, %v2518
          %v2839 = vmul.f32 %v2775, %v2519
          %v2840 = vmul.f32 %v2776, %v2520
          %v2841 = vmul.f32 %v2777, %v2521
          %v2842 = vmul.f32 %v2778, %v2522
          %v2843 = vmul.f32 %v2779, %v2523
          %v2844 = vmul.f32 %v2780, %v2524
          %v2845 = vmul.f32 %v2781, %v2525
          %v2846 = vmul.f32 %v2782, %v2526
          %v2847 = vmul.f32 %v2783, %v2527
          %v2848 = vmul.f32 %v2784, %v2528
          %v2849 = vmul.f32 %v2785, %v2529
          %v2850 = vmul.f32 %v2786, %v2530
          %v2851 = vmul.f32 %v2787, %v2531
          %v2852 = vmul.f32 %v2788, %v2532
          %v2853 = vmul.f32 %v2789, %v2533
          %v2854 = vmul.f32 %v2790, %v2534
          %v2855 = vmul.f32 %v2791, %v2535
          %v2856 = vmul.f32 %v2792, %v2536
          %v2857 = vmul.f32 %v2793, %v2537
          %2858 = vxpose.xlu0.b32.start [1/16] %v2794, 128
          %2859 = vxpose.xlu0.b32.cont [2/16] %v2796, 128
          %2860 = vxpose.xlu0.b32.cont [3/16] %v2798, 128
          %2861 = vxpose.xlu0.b32.cont [4/16] %v2800, 128
          %2862 = vxpose.xlu0.b32.cont [5/16] %v2802, 128
          %2863 = vxpose.xlu0.b32.cont [6/16] %v2804, 128
          %2864 = vxpose.xlu0.b32.cont [7/16] %v2806, 128
          %2865 = vxpose.xlu0.b32.cont [8/16] %v2808, 128
          %2866 = vxpose.xlu0.b32.cont [9/16] %v2810, 128
          %2867 = vxpose.xlu0.b32.cont [10/16] %v2812, 128
          %2868 = vxpose.xlu0.b32.cont [11/16] %v2814, 128
          %2869 = vxpose.xlu0.b32.cont [12/16] %v2816, 128
          %2870 = vxpose.xlu0.b32.cont [13/16] %v2818, 128
          %2871 = vxpose.xlu0.b32.cont [14/16] %v2820, 128
          %2872 = vxpose.xlu0.b32.cont [15/16] %v2822, 128
          %2873 = vxpose.xlu0.b32.end [16/16] %v2824, 128
          %v2874 = vpop.trf.xlu0
          %v2875 = vpop.trf.xlu0
          %v2876 = vpop.trf.xlu0
          %v2877 = vpop.trf.xlu0
          %v2878 = vpop.trf.xlu0
          %v2879 = vpop.trf.xlu0
          %v2880 = vpop.trf.xlu0
          %v2881 = vpop.trf.xlu0
          %v2882 = vpop.trf.xlu0
          %v2883 = vpop.trf.xlu0
          %v2884 = vpop.trf.xlu0
          %v2885 = vpop.trf.xlu0
          %v2886 = vpop.trf.xlu0
          %v2887 = vpop.trf.xlu0
          %v2888 = vpop.trf.xlu0
          %v2889 = vpop.trf.xlu0
          %2890 = vxpose.xlu0.b32.start [1/16] %v2795, 128
          %2891 = vxpose.xlu0.b32.cont [2/16] %v2797, 128
          %2892 = vxpose.xlu0.b32.cont [3/16] %v2799, 128
          %2893 = vxpose.xlu0.b32.cont [4/16] %v2801, 128
          %2894 = vxpose.xlu0.b32.cont [5/16] %v2803, 128
          %2895 = vxpose.xlu0.b32.cont [6/16] %v2805, 128
          %2896 = vxpose.xlu0.b32.cont [7/16] %v2807, 128
          %2897 = vxpose.xlu0.b32.cont [8/16] %v2809, 128
          %2898 = vxpose.xlu0.b32.cont [9/16] %v2811, 128
          %2899 = vxpose.xlu0.b32.cont [10/16] %v2813, 128
          %2900 = vxpose.xlu0.b32.cont [11/16] %v2815, 128
          %2901 = vxpose.xlu0.b32.cont [12/16] %v2817, 128
          %2902 = vxpose.xlu0.b32.cont [13/16] %v2819, 128
          %2903 = vxpose.xlu0.b32.cont [14/16] %v2821, 128
          %2904 = vxpose.xlu0.b32.cont [15/16] %v2823, 128
          %2905 = vxpose.xlu0.b32.end [16/16] %v2825, 128
          %v2906 = vpop.trf.xlu0
          %v2907 = vpop.trf.xlu0
          %v2908 = vpop.trf.xlu0
          %v2909 = vpop.trf.xlu0
          %v2910 = vpop.trf.xlu0
          %v2911 = vpop.trf.xlu0
          %v2912 = vpop.trf.xlu0
          %v2913 = vpop.trf.xlu0
          %v2914 = vpop.trf.xlu0
          %v2915 = vpop.trf.xlu0
          %v2916 = vpop.trf.xlu0
          %v2917 = vpop.trf.xlu0
          %v2918 = vpop.trf.xlu0
          %v2919 = vpop.trf.xlu0
          %v2920 = vpop.trf.xlu0
          %v2921 = vpop.trf.xlu0
          %2922 = vxpose.xlu0.b32.start [1/16] %v2826, 128
          %2923 = vxpose.xlu0.b32.cont [2/16] %v2828, 128
          %2924 = vxpose.xlu0.b32.cont [3/16] %v2830, 128
          %2925 = vxpose.xlu0.b32.cont [4/16] %v2832, 128
          %2926 = vxpose.xlu0.b32.cont [5/16] %v2834, 128
          %2927 = vxpose.xlu0.b32.cont [6/16] %v2836, 128
          %2928 = vxpose.xlu0.b32.cont [7/16] %v2838, 128
          %2929 = vxpose.xlu0.b32.cont [8/16] %v2840, 128
          %2930 = vxpose.xlu0.b32.cont [9/16] %v2842, 128
          %2931 = vxpose.xlu0.b32.cont [10/16] %v2844, 128
          %2932 = vxpose.xlu0.b32.cont [11/16] %v2846, 128
          %2933 = vxpose.xlu0.b32.cont [12/16] %v2848, 128
          %2934 = vxpose.xlu0.b32.cont [13/16] %v2850, 128
          %2935 = vxpose.xlu0.b32.cont [14/16] %v2852, 128
          %2936 = vxpose.xlu0.b32.cont [15/16] %v2854, 128
          %2937 = vxpose.xlu0.b32.end [16/16] %v2856, 128
          %v2938 = vpop.trf.xlu0
          %v2939 = vpop.trf.xlu0
          %v2940 = vpop.trf.xlu0
          %v2941 = vpop.trf.xlu0
          %v2942 = vpop.trf.xlu0
          %v2943 = vpop.trf.xlu0
          %v2944 = vpop.trf.xlu0
          %v2945 = vpop.trf.xlu0
          %v2946 = vpop.trf.xlu0
          %v2947 = vpop.trf.xlu0
          %v2948 = vpop.trf.xlu0
          %v2949 = vpop.trf.xlu0
          %v2950 = vpop.trf.xlu0
          %v2951 = vpop.trf.xlu0
          %v2952 = vpop.trf.xlu0
          %v2953 = vpop.trf.xlu0
          %2954 = vxpose.xlu0.b32.start [1/16] %v2827, 128
          %2955 = vxpose.xlu0.b32.cont [2/16] %v2829, 128
          %2956 = vxpose.xlu0.b32.cont [3/16] %v2831, 128
          %2957 = vxpose.xlu0.b32.cont [4/16] %v2833, 128
          %2958 = vxpose.xlu0.b32.cont [5/16] %v2835, 128
          %2959 = vxpose.xlu0.b32.cont [6/16] %v2837, 128
          %2960 = vxpose.xlu0.b32.cont [7/16] %v2839, 128
          %2961 = vxpose.xlu0.b32.cont [8/16] %v2841, 128
          %2962 = vxpose.xlu0.b32.cont [9/16] %v2843, 128
          %2963 = vxpose.xlu0.b32.cont [10/16] %v2845, 128
          %2964 = vxpose.xlu0.b32.cont [11/16] %v2847, 128
          %2965 = vxpose.xlu0.b32.cont [12/16] %v2849, 128
          %2966 = vxpose.xlu0.b32.cont [13/16] %v2851, 128
          %2967 = vxpose.xlu0.b32.cont [14/16] %v2853, 128
          %2968 = vxpose.xlu0.b32.cont [15/16] %v2855, 128
          %2969 = vxpose.xlu0.b32.end [16/16] %v2857, 128
          %v2970 = vpop.trf.xlu0
          %v2971 = vpop.trf.xlu0
          %v2972 = vpop.trf.xlu0
          %v2973 = vpop.trf.xlu0
          %v2974 = vpop.trf.xlu0
          %v2975 = vpop.trf.xlu0
          %v2976 = vpop.trf.xlu0
          %v2977 = vpop.trf.xlu0
          %v2978 = vpop.trf.xlu0
          %v2979 = vpop.trf.xlu0
          %v2980 = vpop.trf.xlu0
          %v2981 = vpop.trf.xlu0
          %v2982 = vpop.trf.xlu0
          %v2983 = vpop.trf.xlu0
          %v2984 = vpop.trf.xlu0
          %v2985 = vpop.trf.xlu0
          %v2986 = vadd.f32 %v2794, %v2874
          %v2987 = vadd.f32 %v2795, %v2938
          %v2988 = vadd.f32 %v2796, %v2875
          %v2989 = vadd.f32 %v2797, %v2939
          %v2990 = vadd.f32 %v2798, %v2876
          %v2991 = vadd.f32 %v2799, %v2940
          %v2992 = vadd.f32 %v2800, %v2877
          %v2993 = vadd.f32 %v2801, %v2941
          %v2994 = vadd.f32 %v2802, %v2878
          %v2995 = vadd.f32 %v2803, %v2942
          %v2996 = vadd.f32 %v2804, %v2879
          %v2997 = vadd.f32 %v2805, %v2943
          %v2998 = vadd.f32 %v2806, %v2880
          %v2999 = vadd.f32 %v2807, %v2944
          %v3000 = vadd.f32 %v2808, %v2881
          %v3001 = vadd.f32 %v2809, %v2945
          %v3002 = vadd.f32 %v2810, %v2882
          %v3003 = vadd.f32 %v2811, %v2946
          %v3004 = vadd.f32 %v2812, %v2883
          %v3005 = vadd.f32 %v2813, %v2947
          %v3006 = vadd.f32 %v2814, %v2884
          %v3007 = vadd.f32 %v2815, %v2948
          %v3008 = vadd.f32 %v2816, %v2885
          %v3009 = vadd.f32 %v2817, %v2949
          %v3010 = vadd.f32 %v2818, %v2886
          %v3011 = vadd.f32 %v2819, %v2950
          %v3012 = vadd.f32 %v2820, %v2887
          %v3013 = vadd.f32 %v2821, %v2951
          %v3014 = vadd.f32 %v2822, %v2888
          %v3015 = vadd.f32 %v2823, %v2952
          %v3016 = vadd.f32 %v2824, %v2889
          %v3017 = vadd.f32 %v2825, %v2953
          %v3018 = vadd.f32 %v2826, %v2906
          %v3019 = vadd.f32 %v2827, %v2970
          %v3020 = vadd.f32 %v2828, %v2907
          %v3021 = vadd.f32 %v2829, %v2971
          %v3022 = vadd.f32 %v2830, %v2908
          %v3023 = vadd.f32 %v2831, %v2972
          %v3024 = vadd.f32 %v2832, %v2909
          %v3025 = vadd.f32 %v2833, %v2973
          %v3026 = vadd.f32 %v2834, %v2910
          %v3027 = vadd.f32 %v2835, %v2974
          %v3028 = vadd.f32 %v2836, %v2911
          %v3029 = vadd.f32 %v2837, %v2975
          %v3030 = vadd.f32 %v2838, %v2912
          %v3031 = vadd.f32 %v2839, %v2976
          %v3032 = vadd.f32 %v2840, %v2913
          %v3033 = vadd.f32 %v2841, %v2977
          %v3034 = vadd.f32 %v2842, %v2914
          %v3035 = vadd.f32 %v2843, %v2978
          %v3036 = vadd.f32 %v2844, %v2915
          %v3037 = vadd.f32 %v2845, %v2979
          %v3038 = vadd.f32 %v2846, %v2916
          %v3039 = vadd.f32 %v2847, %v2980
          %v3040 = vadd.f32 %v2848, %v2917
          %v3041 = vadd.f32 %v2849, %v2981
          %v3042 = vadd.f32 %v2850, %v2918
          %v3043 = vadd.f32 %v2851, %v2982
          %v3044 = vadd.f32 %v2852, %v2919
          %v3045 = vadd.f32 %v2853, %v2983
          %v3046 = vadd.f32 %v2854, %v2920
          %v3047 = vadd.f32 %v2855, %v2984
          %v3048 = vadd.f32 %v2856, %v2921
          %v3049 = vadd.f32 %v2857, %v2985
          %3050 = vst [vmem:[#allocation2] sm:$0xff] %v2986
          %3051 = vst [vmem:[#allocation2 + $0x8] sm:$0xff] %v2987
          %3052 = vst [vmem:[#allocation2 + $0x10] sm:$0xff] %v2988
          %3053 = vst [vmem:[#allocation2 + $0x18] sm:$0xff] %v2989
          %3054 = vst [vmem:[#allocation2 + $0x20] sm:$0xff] %v2990
          %3055 = vst [vmem:[#allocation2 + $0x28] sm:$0xff] %v2991
          %3056 = vst [vmem:[#allocation2 + $0x30] sm:$0xff] %v2992
          %3057 = vst [vmem:[#allocation2 + $0x38] sm:$0xff] %v2993
          %3058 = vst [vmem:[#allocation2 + $0x40] sm:$0xff] %v2994
          %3059 = vst [vmem:[#allocation2 + $0x48] sm:$0xff] %v2995
          %3060 = vst [vmem:[#allocation2 + $0x50] sm:$0xff] %v2996
          %3061 = vst [vmem:[#allocation2 + $0x58] sm:$0xff] %v2997
          %3062 = vst [vmem:[#allocation2 + $0x60] sm:$0xff] %v2998
          %3063 = vst [vmem:[#allocation2 + $0x68] sm:$0xff] %v2999
          %3064 = vst [vmem:[#allocation2 + $0x70] sm:$0xff] %v3000
          %3065 = vst [vmem:[#allocation2 + $0x78] sm:$0xff] %v3001
          %3066 = vst [vmem:[#allocation2 + $0x80] sm:$0xff] %v3002
          %3067 = vst [vmem:[#allocation2 + $0x88] sm:$0xff] %v3003
          %3068 = vst [vmem:[#allocation2 + $0x90] sm:$0xff] %v3004
          %3069 = vst [vmem:[#allocation2 + $0x98] sm:$0xff] %v3005
          %3070 = vst [vmem:[#allocation2 + $0xa0] sm:$0xff] %v3006
          %3071 = vst [vmem:[#allocation2 + $0xa8] sm:$0xff] %v3007
          %3072 = vst [vmem:[#allocation2 + $0xb0] sm:$0xff] %v3008
          %3073 = vst [vmem:[#allocation2 + $0xb8] sm:$0xff] %v3009
          %3074 = vst [vmem:[#allocation2 + $0xc0] sm:$0xff] %v3010
          %3075 = vst [vmem:[#allocation2 + $0xc8] sm:$0xff] %v3011
          %3076 = vst [vmem:[#allocation2 + $0xd0] sm:$0xff] %v3012
          %3077 = vst [vmem:[#allocation2 + $0xd8] sm:$0xff] %v3013
          %3078 = vst [vmem:[#allocation2 + $0xe0] sm:$0xff] %v3014
          %3079 = vst [vmem:[#allocation2 + $0xe8] sm:$0xff] %v3015
          %3080 = vst [vmem:[#allocation2 + $0xf0] sm:$0xff] %v3016
          %3081 = vst [vmem:[#allocation2 + $0xf8] sm:$0xff] %v3017
          %3082 = vst [vmem:[#allocation2 + $0x100] sm:$0xff] %v3018
          %3083 = vst [vmem:[#allocation2 + $0x108] sm:$0xff] %v3019
          %3084 = vst [vmem:[#allocation2 + $0x110] sm:$0xff] %v3020
          %3085 = vst [vmem:[#allocation2 + $0x118] sm:$0xff] %v3021
          %3086 = vst [vmem:[#allocation2 + $0x120] sm:$0xff] %v3022
          %3087 = vst [vmem:[#allocation2 + $0x128] sm:$0xff] %v3023
          %3088 = vst [vmem:[#allocation2 + $0x130] sm:$0xff] %v3024
          %3089 = vst [vmem:[#allocation2 + $0x138] sm:$0xff] %v3025
          %3090 = vst [vmem:[#allocation2 + $0x140] sm:$0xff] %v3026
          %3091 = vst [vmem:[#allocation2 + $0x148] sm:$0xff] %v3027
          %3092 = vst [vmem:[#allocation2 + $0x150] sm:$0xff] %v3028
          %3093 = vst [vmem:[#allocation2 + $0x158] sm:$0xff] %v3029
          %3094 = vst [vmem:[#allocation2 + $0x160] sm:$0xff] %v3030
          %3095 = vst [vmem:[#allocation2 + $0x168] sm:$0xff] %v3031
          %3096 = vst [vmem:[#allocation2 + $0x170] sm:$0xff] %v3032
          %3097 = vst [vmem:[#allocation2 + $0x178] sm:$0xff] %v3033
          %3098 = vst [vmem:[#allocation2 + $0x180] sm:$0xff] %v3034
          %3099 = vst [vmem:[#allocation2 + $0x188] sm:$0xff] %v3035
          %3100 = vst [vmem:[#allocation2 + $0x190] sm:$0xff] %v3036
          %3101 = vst [vmem:[#allocation2 + $0x198] sm:$0xff] %v3037
          %3102 = vst [vmem:[#allocation2 + $0x1a0] sm:$0xff] %v3038
          %3103 = vst [vmem:[#allocation2 + $0x1a8] sm:$0xff] %v3039
          %3104 = vst [vmem:[#allocation2 + $0x1b0] sm:$0xff] %v3040
          %3105 = vst [vmem:[#allocation2 + $0x1b8] sm:$0xff] %v3041
          %3106 = vst [vmem:[#allocation2 + $0x1c0] sm:$0xff] %v3042
          %3107 = vst [vmem:[#allocation2 + $0x1c8] sm:$0xff] %v3043
          %3108 = vst [vmem:[#allocation2 + $0x1d0] sm:$0xff] %v3044
          %3109 = vst [vmem:[#allocation2 + $0x1d8] sm:$0xff] %v3045
          %3110 = vst [vmem:[#allocation2 + $0x1e0] sm:$0xff] %v3046
          %3111 = vst [vmem:[#allocation2 + $0x1e8] sm:$0xff] %v3047
          %3112 = vst [vmem:[#allocation2 + $0x1f0] sm:$0xff] %v3048
          %3113 = vst [vmem:[#allocation2 + $0x1f8] sm:$0xff] %v3049
        $region44: #{sir_forward.3} parent=31 // pred_fallthru
          _
        %p3114 = scmp.lt.s32.totalorder %s26, 4
        %s3115 = scalar_select %p3114, %s26, 4
        %s3116 = smul.addr %s3115, 2
        %s3117 = smul.addr %s3116, 8
        %s3118 = scalar_lea.vmem %s4, %s3117
        %s3119 = sand.u32 %s133, 1
        %s3120 = scalar_lea.sflag [#allocation7], %s3119
        %s3121 = sand.u32 %s133, 1
        %s3122 = smul.addr %s3121, 256
        %s3123 = scalar_lea.vmem [#allocation6], %s3122
        // Predicated region
        $region45: #{sir_forward.3} parent=31 // pred_check
          %p3124 = pneg %p117
        $region46: #{sir_forward.3} parent=31 // pred_check_branch
          %3126 = sbr.rel (%p3124) target = $region48
        $region47: #{sir_forward.3} parent=31 // pred_region
          _
        $region48: #{sir_forward.3} parent=31 // pred_fallthru
          _
        // Predicated region
        $region49: #{sir_forward.3} parent=31 // pred_check
          %p3127 = pneg %p143
        $region50: #{sir_forward.3} parent=31 // pred_check_branch
          %3129 = sbr.rel (%p3127) target = $region52
        $region51: #{sir_forward.3} parent=31 // pred_region
          %s3131 = ssub.s32 4096, 4096
          %3132 = vsyncadd %s3120, %s3131
          %s3133 = smul.addr %s26, 64
          %s3134 = smul.addr %s3133, 64
          %s3135 = scalar_lea.hbm %s5, %s3134
          %s3136 = sshll.u32 %s3123, 4
          %s3137 = int_to_ptr.vmem [resolvable:$true] %s3136
          %3142 = dma.vmem_to_hbm [thread:$0]  %s3137, 4096, %s3135, %s3120, 128, 128, 8
        $region52: #{sir_forward.3} parent=31 // pred_fallthru
          _
      $region32: #{sir_forward.3} parent=5 // pred_fallthru
        _
      %p3143 = scmp.le.s32.totalorder 2, %s21
      // Predicated region
      $region53: #{sir_forward.3} parent=5 // pred_check
        %p3144 = pneg %p3143
      $region54: #{sir_forward.3} parent=5 // pred_check_branch
        %3146 = sbr.rel (%p3144) target = $region56
      $region55: #{sir_forward.3} parent=5 // pred_region
        %s3147 = ssub.s32 %s21, 2
        // Predicated region
        $region57: #{sir_forward.3} parent=55 // pred_check
          %p3148 = pneg %p123
        $region58: #{sir_forward.3} parent=55 // pred_check_branch
          %3150 = sbr.rel (%p3148) target = $region60
        $region59: #{sir_forward.3} parent=55 // pred_region
          %p3151 = scmp.lt.s32.totalorder %s27, 4
          %s3152 = scalar_select %p3151, %s27, 4
          %s3153 = smul.addr %s3152, 2
          %s3154 = smul.addr %s3153, 8
          %s3155 = scalar_lea.vmem %s4, %s3154
        $region60: #{sir_forward.3} parent=55 // pred_fallthru
          _
        // Predicated region
        $region61: #{sir_forward.3} parent=55 // pred_check
          %p3156 = pneg %p149
        $region62: #{sir_forward.3} parent=55 // pred_check_branch
          %3158 = sbr.rel (%p3156) target = $region64
        $region63: #{sir_forward.3} parent=55 // pred_region
          %s3159 = sand.u32 %s134, 1
          %s3160 = scalar_lea.sflag [#allocation7], %s3159
          %s3161 = sand.u32 %s134, 1
          %s3162 = smul.addr %s3161, 256
          %s3163 = scalar_lea.vmem [#allocation6], %s3162
          %3164 = dma.done %s3160, 4096
        $region64: #{sir_forward.3} parent=55 // pred_fallthru
          _
      $region56: #{sir_forward.3} parent=5 // pred_fallthru
        _
    $region6: #{sir_forward.3} parent=1 // loop_footer
      %s25 = sadd.s32 1, %s21
    $region7: #{sir_forward.3} parent=1 // loop_footer_branch
      %20 = sbr.rel target = $region3
    $region8: #{sir_forward.3} parent=1 // loop_exit
      _
    %3165 = vsyncpa [#allocation7], 1
    %s3166 = scalar_lea.sflag [#allocation7], 1
    %3167 = vsyncpa %s3166, 1

</llo_original>
